<compile_context>
chip_gen: v7x
topology: tpu7x:2x2x1
jax: 0.10.0
libtpu: 0.0.40
codegen_flags: <defaults>
</compile_context>

<pallas_src>
import numpy as np

import jax
import jax.numpy as jnp
from jax import lax
from jax.experimental import pallas as pl
from jax.experimental.pallas import tpu as pltpu

# ----- physical constants (match the PyTorch module) -------------------------
PAI = 3.141592653589793
C = 299792458.0
MU0 = 4.0 * PAI * 1e-7
EPSILON0 = 1.0 / (C ** 2 * MU0)

# dot_general contracting the lane (3N) axis of BOTH operands ("NT" matmul)
_NT_DIMS = (((1,), (1,)), ((), ()))


def _pick_group(B, max_group=8):
    """Largest batch-group size that divides B while keeping >= 2 grid steps
    (so dimension_semantics=("parallel",) can use both TensorCores on v7x)."""
    best = 1
    for d in range(1, min(B, max_group) + 1):
        if B % d == 0 and B // d >= 2:
            best = d
    return best


def make_gsct_kernel(freq, bb, is_attenuation):
    omega = 2.0 * PAI * freq
    oe = omega * EPSILON0
    # trace-time constants: no runtime divides inside the kernel
    NEG_INV_OE = -1.0 / oe          # kai_imag scale (attenuation branch)
    NEG_OE_1000 = -oe / 1000.0      # Gsct_real scale
    POS_OE_1000 = oe / 1000.0       # Gsct_imag scale

    def kernel(a_ref, g_ref, k_ref, out_ref):
        # a_ref : (2, bb, 3, 3N)  gsr, A-layout : A[c,b,i, m*N+n] = gsr[b,n,3i+m,c]
        # g_ref : (2, bb, 3, 3N)  grf, GT-layout: G[c,b,j, m*N+n] = grf[b,n,3m+j,c]
        # k_ref : (2, bb, 1, 3N)  kai, tiled 3x along lanes (one copy per m)
        # out   : (bb, 2, 3, 3)   [:,0] = Gsct_real, [:,1] = Gsct_imag
        kr_all = k_ref[0] * 10.0                        # (bb, 1, 3N)
        if is_attenuation:
            ki_all = k_ref[1] * NEG_INV_OE              # (bb, 1, 3N)

        def mm(x, y):
            return lax.dot_general(
                x, y, _NT_DIMS,
                precision=lax.Precision.HIGHEST,
                preferred_element_type=jnp.float32)

        for b in range(bb):                             # static; bb <= 8
            gr = a_ref[0, b]                            # (3, 3N) leading-dim index
            gi = a_ref[1, b]
            kr = kr_all[b]                              # (1, 3N) sublane-broadcast
            if is_attenuation:
                ki = ki_all[b]
                ar = gr * kr - gi * ki                  # gsr * kai (complex, VPU)
                ai = gi * kr + gr * ki
            else:
                ar = gr * kr
                ai = gi * kr
            hr = g_ref[0, b]                            # (3, 3N)
            hi = g_ref[1, b]
            # Fused m-contraction + N-reduction on the MXU -> (3, 3) each.
            rr = mm(ar, hr)
            ii = mm(ai, hi)
            ri = mm(ar, hi)
            ir = mm(ai, hr)
            out_ref[b, 0, :, :] = NEG_OE_1000 * (ri + ir)   # -oe * gsct_imag / 1000
            out_ref[b, 1, :, :] = POS_OE_1000 * (rr - ii)   # +oe * gsct_real / 1000

    return kernel


def compute_gsct(gsr, grf, kai, freq, is_attenuation=True, max_group=8):
    """JAX/Pallas port of ComputeGsct.forward([gsr, grf, kai]) -> (B, 9, 2)."""
    B, N, nine, two = gsr.shape
    assert nine == 9 and two == 2 and kai.shape == (B, N, 2)
    gsr = gsr.astype(jnp.float32)
    grf = grf.astype(jnp.float32)
    kai = kai.astype(jnp.float32)

    # Lane-dense layouts: 3N on lanes, dyadic row (3) on sublanes, re/im + batch leading.
    # A[c, b, i, m*N+n] = gsr[b, n, 3i+m, c]
    a = jnp.transpose(gsr, (3, 0, 2, 1)).reshape(2, B, 3, 3 * N)
    # GT[c, b, j, m*N+n] = grf[b, n, 3m+j, c]
    g5 = jnp.transpose(grf, (3, 0, 2, 1)).reshape(2, B, 3, 3, N)
    g = jnp.transpose(g5, (0, 1, 3, 2, 4)).reshape(2, B, 3, 3 * N)
    # kai replicated once per m so it multiplies the A layout directly.
    k3 = jnp.tile(jnp.transpose(kai, (2, 0, 1)), (1, 1, 3)).reshape(2, B, 1, 3 * N)

    bb = _pick_group(B, max_group)
    T = B // bb
    kernel = make_gsct_kernel(freq, bb, is_attenuation)

    out = pl.pallas_call(
        kernel,
        out_shape=jax.ShapeDtypeStruct((B, 2, 3, 3), jnp.float32),
        grid=(T,),
        in_specs=[
            pl.BlockSpec((2, bb, 3, 3 * N), lambda t: (0, t, 0, 0)),
            pl.BlockSpec((2, bb, 3, 3 * N), lambda t: (0, t, 0, 0)),
            pl.BlockSpec((2, bb, 1, 3 * N), lambda t: (0, t, 0, 0)),
        ],
        out_specs=pl.BlockSpec((bb, 2, 3, 3), lambda t: (t, 0, 0, 0)),
        compiler_params=pltpu.CompilerParams(dimension_semantics=("parallel",)),
    )(a, g, k3)

    # (B, 2, 3, 3) -> (B, 9, 2)  (component order xx,xy,xz,yx,...,zz as in the module)
    return jnp.transpose(out, (0, 2, 3, 1)).reshape(B, 9, 2)


# ----------------------------- float64 numpy reference -----------------------
def gsct_reference(gsr, grf, kai, freq, is_attenuation=True):
    gsr = np.asarray(gsr, dtype=np.float64)
    grf = np.asarray(grf, dtype=np.float64)
    kai = np.asarray(kai, dtype=np.float64)
    omega = 2.0 * PAI * freq
    oe = omega * EPSILON0
    B, N = gsr.shape[:2]

    gsr_c = gsr[..., 0] + 1j * gsr[..., 1]          # (B, N, 9)
    grf_c = grf[..., 0] + 1j * grf[..., 1]          # (B, N, 9)
    if is_attenuation:
        kai_c = kai[..., 0] * 10.0 - 1j * kai[..., 1] / oe
    else:
        kai_c = (kai[..., 0] * 10.0).astype(np.complex128)

    A = (gsr_c * kai_c[..., None]).reshape(B, N, 3, 3)   # [b,n,i,m]
    G = grf_c.reshape(B, N, 3, 3)                        # [b,n,m,j]
    gsct = np.einsum('bnim,bnmj->bij', A, G)             # complex (B,3,3)

    gsct_real = -oe * gsct.imag / 1000.0
    gsct_imag = oe * gsct.real / 1000.0
    return np.stack([gsct_real.reshape(B, 9), gsct_imag.reshape(B, 9)], axis=-1)


if __name__ == "__main__":
    freq = 3.0e8
    B, N = 2, 128

    key = jax.random.PRNGKey(0)
    k1, k2, k3 = jax.random.split(key, 3)
    # x[0] = gsr (B,N,9,2), x[1] = grf (B,N,9,2), x[2] = kai (B,N,2)
    gsr = jax.random.uniform(k1, (B, N, 9, 2), jnp.float32, 0.1, 1.0)
    grf = jax.random.uniform(k2, (B, N, 9, 2), jnp.float32, 0.1, 1.0)
    kai = jax.random.uniform(k3, (B, N, 2), jnp.float32, 0.1, 1.0)

    out = compute_gsct(gsr, grf, kai, freq, is_attenuation=True)
    out = jax.block_until_ready(out)
    assert out.shape == (B, 9, 2)

    ref = gsct_reference(np.asarray(gsr), np.asarray(grf), np.asarray(kai), freq, True)
    np.testing.assert_allclose(np.asarray(out), ref, rtol=2e-3, atol=1e-6)
    print("KERNEL_OK")
</pallas_src>

<mosaic_0001>
module attributes {stable_mosaic.version = 11 : i64} {
  func.func @kernel(%arg0: i32, %arg1: memref<2x1x3x384xf32, #tpu.memory_space<vmem>>, %arg2: memref<2x1x3x384xf32, #tpu.memory_space<vmem>>, %arg3: memref<2x1x1x384xf32, #tpu.memory_space<vmem>>, %arg4: memref<1x2x3x3xf32, #tpu.memory_space<vmem>>) attributes {dimension_semantics = [#tpu.dimension_semantics<parallel>], iteration_bounds = array<i64: 2>, scalar_prefetch = 0 : i64, scratch_operands = 0 : i64, tpu.core_type = #tpu.core_type<tc>, window_params = [{transform_indices = @transform_0, window_bounds = array<i64: 2, 1, 3, 384>}, {transform_indices = @transform_1, window_bounds = array<i64: 2, 1, 3, 384>}, {transform_indices = @transform_2, window_bounds = array<i64: 2, 1, 1, 384>}, {transform_indices = @transform_3, window_bounds = array<i64: 1, 2, 3, 3>}]} {
    %c0 = arith.constant 0 : index
    %c0_0 = arith.constant 0 : index
    %c0_1 = arith.constant 0 : index
    %c0_2 = arith.constant 0 : index
    %0 = vector.load %arg3[%c0, %c0_0, %c0_1, %c0_2] : memref<2x1x1x384xf32, #tpu.memory_space<vmem>>, vector<1x1x1x384xf32>
    %1 = vector.shape_cast %0 : vector<1x1x1x384xf32> to vector<1x1x384xf32>
    %cst = arith.constant 1.000000e+01 : f32
    %2 = vector.broadcast %cst : f32 to vector<1x1x384xf32>
    %3 = arith.mulf %1, %2 : vector<1x1x384xf32>
    %c1 = arith.constant 1 : index
    %c0_3 = arith.constant 0 : index
    %c0_4 = arith.constant 0 : index
    %c0_5 = arith.constant 0 : index
    %4 = vector.load %arg3[%c1, %c0_3, %c0_4, %c0_5] : memref<2x1x1x384xf32, #tpu.memory_space<vmem>>, vector<1x1x1x384xf32>
    %5 = vector.shape_cast %4 : vector<1x1x1x384xf32> to vector<1x1x384xf32>
    %cst_6 = arith.constant -59.9170113 : f32
    %6 = vector.broadcast %cst_6 : f32 to vector<1x1x384xf32>
    %7 = arith.mulf %5, %6 : vector<1x1x384xf32>
    %c0_7 = arith.constant 0 : index
    %c0_8 = arith.constant 0 : index
    %c0_9 = arith.constant 0 : index
    %c0_10 = arith.constant 0 : index
    %8 = vector.load %arg1[%c0_7, %c0_8, %c0_9, %c0_10] : memref<2x1x3x384xf32, #tpu.memory_space<vmem>>, vector<1x1x3x384xf32>
    %9 = vector.shape_cast %8 : vector<1x1x3x384xf32> to vector<3x384xf32>
    %c1_11 = arith.constant 1 : index
    %c0_12 = arith.constant 0 : index
    %c0_13 = arith.constant 0 : index
    %c0_14 = arith.constant 0 : index
    %10 = vector.load %arg1[%c1_11, %c0_12, %c0_13, %c0_14] : memref<2x1x3x384xf32, #tpu.memory_space<vmem>>, vector<1x1x3x384xf32>
    %11 = vector.shape_cast %10 : vector<1x1x3x384xf32> to vector<3x384xf32>
    %12 = vector.shape_cast %3 : vector<1x1x384xf32> to vector<1x384xf32>
    %13 = vector.shape_cast %7 : vector<1x1x384xf32> to vector<1x384xf32>
    %14 = vector.broadcast %12 : vector<1x384xf32> to vector<3x384xf32>
    %15 = arith.mulf %9, %14 : vector<3x384xf32>
    %16 = vector.broadcast %13 : vector<1x384xf32> to vector<3x384xf32>
    %17 = arith.mulf %11, %16 : vector<3x384xf32>
    %18 = arith.subf %15, %17 : vector<3x384xf32>
    %19 = vector.broadcast %12 : vector<1x384xf32> to vector<3x384xf32>
    %20 = arith.mulf %11, %19 : vector<3x384xf32>
    %21 = vector.broadcast %13 : vector<1x384xf32> to vector<3x384xf32>
    %22 = arith.mulf %9, %21 : vector<3x384xf32>
    %23 = arith.addf %20, %22 : vector<3x384xf32>
    %c0_15 = arith.constant 0 : index
    %c0_16 = arith.constant 0 : index
    %c0_17 = arith.constant 0 : index
    %c0_18 = arith.constant 0 : index
    %24 = vector.load %arg2[%c0_15, %c0_16, %c0_17, %c0_18] : memref<2x1x3x384xf32, #tpu.memory_space<vmem>>, vector<1x1x3x384xf32>
    %25 = vector.shape_cast %24 : vector<1x1x3x384xf32> to vector<3x384xf32>
    %c1_19 = arith.constant 1 : index
    %c0_20 = arith.constant 0 : index
    %c0_21 = arith.constant 0 : index
    %c0_22 = arith.constant 0 : index
    %26 = vector.load %arg2[%c1_19, %c0_20, %c0_21, %c0_22] : memref<2x1x3x384xf32, #tpu.memory_space<vmem>>, vector<1x1x3x384xf32>
    %27 = vector.shape_cast %26 : vector<1x1x3x384xf32> to vector<3x384xf32>
    %cst_23 = arith.constant dense<0.000000e+00> : vector<3x3xf32>
    %28 = tpu.matmul %18, %25, %cst_23 {dimension_numbers = #tpu.dot_dimension_numbers<[1], [1], [0], [0], [0, 0, 1, 0], [], []>, precision = #tpu.contract_precision<fp32>} : vector<3x384xf32>, vector<3x384xf32>, vector<3x3xf32> -> vector<3x3xf32>
    %cst_24 = arith.constant dense<0.000000e+00> : vector<3x3xf32>
    %29 = tpu.matmul %23, %27, %cst_24 {dimension_numbers = #tpu.dot_dimension_numbers<[1], [1], [0], [0], [0, 0, 1, 0], [], []>, precision = #tpu.contract_precision<fp32>} : vector<3x384xf32>, vector<3x384xf32>, vector<3x3xf32> -> vector<3x3xf32>
    %cst_25 = arith.constant dense<0.000000e+00> : vector<3x3xf32>
    %30 = tpu.matmul %18, %27, %cst_25 {dimension_numbers = #tpu.dot_dimension_numbers<[1], [1], [0], [0], [0, 0, 1, 0], [], []>, precision = #tpu.contract_precision<fp32>} : vector<3x384xf32>, vector<3x384xf32>, vector<3x3xf32> -> vector<3x3xf32>
    %cst_26 = arith.constant dense<0.000000e+00> : vector<3x3xf32>
    %31 = tpu.matmul %23, %25, %cst_26 {dimension_numbers = #tpu.dot_dimension_numbers<[1], [1], [0], [0], [0, 0, 1, 0], [], []>, precision = #tpu.contract_precision<fp32>} : vector<3x384xf32>, vector<3x384xf32>, vector<3x3xf32> -> vector<3x3xf32>
    %32 = arith.addf %30, %31 : vector<3x3xf32>
    %cst_27 = arith.constant -1.66897516E-5 : f32
    %33 = vector.broadcast %cst_27 : f32 to vector<3x3xf32>
    %34 = arith.mulf %33, %32 : vector<3x3xf32>
    %c0_28 = arith.constant 0 : index
    %c0_29 = arith.constant 0 : index
    %c0_30 = arith.constant 0 : index
    %c0_31 = arith.constant 0 : index
    %35 = vector.load %arg4[%c0_28, %c0_29, %c0_30, %c0_31] : memref<1x2x3x3xf32, #tpu.memory_space<vmem>>, vector<1x1x3x3xf32>
    %36 = vector.shape_cast %35 : vector<1x1x3x3xf32> to vector<3x3xf32>
    %37 = vector.shape_cast %34 : vector<3x3xf32> to vector<1x1x3x3xf32>
    tpu.vector_store %arg4[%c0_28, %c0_29, %c0_30, %c0_31], %37 {strides = array<i32>} : memref<1x2x3x3xf32, #tpu.memory_space<vmem>>, vector<1x1x3x3xf32>,
    %38 = arith.subf %28, %29 : vector<3x3xf32>
    %cst_32 = arith.constant 1.66897516E-5 : f32
    %39 = vector.broadcast %cst_32 : f32 to vector<3x3xf32>
    %40 = arith.mulf %39, %38 : vector<3x3xf32>
    %c0_33 = arith.constant 0 : index
    %c1_34 = arith.constant 1 : index
    %c0_35 = arith.constant 0 : index
    %c0_36 = arith.constant 0 : index
    %41 = vector.load %arg4[%c0_33, %c1_34, %c0_35, %c0_36] : memref<1x2x3x3xf32, #tpu.memory_space<vmem>>, vector<1x1x3x3xf32>
    %42 = vector.shape_cast %41 : vector<1x1x3x3xf32> to vector<3x3xf32>
    %43 = vector.shape_cast %40 : vector<3x3xf32> to vector<1x1x3x3xf32>
    tpu.vector_store %arg4[%c0_33, %c1_34, %c0_35, %c0_36], %43 {strides = array<i32>} : memref<1x2x3x3xf32, #tpu.memory_space<vmem>>, vector<1x1x3x3xf32>,
    return
  }
  func.func @transform_0(%arg0: i32) -> (i32, i32, i32, i32) {
    %c0_i32 = arith.constant 0 : i32
    %c0_i32_0 = arith.constant 0 : i32
    %c0_i32_1 = arith.constant 0 : i32
    %c0_i32_2 = arith.constant 0 : i32
    return %c0_i32, %arg0, %c0_i32_0, %c0_i32_1 : i32, i32, i32, i32
  }
  func.func @transform_1(%arg0: i32) -> (i32, i32, i32, i32) {
    %c0_i32 = arith.constant 0 : i32
    %c0_i32_0 = arith.constant 0 : i32
    %c0_i32_1 = arith.constant 0 : i32
    %c0_i32_2 = arith.constant 0 : i32
    return %c0_i32, %arg0, %c0_i32_0, %c0_i32_1 : i32, i32, i32, i32
  }
  func.func @transform_2(%arg0: i32) -> (i32, i32, i32, i32) {
    %c0_i32 = arith.constant 0 : i32
    %c0_i32_0 = arith.constant 0 : i32
    %c0_i32_1 = arith.constant 0 : i32
    %c0_i32_2 = arith.constant 0 : i32
    return %c0_i32, %arg0, %c0_i32_0, %c0_i32_1 : i32, i32, i32, i32
  }
  func.func @transform_3(%arg0: i32) -> (i32, i32, i32, i32) {
    %c0_i32 = arith.constant 0 : i32
    %c0_i32_0 = arith.constant 0 : i32
    %c0_i32_1 = arith.constant 0 : i32
    %c0_i32_2 = arith.constant 0 : i32
    return %arg0, %c0_i32, %c0_i32_0, %c0_i32_1 : i32, i32, i32, i32
  }
}

</mosaic_0001>

<llo_original>
// kernel: tpu_custom_call.1
$region0: #{tpu_custom_call.1}
  #allocation0 [shape = 'u32[]', space=smem, size = 0x4, offset = 0x4, fixed_abs, tag = 'smem constant byte address 0x4 - core index']
  #allocation1 [shape = 'u32[144,128]{1,0:T(1,128)}', space=vmem, size = 0x12000, scoped, tag = 'internal scratch']
  %s0 = inlined_call_operand.vmem [shape: f32[2,2,3,384], index: 0, kind: input, shape index: {}]
  %s1 = inlined_call_operand.vmem [shape: f32[2,2,3,384], index: 1, kind: input, shape index: {}]
  %s2 = inlined_call_operand.vmem [shape: f32[2,2,1,384], index: 2, kind: input, shape index: {}]
  %s3 = inlined_call_operand.vmem [shape: f32[2,2,3,3], index: 3, kind: output, shape index: {}]
  %s4 = sld [smem:[#allocation0]]
  $region131: #{tpu_custom_call.1} parent=0
    _
  %s6 = ssub.s32 1, %s4
  %s7 = scalar_select 0, %s6, %s4
  $region1: #{tpu_custom_call.1} parent=0
    #allocation2 [shape = 'u8[24576]{0}', space=vmem, size = 0x6000, scoped, tag = 'input window, operand 0']
    #allocation3 [shape = 'u8[24576]{0}', space=vmem, size = 0x6000, scoped, tag = 'input window, operand 1']
    #allocation4 [shape = 'u8[6144]{0}', space=vmem, size = 0x1800, scoped, tag = 'input window, operand 2']
    loop: start=0, step=1, limit=4
    $region2: #{tpu_custom_call.1} parent=1 // loop_pre_header
      _
    $region3: #{tpu_custom_call.1} parent=1 // loop_header
      %s9 = sphi 0, %s13
      %p10 = scmp.ge.s32.totalorder %s9, 4
      %s19 = sphi 0, %s21
      %s22 = sphi 0, %s19
      %s23 = sphi 0, %s22
      %s39 = sphi 0, %s23
      %s45 = sphi 0, %s47
      %s48 = sphi 0, %s45
      %s49 = sphi 0, %s48
      %s65 = sphi 0, %s49
      %s71 = sphi 0, %s73
      %s74 = sphi 0, %s71
      %s75 = sphi 0, %s74
      %s91 = sphi 0, %s75
      %s97 = sphi 0, %s99
      %s100 = sphi 0, %s97
      %s101 = sphi 0, %s100
      %s117 = sphi 0, %s101
    $region4: #{tpu_custom_call.1} parent=1 // loop_header_branch
      %12 = sbr.rel (%p10) target = $region8
    $region5: #{tpu_custom_call.1} parent=1 // loop_body
      %s14 = ssub.s32 %s9, 1
      %s15 = ssub.s32 %s9, 2
      %s16 = sadd.s32 %s9, 1
      %s17 = ssub.s32 %s9, %s16
      %p18 = scmp.eq.s32.totalorder %s17, 0
      %s20 = sadd.s32 %s19, 1
      %s21 = scalar_select %p18, %s19, %s20
      %p24 = pneg %p18
      %p25 = scmp.eq.s32.totalorder %s9, 1
      %p26 = por %p24, %p25
      %p27 = scmp.ne.s32.totalorder %s19, %s22
      %p28 = scmp.eq.s32.totalorder %s9, 0
      %p29 = por %p27, %p28
      %p30 = scmp.ne.s32.totalorder %s19, %s22
      %p31 = scmp.eq.s32.totalorder %s14, 1
      %p32 = por %p30, %p31
      %p33 = scmp.ne.s32.totalorder %s22, %s23
      %p34 = scmp.eq.s32.totalorder %s14, 0
      %p35 = por %p33, %p34
      %p36 = scmp.ne.s32.totalorder %s22, %s23
      %p37 = scmp.eq.s32.totalorder %s15, 1
      %p38 = por %p36, %p37
      %p40 = scmp.ne.s32.totalorder %s23, %s39
      %p41 = scmp.eq.s32.totalorder %s15, 0
      %p42 = por %p40, %p41
      %s43 = ssub.s32 %s9, %s16
      %p44 = scmp.eq.s32.totalorder %s43, 0
      %s46 = sadd.s32 %s45, 1
      %s47 = scalar_select %p44, %s45, %s46
      %p50 = pneg %p44
      %p51 = scmp.eq.s32.totalorder %s9, 1
      %p52 = por %p50, %p51
      %p53 = scmp.ne.s32.totalorder %s45, %s48
      %p54 = scmp.eq.s32.totalorder %s9, 0
      %p55 = por %p53, %p54
      %p56 = scmp.ne.s32.totalorder %s45, %s48
      %p57 = scmp.eq.s32.totalorder %s14, 1
      %p58 = por %p56, %p57
      %p59 = scmp.ne.s32.totalorder %s48, %s49
      %p60 = scmp.eq.s32.totalorder %s14, 0
      %p61 = por %p59, %p60
      %p62 = scmp.ne.s32.totalorder %s48, %s49
      %p63 = scmp.eq.s32.totalorder %s15, 1
      %p64 = por %p62, %p63
      %p66 = scmp.ne.s32.totalorder %s49, %s65
      %p67 = scmp.eq.s32.totalorder %s15, 0
      %p68 = por %p66, %p67
      %s69 = ssub.s32 %s9, %s16
      %p70 = scmp.eq.s32.totalorder %s69, 0
      %s72 = sadd.s32 %s71, 1
      %s73 = scalar_select %p70, %s71, %s72
      %p76 = pneg %p70
      %p77 = scmp.eq.s32.totalorder %s9, 1
      %p78 = por %p76, %p77
      %p79 = scmp.ne.s32.totalorder %s71, %s74
      %p80 = scmp.eq.s32.totalorder %s9, 0
      %p81 = por %p79, %p80
      %p82 = scmp.ne.s32.totalorder %s71, %s74
      %p83 = scmp.eq.s32.totalorder %s14, 1
      %p84 = por %p82, %p83
      %p85 = scmp.ne.s32.totalorder %s74, %s75
      %p86 = scmp.eq.s32.totalorder %s14, 0
      %p87 = por %p85, %p86
      %p88 = scmp.ne.s32.totalorder %s74, %s75
      %p89 = scmp.eq.s32.totalorder %s15, 1
      %p90 = por %p88, %p89
      %p92 = scmp.ne.s32.totalorder %s75, %s91
      %p93 = scmp.eq.s32.totalorder %s15, 0
      %p94 = por %p92, %p93
      %s95 = ssub.s32 %s9, %s16
      %p96 = scmp.eq.s32.totalorder %s95, 0
      %s98 = sadd.s32 %s97, 1
      %s99 = scalar_select %p96, %s97, %s98
      %p102 = pneg %p96
      %p103 = scmp.eq.s32.totalorder %s9, 1
      %p104 = por %p102, %p103
      %p105 = scmp.ne.s32.totalorder %s97, %s100
      %p106 = scmp.eq.s32.totalorder %s9, 0
      %p107 = por %p105, %p106
      %p108 = scmp.ne.s32.totalorder %s97, %s100
      %p109 = scmp.eq.s32.totalorder %s14, 1
      %p110 = por %p108, %p109
      %p111 = scmp.ne.s32.totalorder %s100, %s101
      %p112 = scmp.eq.s32.totalorder %s14, 0
      %p113 = por %p111, %p112
      %p114 = scmp.ne.s32.totalorder %s100, %s101
      %p115 = scmp.eq.s32.totalorder %s15, 1
      %p116 = por %p114, %p115
      %p118 = scmp.ne.s32.totalorder %s101, %s117
      %p119 = scmp.eq.s32.totalorder %s15, 0
      %p120 = por %p118, %p119
      %p121 = scmp.le.s32.totalorder 1, %s9
      %p122 = scmp.lt.s32.totalorder %s9, 3
      %p123 = pnand %p121, %p122
      %p124 = pneg %p123
      // Predicated region
      $region9: #{tpu_custom_call.1} parent=5 // pred_check
        _
      $region10: #{tpu_custom_call.1} parent=5 // pred_check_branch
        %126 = sbr.rel (%p123) target = $region12
      $region11: #{tpu_custom_call.1} parent=5 // pred_region
        %s127 = ssub.s32 %s9, 1
      $region12: #{tpu_custom_call.1} parent=5 // pred_fallthru
        _
      %p128 = scmp.lt.s32.totalorder %s9, 2
      // Predicated region
      $region13: #{tpu_custom_call.1} parent=5 // pred_check
        %p129 = pneg %p128
      $region14: #{tpu_custom_call.1} parent=5 // pred_check_branch
        %131 = sbr.rel (%p129) target = $region16
      $region15: #{tpu_custom_call.1} parent=5 // pred_region
        // Predicated region
        $region17: #{tpu_custom_call.1} parent=15 // pred_check
          %p132 = pneg %p29
        $region18: #{tpu_custom_call.1} parent=15 // pred_check_branch
          %134 = sbr.rel (%p132) target = $region20
        $region19: #{tpu_custom_call.1} parent=15 // pred_region
          %s135 = sand.u32 %s19, 1
          %s136 = sand.u32 %s19, 1
          %s137 = smul.addr %s136, 24
          %s138 = scalar_lea.vmem [#allocation2], %s137
          %s139 = smul.addr %s9, 3
          %s140 = smul.addr %s139, 4
          %s141 = scalar_lea.vmem %s0, %s140
          // Predicated region
          $region21: #{tpu_custom_call.1} parent=19 // pred_check
            _
          $region22: #{tpu_custom_call.1} parent=19 // pred_check_branch
            %143 = sbr.rel (0) target = $region24
          $region23: #{tpu_custom_call.1} parent=19 // pred_region
            // Predicated region
            $region25: #{tpu_custom_call.1} parent=23 // pred_check
              _
            $region26: #{tpu_custom_call.1} parent=23 // pred_check_branch
              %145 = sbr.rel (0) target = $region28
            $region27: #{tpu_custom_call.1} parent=23 // pred_region
              %s146 = scalar_lea.vmem %s141, 8
              %s147 = scalar_lea.vmem %s138, 8 [#allocation2]
              loop: start=0, step=1, limit=1
              $region29: #{tpu_custom_call.1} parent=27 // loop_pre_header
                _
              $region30: #{tpu_custom_call.1} parent=27 // loop_header
                %s149 = sphi 0, %s153
                %p150 = scmp.ge.s32.totalorder %s149, 1
                %s154 = sphi %s141, %s141
                %s155 = sphi %s138, %s138
              $region31: #{tpu_custom_call.1} parent=27 // loop_header_branch
                %152 = sbr.rel (%p150) target = $region35
              $region32: #{tpu_custom_call.1} parent=27 // loop_body
                %v156 = vld [vmem:[%s154] sm:$0xff]
                %157 = vst [vmem:[%s155] sm:$0xff] %v156
                %v158 = vld [vmem:[%s154 + $0x18] sm:$0xff]
                %159 = vst [vmem:[%s155 + $0xc] sm:$0xff] %v158
              $region33: #{tpu_custom_call.1} parent=27 // loop_footer
                %s153 = sadd.s32 1, %s149
              $region34: #{tpu_custom_call.1} parent=27 // loop_footer_branch
                %148 = sbr.rel target = $region30
              $region35: #{tpu_custom_call.1} parent=27 // loop_exit
                _
              loop: start=0, step=1, limit=1
              $region36: #{tpu_custom_call.1} parent=27 // loop_pre_header
                _
              $region37: #{tpu_custom_call.1} parent=27 // loop_header
                %s162 = sphi 0, %s166
                %p163 = scmp.ge.s32.totalorder %s162, 1
                %s167 = sphi %s146, %s146
                %s168 = sphi %s147, %s147
              $region38: #{tpu_custom_call.1} parent=27 // loop_header_branch
                %165 = sbr.rel (%p163) target = $region42
              $region39: #{tpu_custom_call.1} parent=27 // loop_body
                %v169 = vld [vmem:[%s167] sm:$0xf]
                %170 = vst [vmem:[%s168] sm:$0xf] %v169
                %v171 = vld [vmem:[%s167 + $0x18] sm:$0xf]
                %172 = vst [vmem:[%s168 + $0xc] sm:$0xf] %v171
              $region40: #{tpu_custom_call.1} parent=27 // loop_footer
                %s166 = sadd.s32 1, %s162
              $region41: #{tpu_custom_call.1} parent=27 // loop_footer_branch
                %161 = sbr.rel target = $region37
              $region42: #{tpu_custom_call.1} parent=27 // loop_exit
                _
            $region28: #{tpu_custom_call.1} parent=23 // pred_fallthru
              _
          $region24: #{tpu_custom_call.1} parent=19 // pred_fallthru
            _
          %173 = vnop
        $region20: #{tpu_custom_call.1} parent=15 // pred_fallthru
          _
        // Predicated region
        $region43: #{tpu_custom_call.1} parent=15 // pred_check
          %p174 = pneg %p55
        $region44: #{tpu_custom_call.1} parent=15 // pred_check_branch
          %176 = sbr.rel (%p174) target = $region46
        $region45: #{tpu_custom_call.1} parent=15 // pred_region
          %s177 = sand.u32 %s45, 1
          %s178 = sand.u32 %s45, 1
          %s179 = smul.addr %s178, 24
          %s180 = scalar_lea.vmem [#allocation3], %s179
          %s181 = smul.addr %s9, 3
          %s182 = smul.addr %s181, 4
          %s183 = scalar_lea.vmem %s1, %s182
          // Predicated region
          $region47: #{tpu_custom_call.1} parent=45 // pred_check
            _
          $region48: #{tpu_custom_call.1} parent=45 // pred_check_branch
            %185 = sbr.rel (0) target = $region50
          $region49: #{tpu_custom_call.1} parent=45 // pred_region
            // Predicated region
            $region51: #{tpu_custom_call.1} parent=49 // pred_check
              _
            $region52: #{tpu_custom_call.1} parent=49 // pred_check_branch
              %187 = sbr.rel (0) target = $region54
            $region53: #{tpu_custom_call.1} parent=49 // pred_region
              %s188 = scalar_lea.vmem %s183, 8
              %s189 = scalar_lea.vmem %s180, 8 [#allocation3]
              loop: start=0, step=1, limit=1
              $region55: #{tpu_custom_call.1} parent=53 // loop_pre_header
                _
              $region56: #{tpu_custom_call.1} parent=53 // loop_header
                %s191 = sphi 0, %s195
                %p192 = scmp.ge.s32.totalorder %s191, 1
                %s196 = sphi %s183, %s183
                %s197 = sphi %s180, %s180
              $region57: #{tpu_custom_call.1} parent=53 // loop_header_branch
                %194 = sbr.rel (%p192) target = $region61
              $region58: #{tpu_custom_call.1} parent=53 // loop_body
                %v198 = vld [vmem:[%s196] sm:$0xff]
                %199 = vst [vmem:[%s197] sm:$0xff] %v198
                %v200 = vld [vmem:[%s196 + $0x18] sm:$0xff]
                %201 = vst [vmem:[%s197 + $0xc] sm:$0xff] %v200
              $region59: #{tpu_custom_call.1} parent=53 // loop_footer
                %s195 = sadd.s32 1, %s191
              $region60: #{tpu_custom_call.1} parent=53 // loop_footer_branch
                %190 = sbr.rel target = $region56
              $region61: #{tpu_custom_call.1} parent=53 // loop_exit
                _
              loop: start=0, step=1, limit=1
              $region62: #{tpu_custom_call.1} parent=53 // loop_pre_header
                _
              $region63: #{tpu_custom_call.1} parent=53 // loop_header
                %s204 = sphi 0, %s208
                %p205 = scmp.ge.s32.totalorder %s204, 1
                %s209 = sphi %s188, %s188
                %s210 = sphi %s189, %s189
              $region64: #{tpu_custom_call.1} parent=53 // loop_header_branch
                %207 = sbr.rel (%p205) target = $region68
              $region65: #{tpu_custom_call.1} parent=53 // loop_body
                %v211 = vld [vmem:[%s209] sm:$0xf]
                %212 = vst [vmem:[%s210] sm:$0xf] %v211
                %v213 = vld [vmem:[%s209 + $0x18] sm:$0xf]
                %214 = vst [vmem:[%s210 + $0xc] sm:$0xf] %v213
              $region66: #{tpu_custom_call.1} parent=53 // loop_footer
                %s208 = sadd.s32 1, %s204
              $region67: #{tpu_custom_call.1} parent=53 // loop_footer_branch
                %203 = sbr.rel target = $region63
              $region68: #{tpu_custom_call.1} parent=53 // loop_exit
                _
            $region54: #{tpu_custom_call.1} parent=49 // pred_fallthru
              _
          $region50: #{tpu_custom_call.1} parent=45 // pred_fallthru
            _
          %215 = vnop
        $region46: #{tpu_custom_call.1} parent=15 // pred_fallthru
          _
        // Predicated region
        $region69: #{tpu_custom_call.1} parent=15 // pred_check
          %p216 = pneg %p81
        $region70: #{tpu_custom_call.1} parent=15 // pred_check_branch
          %218 = sbr.rel (%p216) target = $region72
        $region71: #{tpu_custom_call.1} parent=15 // pred_region
          %s219 = sand.u32 %s71, 1
          %s220 = sand.u32 %s71, 1
          %s221 = smul.addr %s220, 6
          %s222 = scalar_lea.vmem [#allocation4], %s221
          %s223 = smul.addr %s9, 3
          %s224 = scalar_lea.vmem %s2, %s223
          // Predicated region
          $region73: #{tpu_custom_call.1} parent=71 // pred_check
            _
          $region74: #{tpu_custom_call.1} parent=71 // pred_check_branch
            %226 = sbr.rel (0) target = $region76
          $region75: #{tpu_custom_call.1} parent=71 // pred_region
            // Predicated region
            $region77: #{tpu_custom_call.1} parent=75 // pred_check
              _
            $region78: #{tpu_custom_call.1} parent=75 // pred_check_branch
              %228 = sbr.rel target = $region80
            $region79: #{tpu_custom_call.1} parent=75 // pred_region
              // Predicated region
              $region92: #{tpu_custom_call.1} parent=79 // pred_check
                _
              $region93: #{tpu_custom_call.1} parent=79 // pred_check_branch
                %245 = sbr.rel (0) target = $region95
              $region94: #{tpu_custom_call.1} parent=79 // pred_region
                loop: start=0, step=1, limit=1
                $region96: #{tpu_custom_call.1} parent=94 // loop_pre_header
                  _
                $region97: #{tpu_custom_call.1} parent=94 // loop_header
                  %s248 = sphi 0, %s252
                  %p249 = scmp.ge.s32.totalorder %s248, 1
                  %s253 = sphi %s224, %s224
                  %s254 = sphi %s222, %s222
                $region98: #{tpu_custom_call.1} parent=94 // loop_header_branch
                  %251 = sbr.rel (%p249) target = $region102
                $region99: #{tpu_custom_call.1} parent=94 // loop_body
                  %v255 = vld [vmem:[%s253] sm:$0x7]
                  %256 = vst [vmem:[%s254] sm:$0x7] %v255
                  %v257 = vld [vmem:[%s253 + $0x6] sm:$0x7]
                  %258 = vst [vmem:[%s254 + $0x3] sm:$0x7] %v257
                $region100: #{tpu_custom_call.1} parent=94 // loop_footer
                  %s252 = sadd.s32 1, %s248
                $region101: #{tpu_custom_call.1} parent=94 // loop_footer_branch
                  %247 = sbr.rel target = $region97
                $region102: #{tpu_custom_call.1} parent=94 // loop_exit
                  _
              $region95: #{tpu_custom_call.1} parent=79 // pred_fallthru
                _
            $region80: #{tpu_custom_call.1} parent=75 // pred_fallthru
              _
            // Predicated region
            $region81: #{tpu_custom_call.1} parent=75 // pred_check
              _
            $region82: #{tpu_custom_call.1} parent=75 // pred_check_branch
              %230 = sbr.rel (0) target = $region84
            $region83: #{tpu_custom_call.1} parent=75 // pred_region
              loop: start=0, step=1, limit=1
              $region85: #{tpu_custom_call.1} parent=83 // loop_pre_header
                _
              $region86: #{tpu_custom_call.1} parent=83 // loop_header
                %s233 = sphi 0, %s237
                %p234 = scmp.ge.s32.totalorder %s233, 1
                %s238 = sphi %s224, %s224
                %s239 = sphi %s222, %s222
              $region87: #{tpu_custom_call.1} parent=83 // loop_header_branch
                %236 = sbr.rel (%p234) target = $region91
              $region88: #{tpu_custom_call.1} parent=83 // loop_body
                %v240 = vld [vmem:[%s238] sm:$0x7]
                %241 = vst [vmem:[%s239] sm:$0x7] %v240
                %v242 = vld [vmem:[%s238 + $0x6] sm:$0x7]
                %243 = vst [vmem:[%s239 + $0x3] sm:$0x7] %v242
              $region89: #{tpu_custom_call.1} parent=83 // loop_footer
                %s237 = sadd.s32 1, %s233
              $region90: #{tpu_custom_call.1} parent=83 // loop_footer_branch
                %232 = sbr.rel target = $region86
              $region91: #{tpu_custom_call.1} parent=83 // loop_exit
                _
            $region84: #{tpu_custom_call.1} parent=75 // pred_fallthru
              _
          $region76: #{tpu_custom_call.1} parent=71 // pred_fallthru
            _
          %259 = vnop
        $region72: #{tpu_custom_call.1} parent=15 // pred_fallthru
          _
      $region16: #{tpu_custom_call.1} parent=5 // pred_fallthru
        _
      %p260 = scmp.le.s32.totalorder 1, %s9
      %p261 = scmp.lt.s32.totalorder %s9, 3
      %p262 = pnand %p260, %p261
      %p263 = pneg %p262
      // Predicated region
      $region103: #{tpu_custom_call.1} parent=5 // pred_check
        _
      $region104: #{tpu_custom_call.1} parent=5 // pred_check_branch
        %265 = sbr.rel (%p262) target = $region106
      $region105: #{tpu_custom_call.1} parent=5 // pred_region
        %s266 = ssub.s32 %s9, 1
        %s267 = sand.u32 %s22, 1
        %s268 = sand.u32 %s22, 1
        %s269 = smul.addr %s268, 24
        %s270 = scalar_lea.vmem [#allocation2], %s269
        // Predicated region
        $region107: #{tpu_custom_call.1} parent=105 // pred_check
          %p271 = pneg %p35
        $region108: #{tpu_custom_call.1} parent=105 // pred_check_branch
          %273 = sbr.rel (%p271) target = $region110
        $region109: #{tpu_custom_call.1} parent=105 // pred_region
          _
        $region110: #{tpu_custom_call.1} parent=105 // pred_fallthru
          _
        %s274 = sand.u32 %s48, 1
        %s275 = sand.u32 %s48, 1
        %s276 = smul.addr %s275, 24
        %s277 = scalar_lea.vmem [#allocation3], %s276
        // Predicated region
        $region111: #{tpu_custom_call.1} parent=105 // pred_check
          %p278 = pneg %p61
        $region112: #{tpu_custom_call.1} parent=105 // pred_check_branch
          %280 = sbr.rel (%p278) target = $region114
        $region113: #{tpu_custom_call.1} parent=105 // pred_region
          _
        $region114: #{tpu_custom_call.1} parent=105 // pred_fallthru
          _
        %s281 = sand.u32 %s74, 1
        %s282 = sand.u32 %s74, 1
        %s283 = smul.addr %s282, 6
        %s284 = scalar_lea.vmem [#allocation4], %s283
        // Predicated region
        $region115: #{tpu_custom_call.1} parent=105 // pred_check
          %p285 = pneg %p87
        $region116: #{tpu_custom_call.1} parent=105 // pred_check_branch
          %287 = sbr.rel (%p285) target = $region118
        $region117: #{tpu_custom_call.1} parent=105 // pred_region
          _
        $region118: #{tpu_custom_call.1} parent=105 // pred_fallthru
          _
        %s288 = sand.u32 %s22, 1
        %s289 = sand.u32 %s22, 1
        %s290 = smul.addr %s289, 24
        %s291 = scalar_lea.vmem [#allocation2], %s290
        %p292 = pneg %p35
        %p293 = pneg %p32
        %s294 = sand.u32 %s48, 1
        %s295 = sand.u32 %s48, 1
        %s296 = smul.addr %s295, 24
        %s297 = scalar_lea.vmem [#allocation3], %s296
        %p298 = pneg %p61
        %p299 = pneg %p58
        %s300 = sand.u32 %s74, 1
        %s301 = sand.u32 %s74, 1
        %s302 = smul.addr %s301, 6
        %s303 = scalar_lea.vmem [#allocation4], %s302
        %p304 = pneg %p87
        %p305 = pneg %p84
        %p306 = pneg %p113
        %p307 = pneg %p110
        %p308 = scmp.lt.s32.totalorder %s14, 1
        %s309 = scalar_select %p308, %s14, 1
        %s310 = smul.addr %s309, 2
        %s311 = smul.addr %s310, 4
        %s312 = scalar_lea.vmem %s3, %s311
        %p313 = scmp.lt.s32.totalorder %s14, 1
        %s314 = scalar_select %p313, %s14, 1
        %s315 = smul.addr %s314, 2
        %s316 = smul.addr %s315, 4
        %s317 = scalar_lea.vmem %s3, %s316
        %v318 = vld [vmem:[%s284] sm:$0x7]
        %v319 = vmul.f32 %v318, 10.0
        %s320 = scalar_lea.vmem %s284, 3 [#allocation4]
        %v321 = vld [vmem:[%s320] sm:$0x7]
        %v322 = vmul.f32 %v321, -59.91701
        %v323 = vld [vmem:[%s270] sm:$0x77]
        %v324 = vld [vmem:[%s270 + $0x8] sm:$0x7]
        %s325 = scalar_lea.vmem %s270, 12 [#allocation2]
        %v326 = vld [vmem:[%s325] sm:$0x77]
        %v327 = vld [vmem:[%s325 + $0x8] sm:$0x7]
        %v329 = vlaneseq
        %v330 = vshrl.u32 %v329, 7
        %v331 = vsub.s32 0, %v330
        %v332 = vrot.slane %v319, %v331
        %v333 = vlaneseq
        %v334 = vshrl.u32 %v333, 7
        %v335 = vsub.s32 1, %v334
        %v336 = vrot.slane %v319, %v335
        %v337 = vlaneseq
        %v338 = vshrl.u32 %v337, 7
        %v339 = vsub.s32 2, %v338
        %v340 = vrot.slane %v319, %v339
        %v342 = vcombine.low %v332, %v336
        %v344 = vmul.f32 %v323, %v342
        %v345 = vmul.f32 %v324, %v340
        %v347 = vlaneseq
        %v348 = vshrl.u32 %v347, 7
        %v349 = vsub.s32 0, %v348
        %v350 = vrot.slane %v322, %v349
        %v351 = vlaneseq
        %v352 = vshrl.u32 %v351, 7
        %v353 = vsub.s32 1, %v352
        %v354 = vrot.slane %v322, %v353
        %v355 = vlaneseq
        %v356 = vshrl.u32 %v355, 7
        %v357 = vsub.s32 2, %v356
        %v358 = vrot.slane %v322, %v357
        %v360 = vcombine.low %v350, %v354
        %v362 = vmul.f32 %v326, %v360
        %v363 = vmul.f32 %v327, %v358
        %v364 = vsub.f32 %v344, %v362
        %v365 = vsub.f32 %v345, %v363
        %v366 = vmul.f32 %v326, %v342
        %v367 = vmul.f32 %v327, %v340
        %v368 = vmul.f32 %v323, %v360
        %v369 = vmul.f32 %v324, %v358
        %v370 = vadd.f32 %v366, %v368
        %v371 = vadd.f32 %v367, %v369
        %v372 = vld [vmem:[%s277] sm:$0x77]
        %v373 = vld [vmem:[%s277 + $0x8] sm:$0x7]
        %s374 = scalar_lea.vmem %s277, 12 [#allocation3]
        %v375 = vld [vmem:[%s374] sm:$0x77]
        %v376 = vld [vmem:[%s374 + $0x8] sm:$0x7]
        %v378 = vcombine.high %v364, %v364
        %v381 = vcombine.high %v372, %v372
        %v383 = vand.u32 %v381, 4294901760
        %384 = vmatprep.subr.mxu0 %v383
        %v385 = vand.u32 %v372, 4294901760
        %386 = vmatpush1.xpose.msra.mxu0 %v385
        %387 = vmatprep.subr.mxu0 0.0
        %388 = vmatpush1.xpose.msra.mxu0 0.0
        %389 = vmatprep.subr.mxu0 0.0
        %390 = vmatpush1.xpose.msra.mxu0 0.0
        %391 = vmatprep.subr.mxu0 0.0
        %392 = vmatpush1.xpose.msra.mxu0 0.0
        %393 = vmatprep.subr.mxu0 0.0
        %394 = vmatpush1.xpose.msra.mxu0 0.0
        %395 = vmatprep.subr.mxu0 0.0
        %396 = vmatpush1.xpose.msra.mxu0 0.0
        %397 = vmatprep.subr.mxu0 0.0
        %398 = vmatpush1.xpose.msra.mxu0 0.0
        %399 = vmatprep.subr.mxu0 0.0
        %400 = vmatpush1.xpose.msra.mxu0 0.0
        %401 = vmatprep.subr.mxu0 0.0
        %402 = vmatpush1.xpose.msra.mxu0 0.0
        %403 = vmatprep.subr.mxu0 0.0
        %404 = vmatpush1.xpose.msra.mxu0 0.0
        %405 = vmatprep.subr.mxu0 0.0
        %406 = vmatpush1.xpose.msra.mxu0 0.0
        %407 = vmatprep.subr.mxu0 0.0
        %408 = vmatpush1.xpose.msra.mxu0 0.0
        %409 = vmatprep.subr.mxu0 0.0
        %410 = vmatpush1.xpose.msra.mxu0 0.0
        %411 = vmatprep.subr.mxu0 0.0
        %412 = vmatpush1.xpose.msra.mxu0 0.0
        %413 = vmatprep.subr.mxu0 0.0
        %414 = vmatpush1.xpose.msra.mxu0 0.0
        %415 = vmatprep.subr.mxu0 0.0
        %416 = vmatpush1.xpose.msra.mxu0 0.0
        %417 = vmatprep.subr.mxu0 0.0
        %418 = vmatpush1.xpose.msra.mxu0 0.0
        %419 = vmatprep.subr.mxu0 0.0
        %420 = vmatpush1.xpose.msra.mxu0 0.0
        %421 = vmatprep.subr.mxu0 0.0
        %422 = vmatpush1.xpose.msra.mxu0 0.0
        %423 = vmatprep.subr.mxu0 0.0
        %424 = vmatpush1.xpose.msra.mxu0 0.0
        %425 = vmatprep.subr.mxu0 0.0
        %426 = vmatpush1.xpose.msra.mxu0 0.0
        %427 = vmatprep.subr.mxu0 0.0
        %428 = vmatpush1.xpose.msra.mxu0 0.0
        %429 = vmatprep.subr.mxu0 0.0
        %430 = vmatpush1.xpose.msra.mxu0 0.0
        %431 = vmatprep.subr.mxu0 0.0
        %432 = vmatpush1.xpose.msra.mxu0 0.0
        %433 = vmatprep.subr.mxu0 0.0
        %434 = vmatpush1.xpose.msra.mxu0 0.0
        %435 = vmatprep.subr.mxu0 0.0
        %436 = vmatpush1.xpose.msra.mxu0 0.0
        %437 = vmatprep.subr.mxu0 0.0
        %438 = vmatpush1.xpose.msra.mxu0 0.0
        %439 = vmatprep.subr.mxu0 0.0
        %440 = vmatpush1.xpose.msra.mxu0 0.0
        %441 = vmatprep.subr.mxu0 0.0
        %442 = vmatpush1.xpose.msra.mxu0 0.0
        %443 = vmatprep.subr.mxu0 0.0
        %444 = vmatpush1.xpose.msra.mxu0 0.0
        %445 = vmatprep.subr.mxu0 0.0
        %446 = vmatpush1.xpose.msra.mxu0 0.0
        %447 = vmatprep.subr.mxu0 0.0
        %448 = vmatpush1.xpose.msra.mxu0 0.0
        %v449 = vand.u32 %v378, 4294901760
        %v450 = vsub.f32 %v378, %v449
        %v451 = vand.u32 %v450, 4294901760
        %v452 = vsub.f32 %v450, %v451
        %v453 = vand.u32 %v452, 4294901760
        %454 = vmatprep.mubr.f32.mxu0 %v453
        %v455 = vand.u32 %v364, 4294901760
        %v456 = vsub.f32 %v364, %v455
        %v457 = vand.u32 %v456, 4294901760
        %v458 = vsub.f32 %v456, %v457
        %v459 = vand.u32 %v458, 4294901760
        %460 = vmatmul.mubr.f32.gmra.mrb[0].mxu0 %v459
        %v461 = vpop.f32.mrb[0].mxu0
        %v462 = vadd.f32 0.0, %v461
        %v463 = vpop.f32.mrb[0].mxu0
        %464 = vdwg.mxu0
        %v465 = vand.u32 %v381, 4294901760
        %v466 = vsub.f32 %v381, %v465
        %v467 = vand.u32 %v466, 4294901760
        %v468 = vsub.f32 %v466, %v467
        %v469 = vand.u32 %v468, 4294901760
        %470 = vmatprep.subr.mxu0 %v469
        %v471 = vand.u32 %v372, 4294901760
        %v472 = vsub.f32 %v372, %v471
        %v473 = vand.u32 %v472, 4294901760
        %v474 = vsub.f32 %v472, %v473
        %v475 = vand.u32 %v474, 4294901760
        %476 = vmatpush1.xpose.msra.mxu0 %v475
        %477 = vmatprep.subr.mxu0 0.0
        %478 = vmatpush1.xpose.msra.mxu0 0.0
        %479 = vmatprep.subr.mxu0 0.0
        %480 = vmatpush1.xpose.msra.mxu0 0.0
        %481 = vmatprep.subr.mxu0 0.0
        %482 = vmatpush1.xpose.msra.mxu0 0.0
        %483 = vmatprep.subr.mxu0 0.0
        %484 = vmatpush1.xpose.msra.mxu0 0.0
        %485 = vmatprep.subr.mxu0 0.0
        %486 = vmatpush1.xpose.msra.mxu0 0.0
        %487 = vmatprep.subr.mxu0 0.0
        %488 = vmatpush1.xpose.msra.mxu0 0.0
        %489 = vmatprep.subr.mxu0 0.0
        %490 = vmatpush1.xpose.msra.mxu0 0.0
        %491 = vmatprep.subr.mxu0 0.0
        %492 = vmatpush1.xpose.msra.mxu0 0.0
        %493 = vmatprep.subr.mxu0 0.0
        %494 = vmatpush1.xpose.msra.mxu0 0.0
        %495 = vmatprep.subr.mxu0 0.0
        %496 = vmatpush1.xpose.msra.mxu0 0.0
        %497 = vmatprep.subr.mxu0 0.0
        %498 = vmatpush1.xpose.msra.mxu0 0.0
        %499 = vmatprep.subr.mxu0 0.0
        %500 = vmatpush1.xpose.msra.mxu0 0.0
        %501 = vmatprep.subr.mxu0 0.0
        %502 = vmatpush1.xpose.msra.mxu0 0.0
        %503 = vmatprep.subr.mxu0 0.0
        %504 = vmatpush1.xpose.msra.mxu0 0.0
        %505 = vmatprep.subr.mxu0 0.0
        %506 = vmatpush1.xpose.msra.mxu0 0.0
        %507 = vmatprep.subr.mxu0 0.0
        %508 = vmatpush1.xpose.msra.mxu0 0.0
        %509 = vmatprep.subr.mxu0 0.0
        %510 = vmatpush1.xpose.msra.mxu0 0.0
        %511 = vmatprep.subr.mxu0 0.0
        %512 = vmatpush1.xpose.msra.mxu0 0.0
        %513 = vmatprep.subr.mxu0 0.0
        %514 = vmatpush1.xpose.msra.mxu0 0.0
        %515 = vmatprep.subr.mxu0 0.0
        %516 = vmatpush1.xpose.msra.mxu0 0.0
        %517 = vmatprep.subr.mxu0 0.0
        %518 = vmatpush1.xpose.msra.mxu0 0.0
        %519 = vmatprep.subr.mxu0 0.0
        %520 = vmatpush1.xpose.msra.mxu0 0.0
        %521 = vmatprep.subr.mxu0 0.0
        %522 = vmatpush1.xpose.msra.mxu0 0.0
        %523 = vmatprep.subr.mxu0 0.0
        %524 = vmatpush1.xpose.msra.mxu0 0.0
        %525 = vmatprep.subr.mxu0 0.0
        %526 = vmatpush1.xpose.msra.mxu0 0.0
        %527 = vmatprep.subr.mxu0 0.0
        %528 = vmatpush1.xpose.msra.mxu0 0.0
        %529 = vmatprep.subr.mxu0 0.0
        %530 = vmatpush1.xpose.msra.mxu0 0.0
        %531 = vmatprep.subr.mxu0 0.0
        %532 = vmatpush1.xpose.msra.mxu0 0.0
        %533 = vmatprep.subr.mxu0 0.0
        %534 = vmatpush1.xpose.msra.mxu0 0.0
        %535 = vmatprep.subr.mxu0 0.0
        %536 = vmatpush1.xpose.msra.mxu0 0.0
        %537 = vmatprep.subr.mxu0 0.0
        %538 = vmatpush1.xpose.msra.mxu0 0.0
        %v539 = vand.u32 %v378, 4294901760
        %540 = vmatprep.mubr.f32.mxu0 %v539
        %v541 = vand.u32 %v364, 4294901760
        %542 = vmatmul.mubr.f32.gmra.mrb[0].mxu0 %v541
        %v543 = vpop.f32.mrb[0].mxu0
        %v544 = vadd.f32 %v462, %v543
        %v545 = vpop.f32.mrb[0].mxu0
        %546 = vdwg.mxu0
        %v547 = vand.u32 %v381, 4294901760
        %v548 = vsub.f32 %v381, %v547
        %549 = vmatprep.subr.mxu0 %v548
        %v550 = vand.u32 %v372, 4294901760
        %v551 = vsub.f32 %v372, %v550
        %552 = vmatpush1.xpose.msra.mxu0 %v551
        %553 = vmatprep.subr.mxu0 0.0
        %554 = vmatpush1.xpose.msra.mxu0 0.0
        %555 = vmatprep.subr.mxu0 0.0
        %556 = vmatpush1.xpose.msra.mxu0 0.0
        %557 = vmatprep.subr.mxu0 0.0
        %558 = vmatpush1.xpose.msra.mxu0 0.0
        %559 = vmatprep.subr.mxu0 0.0
        %560 = vmatpush1.xpose.msra.mxu0 0.0
        %561 = vmatprep.subr.mxu0 0.0
        %562 = vmatpush1.xpose.msra.mxu0 0.0
        %563 = vmatprep.subr.mxu0 0.0
        %564 = vmatpush1.xpose.msra.mxu0 0.0
        %565 = vmatprep.subr.mxu0 0.0
        %566 = vmatpush1.xpose.msra.mxu0 0.0
        %567 = vmatprep.subr.mxu0 0.0
        %568 = vmatpush1.xpose.msra.mxu0 0.0
        %569 = vmatprep.subr.mxu0 0.0
        %570 = vmatpush1.xpose.msra.mxu0 0.0
        %571 = vmatprep.subr.mxu0 0.0
        %572 = vmatpush1.xpose.msra.mxu0 0.0
        %573 = vmatprep.subr.mxu0 0.0
        %574 = vmatpush1.xpose.msra.mxu0 0.0
        %575 = vmatprep.subr.mxu0 0.0
        %576 = vmatpush1.xpose.msra.mxu0 0.0
        %577 = vmatprep.subr.mxu0 0.0
        %578 = vmatpush1.xpose.msra.mxu0 0.0
        %579 = vmatprep.subr.mxu0 0.0
        %580 = vmatpush1.xpose.msra.mxu0 0.0
        %581 = vmatprep.subr.mxu0 0.0
        %582 = vmatpush1.xpose.msra.mxu0 0.0
        %583 = vmatprep.subr.mxu0 0.0
        %584 = vmatpush1.xpose.msra.mxu0 0.0
        %585 = vmatprep.subr.mxu0 0.0
        %586 = vmatpush1.xpose.msra.mxu0 0.0
        %587 = vmatprep.subr.mxu0 0.0
        %588 = vmatpush1.xpose.msra.mxu0 0.0
        %589 = vmatprep.subr.mxu0 0.0
        %590 = vmatpush1.xpose.msra.mxu0 0.0
        %591 = vmatprep.subr.mxu0 0.0
        %592 = vmatpush1.xpose.msra.mxu0 0.0
        %593 = vmatprep.subr.mxu0 0.0
        %594 = vmatpush1.xpose.msra.mxu0 0.0
        %595 = vmatprep.subr.mxu0 0.0
        %596 = vmatpush1.xpose.msra.mxu0 0.0
        %597 = vmatprep.subr.mxu0 0.0
        %598 = vmatpush1.xpose.msra.mxu0 0.0
        %599 = vmatprep.subr.mxu0 0.0
        %600 = vmatpush1.xpose.msra.mxu0 0.0
        %601 = vmatprep.subr.mxu0 0.0
        %602 = vmatpush1.xpose.msra.mxu0 0.0
        %603 = vmatprep.subr.mxu0 0.0
        %604 = vmatpush1.xpose.msra.mxu0 0.0
        %605 = vmatprep.subr.mxu0 0.0
        %606 = vmatpush1.xpose.msra.mxu0 0.0
        %607 = vmatprep.subr.mxu0 0.0
        %608 = vmatpush1.xpose.msra.mxu0 0.0
        %609 = vmatprep.subr.mxu0 0.0
        %610 = vmatpush1.xpose.msra.mxu0 0.0
        %611 = vmatprep.subr.mxu0 0.0
        %612 = vmatpush1.xpose.msra.mxu0 0.0
        %613 = vmatprep.subr.mxu0 0.0
        %614 = vmatpush1.xpose.msra.mxu0 0.0
        %v615 = vand.u32 %v378, 4294901760
        %v616 = vsub.f32 %v378, %v615
        %617 = vmatprep.mubr.f32.mxu0 %v616
        %v618 = vand.u32 %v364, 4294901760
        %v619 = vsub.f32 %v364, %v618
        %620 = vmatmul.mubr.f32.gmra.mrb[0].mxu0 %v619
        %v621 = vpop.f32.mrb[0].mxu0
        %v622 = vadd.f32 %v544, %v621
        %v623 = vpop.f32.mrb[0].mxu0
        %624 = vdwg.mxu0
        %v625 = vand.u32 %v381, 4294901760
        %626 = vmatprep.subr.mxu0 %v625
        %v627 = vand.u32 %v372, 4294901760
        %628 = vmatpush1.xpose.msra.mxu0 %v627
        %629 = vmatprep.subr.mxu0 0.0
        %630 = vmatpush1.xpose.msra.mxu0 0.0
        %631 = vmatprep.subr.mxu0 0.0
        %632 = vmatpush1.xpose.msra.mxu0 0.0
        %633 = vmatprep.subr.mxu0 0.0
        %634 = vmatpush1.xpose.msra.mxu0 0.0
        %635 = vmatprep.subr.mxu0 0.0
        %636 = vmatpush1.xpose.msra.mxu0 0.0
        %637 = vmatprep.subr.mxu0 0.0
        %638 = vmatpush1.xpose.msra.mxu0 0.0
        %639 = vmatprep.subr.mxu0 0.0
        %640 = vmatpush1.xpose.msra.mxu0 0.0
        %641 = vmatprep.subr.mxu0 0.0
        %642 = vmatpush1.xpose.msra.mxu0 0.0
        %643 = vmatprep.subr.mxu0 0.0
        %644 = vmatpush1.xpose.msra.mxu0 0.0
        %645 = vmatprep.subr.mxu0 0.0
        %646 = vmatpush1.xpose.msra.mxu0 0.0
        %647 = vmatprep.subr.mxu0 0.0
        %648 = vmatpush1.xpose.msra.mxu0 0.0
        %649 = vmatprep.subr.mxu0 0.0
        %650 = vmatpush1.xpose.msra.mxu0 0.0
        %651 = vmatprep.subr.mxu0 0.0
        %652 = vmatpush1.xpose.msra.mxu0 0.0
        %653 = vmatprep.subr.mxu0 0.0
        %654 = vmatpush1.xpose.msra.mxu0 0.0
        %655 = vmatprep.subr.mxu0 0.0
        %656 = vmatpush1.xpose.msra.mxu0 0.0
        %657 = vmatprep.subr.mxu0 0.0
        %658 = vmatpush1.xpose.msra.mxu0 0.0
        %659 = vmatprep.subr.mxu0 0.0
        %660 = vmatpush1.xpose.msra.mxu0 0.0
        %661 = vmatprep.subr.mxu0 0.0
        %662 = vmatpush1.xpose.msra.mxu0 0.0
        %663 = vmatprep.subr.mxu0 0.0
        %664 = vmatpush1.xpose.msra.mxu0 0.0
        %665 = vmatprep.subr.mxu0 0.0
        %666 = vmatpush1.xpose.msra.mxu0 0.0
        %667 = vmatprep.subr.mxu0 0.0
        %668 = vmatpush1.xpose.msra.mxu0 0.0
        %669 = vmatprep.subr.mxu0 0.0
        %670 = vmatpush1.xpose.msra.mxu0 0.0
        %671 = vmatprep.subr.mxu0 0.0
        %672 = vmatpush1.xpose.msra.mxu0 0.0
        %673 = vmatprep.subr.mxu0 0.0
        %674 = vmatpush1.xpose.msra.mxu0 0.0
        %675 = vmatprep.subr.mxu0 0.0
        %676 = vmatpush1.xpose.msra.mxu0 0.0
        %677 = vmatprep.subr.mxu0 0.0
        %678 = vmatpush1.xpose.msra.mxu0 0.0
        %679 = vmatprep.subr.mxu0 0.0
        %680 = vmatpush1.xpose.msra.mxu0 0.0
        %681 = vmatprep.subr.mxu0 0.0
        %682 = vmatpush1.xpose.msra.mxu0 0.0
        %683 = vmatprep.subr.mxu0 0.0
        %684 = vmatpush1.xpose.msra.mxu0 0.0
        %685 = vmatprep.subr.mxu0 0.0
        %686 = vmatpush1.xpose.msra.mxu0 0.0
        %687 = vmatprep.subr.mxu0 0.0
        %688 = vmatpush1.xpose.msra.mxu0 0.0
        %689 = vmatprep.subr.mxu0 0.0
        %690 = vmatpush1.xpose.msra.mxu0 0.0
        %v691 = vand.u32 %v378, 4294901760
        %v692 = vsub.f32 %v378, %v691
        %v693 = vand.u32 %v692, 4294901760
        %694 = vmatprep.mubr.f32.mxu0 %v693
        %v695 = vand.u32 %v364, 4294901760
        %v696 = vsub.f32 %v364, %v695
        %v697 = vand.u32 %v696, 4294901760
        %698 = vmatmul.mubr.f32.gmra.mrb[0].mxu0 %v697
        %v699 = vpop.f32.mrb[0].mxu0
        %v700 = vadd.f32 %v622, %v699
        %v701 = vpop.f32.mrb[0].mxu0
        %702 = vdwg.mxu0
        %v703 = vand.u32 %v381, 4294901760
        %v704 = vsub.f32 %v381, %v703
        %v705 = vand.u32 %v704, 4294901760
        %706 = vmatprep.subr.mxu0 %v705
        %v707 = vand.u32 %v372, 4294901760
        %v708 = vsub.f32 %v372, %v707
        %v709 = vand.u32 %v708, 4294901760
        %710 = vmatpush1.xpose.msra.mxu0 %v709
        %711 = vmatprep.subr.mxu0 0.0
        %712 = vmatpush1.xpose.msra.mxu0 0.0
        %713 = vmatprep.subr.mxu0 0.0
        %714 = vmatpush1.xpose.msra.mxu0 0.0
        %715 = vmatprep.subr.mxu0 0.0
        %716 = vmatpush1.xpose.msra.mxu0 0.0
        %717 = vmatprep.subr.mxu0 0.0
        %718 = vmatpush1.xpose.msra.mxu0 0.0
        %719 = vmatprep.subr.mxu0 0.0
        %720 = vmatpush1.xpose.msra.mxu0 0.0
        %721 = vmatprep.subr.mxu0 0.0
        %722 = vmatpush1.xpose.msra.mxu0 0.0
        %723 = vmatprep.subr.mxu0 0.0
        %724 = vmatpush1.xpose.msra.mxu0 0.0
        %725 = vmatprep.subr.mxu0 0.0
        %726 = vmatpush1.xpose.msra.mxu0 0.0
        %727 = vmatprep.subr.mxu0 0.0
        %728 = vmatpush1.xpose.msra.mxu0 0.0
        %729 = vmatprep.subr.mxu0 0.0
        %730 = vmatpush1.xpose.msra.mxu0 0.0
        %731 = vmatprep.subr.mxu0 0.0
        %732 = vmatpush1.xpose.msra.mxu0 0.0
        %733 = vmatprep.subr.mxu0 0.0
        %734 = vmatpush1.xpose.msra.mxu0 0.0
        %735 = vmatprep.subr.mxu0 0.0
        %736 = vmatpush1.xpose.msra.mxu0 0.0
        %737 = vmatprep.subr.mxu0 0.0
        %738 = vmatpush1.xpose.msra.mxu0 0.0
        %739 = vmatprep.subr.mxu0 0.0
        %740 = vmatpush1.xpose.msra.mxu0 0.0
        %741 = vmatprep.subr.mxu0 0.0
        %742 = vmatpush1.xpose.msra.mxu0 0.0
        %743 = vmatprep.subr.mxu0 0.0
        %744 = vmatpush1.xpose.msra.mxu0 0.0
        %745 = vmatprep.subr.mxu0 0.0
        %746 = vmatpush1.xpose.msra.mxu0 0.0
        %747 = vmatprep.subr.mxu0 0.0
        %748 = vmatpush1.xpose.msra.mxu0 0.0
        %749 = vmatprep.subr.mxu0 0.0
        %750 = vmatpush1.xpose.msra.mxu0 0.0
        %751 = vmatprep.subr.mxu0 0.0
        %752 = vmatpush1.xpose.msra.mxu0 0.0
        %753 = vmatprep.subr.mxu0 0.0
        %754 = vmatpush1.xpose.msra.mxu0 0.0
        %755 = vmatprep.subr.mxu0 0.0
        %756 = vmatpush1.xpose.msra.mxu0 0.0
        %757 = vmatprep.subr.mxu0 0.0
        %758 = vmatpush1.xpose.msra.mxu0 0.0
        %759 = vmatprep.subr.mxu0 0.0
        %760 = vmatpush1.xpose.msra.mxu0 0.0
        %761 = vmatprep.subr.mxu0 0.0
        %762 = vmatpush1.xpose.msra.mxu0 0.0
        %763 = vmatprep.subr.mxu0 0.0
        %764 = vmatpush1.xpose.msra.mxu0 0.0
        %765 = vmatprep.subr.mxu0 0.0
        %766 = vmatpush1.xpose.msra.mxu0 0.0
        %767 = vmatprep.subr.mxu0 0.0
        %768 = vmatpush1.xpose.msra.mxu0 0.0
        %769 = vmatprep.subr.mxu0 0.0
        %770 = vmatpush1.xpose.msra.mxu0 0.0
        %771 = vmatprep.subr.mxu0 0.0
        %772 = vmatpush1.xpose.msra.mxu0 0.0
        %v773 = vand.u32 %v378, 4294901760
        %774 = vmatprep.mubr.f32.mxu0 %v773
        %v775 = vand.u32 %v364, 4294901760
        %776 = vmatmul.mubr.f32.gmra.mrb[0].mxu0 %v775
        %v777 = vpop.f32.mrb[0].mxu0
        %v778 = vadd.f32 %v700, %v777
        %v779 = vpop.f32.mrb[0].mxu0
        %780 = vdwg.mxu0
        %v781 = vand.u32 %v381, 4294901760
        %782 = vmatprep.subr.mxu0 %v781
        %v783 = vand.u32 %v372, 4294901760
        %784 = vmatpush1.xpose.msra.mxu0 %v783
        %785 = vmatprep.subr.mxu0 0.0
        %786 = vmatpush1.xpose.msra.mxu0 0.0
        %787 = vmatprep.subr.mxu0 0.0
        %788 = vmatpush1.xpose.msra.mxu0 0.0
        %789 = vmatprep.subr.mxu0 0.0
        %790 = vmatpush1.xpose.msra.mxu0 0.0
        %791 = vmatprep.subr.mxu0 0.0
        %792 = vmatpush1.xpose.msra.mxu0 0.0
        %793 = vmatprep.subr.mxu0 0.0
        %794 = vmatpush1.xpose.msra.mxu0 0.0
        %795 = vmatprep.subr.mxu0 0.0
        %796 = vmatpush1.xpose.msra.mxu0 0.0
        %797 = vmatprep.subr.mxu0 0.0
        %798 = vmatpush1.xpose.msra.mxu0 0.0
        %799 = vmatprep.subr.mxu0 0.0
        %800 = vmatpush1.xpose.msra.mxu0 0.0
        %801 = vmatprep.subr.mxu0 0.0
        %802 = vmatpush1.xpose.msra.mxu0 0.0
        %803 = vmatprep.subr.mxu0 0.0
        %804 = vmatpush1.xpose.msra.mxu0 0.0
        %805 = vmatprep.subr.mxu0 0.0
        %806 = vmatpush1.xpose.msra.mxu0 0.0
        %807 = vmatprep.subr.mxu0 0.0
        %808 = vmatpush1.xpose.msra.mxu0 0.0
        %809 = vmatprep.subr.mxu0 0.0
        %810 = vmatpush1.xpose.msra.mxu0 0.0
        %811 = vmatprep.subr.mxu0 0.0
        %812 = vmatpush1.xpose.msra.mxu0 0.0
        %813 = vmatprep.subr.mxu0 0.0
        %814 = vmatpush1.xpose.msra.mxu0 0.0
        %815 = vmatprep.subr.mxu0 0.0
        %816 = vmatpush1.xpose.msra.mxu0 0.0
        %817 = vmatprep.subr.mxu0 0.0
        %818 = vmatpush1.xpose.msra.mxu0 0.0
        %819 = vmatprep.subr.mxu0 0.0
        %820 = vmatpush1.xpose.msra.mxu0 0.0
        %821 = vmatprep.subr.mxu0 0.0
        %822 = vmatpush1.xpose.msra.mxu0 0.0
        %823 = vmatprep.subr.mxu0 0.0
        %824 = vmatpush1.xpose.msra.mxu0 0.0
        %825 = vmatprep.subr.mxu0 0.0
        %826 = vmatpush1.xpose.msra.mxu0 0.0
        %827 = vmatprep.subr.mxu0 0.0
        %828 = vmatpush1.xpose.msra.mxu0 0.0
        %829 = vmatprep.subr.mxu0 0.0
        %830 = vmatpush1.xpose.msra.mxu0 0.0
        %831 = vmatprep.subr.mxu0 0.0
        %832 = vmatpush1.xpose.msra.mxu0 0.0
        %833 = vmatprep.subr.mxu0 0.0
        %834 = vmatpush1.xpose.msra.mxu0 0.0
        %835 = vmatprep.subr.mxu0 0.0
        %836 = vmatpush1.xpose.msra.mxu0 0.0
        %837 = vmatprep.subr.mxu0 0.0
        %838 = vmatpush1.xpose.msra.mxu0 0.0
        %839 = vmatprep.subr.mxu0 0.0
        %840 = vmatpush1.xpose.msra.mxu0 0.0
        %841 = vmatprep.subr.mxu0 0.0
        %842 = vmatpush1.xpose.msra.mxu0 0.0
        %843 = vmatprep.subr.mxu0 0.0
        %844 = vmatpush1.xpose.msra.mxu0 0.0
        %845 = vmatprep.subr.mxu0 0.0
        %846 = vmatpush1.xpose.msra.mxu0 0.0
        %v847 = vand.u32 %v378, 4294901760
        %848 = vmatprep.mubr.f32.mxu0 %v847
        %v849 = vand.u32 %v364, 4294901760
        %850 = vmatmul.mubr.f32.gmra.mrb[0].mxu0 %v849
        %v851 = vpop.f32.mrb[0].mxu0
        %v852 = vadd.f32 %v778, %v851
        %v853 = vpop.f32.mrb[0].mxu0
        %854 = vdwg.mxu0
        %855 = vmatprep.subr.mxu0 0.0
        %v856 = vand.u32 %v373, 4294901760
        %857 = vmatpush1.xpose.msra.mxu0 %v856
        %858 = vmatprep.subr.mxu0 0.0
        %859 = vmatpush1.xpose.msra.mxu0 0.0
        %860 = vmatprep.subr.mxu0 0.0
        %861 = vmatpush1.xpose.msra.mxu0 0.0
        %862 = vmatprep.subr.mxu0 0.0
        %863 = vmatpush1.xpose.msra.mxu0 0.0
        %864 = vmatprep.subr.mxu0 0.0
        %865 = vmatpush1.xpose.msra.mxu0 0.0
        %866 = vmatprep.subr.mxu0 0.0
        %867 = vmatpush1.xpose.msra.mxu0 0.0
        %868 = vmatprep.subr.mxu0 0.0
        %869 = vmatpush1.xpose.msra.mxu0 0.0
        %870 = vmatprep.subr.mxu0 0.0
        %871 = vmatpush1.xpose.msra.mxu0 0.0
        %872 = vmatprep.subr.mxu0 0.0
        %873 = vmatpush1.xpose.msra.mxu0 0.0
        %874 = vmatprep.subr.mxu0 0.0
        %875 = vmatpush1.xpose.msra.mxu0 0.0
        %876 = vmatprep.subr.mxu0 0.0
        %877 = vmatpush1.xpose.msra.mxu0 0.0
        %878 = vmatprep.subr.mxu0 0.0
        %879 = vmatpush1.xpose.msra.mxu0 0.0
        %880 = vmatprep.subr.mxu0 0.0
        %881 = vmatpush1.xpose.msra.mxu0 0.0
        %882 = vmatprep.subr.mxu0 0.0
        %883 = vmatpush1.xpose.msra.mxu0 0.0
        %884 = vmatprep.subr.mxu0 0.0
        %885 = vmatpush1.xpose.msra.mxu0 0.0
        %886 = vmatprep.subr.mxu0 0.0
        %887 = vmatpush1.xpose.msra.mxu0 0.0
        %888 = vmatprep.subr.mxu0 0.0
        %889 = vmatpush1.xpose.msra.mxu0 0.0
        %890 = vmatprep.subr.mxu0 0.0
        %891 = vmatpush1.xpose.msra.mxu0 0.0
        %892 = vmatprep.subr.mxu0 0.0
        %893 = vmatpush1.xpose.msra.mxu0 0.0
        %894 = vmatprep.subr.mxu0 0.0
        %895 = vmatpush1.xpose.msra.mxu0 0.0
        %896 = vmatprep.subr.mxu0 0.0
        %897 = vmatpush1.xpose.msra.mxu0 0.0
        %898 = vmatprep.subr.mxu0 0.0
        %899 = vmatpush1.xpose.msra.mxu0 0.0
        %900 = vmatprep.subr.mxu0 0.0
        %901 = vmatpush1.xpose.msra.mxu0 0.0
        %902 = vmatprep.subr.mxu0 0.0
        %903 = vmatpush1.xpose.msra.mxu0 0.0
        %904 = vmatprep.subr.mxu0 0.0
        %905 = vmatpush1.xpose.msra.mxu0 0.0
        %906 = vmatprep.subr.mxu0 0.0
        %907 = vmatpush1.xpose.msra.mxu0 0.0
        %908 = vmatprep.subr.mxu0 0.0
        %909 = vmatpush1.xpose.msra.mxu0 0.0
        %910 = vmatprep.subr.mxu0 0.0
        %911 = vmatpush1.xpose.msra.mxu0 0.0
        %912 = vmatprep.subr.mxu0 0.0
        %913 = vmatpush1.xpose.msra.mxu0 0.0
        %914 = vmatprep.subr.mxu0 0.0
        %915 = vmatpush1.xpose.msra.mxu0 0.0
        %916 = vmatprep.subr.mxu0 0.0
        %917 = vmatpush1.xpose.msra.mxu0 0.0
        %918 = vmatprep.subr.mxu0 0.0
        %919 = vmatpush1.xpose.msra.mxu0 0.0
        %920 = vmatprep.mubr.f32.mxu0 0.0
        %v921 = vand.u32 %v365, 4294901760
        %v922 = vsub.f32 %v365, %v921
        %v923 = vand.u32 %v922, 4294901760
        %v924 = vsub.f32 %v922, %v923
        %v925 = vand.u32 %v924, 4294901760
        %926 = vmatmul.mubr.f32.gmra.mrb[0].mxu0 %v925
        %v927 = vpop.f32.mrb[0].mxu0
        %v928 = vadd.f32 %v852, %v927
        %v929 = vpop.f32.mrb[0].mxu0
        %930 = vdwg.mxu0
        %931 = vmatprep.subr.mxu0 0.0
        %v932 = vand.u32 %v373, 4294901760
        %v933 = vsub.f32 %v373, %v932
        %v934 = vand.u32 %v933, 4294901760
        %v935 = vsub.f32 %v933, %v934
        %v936 = vand.u32 %v935, 4294901760
        %937 = vmatpush1.xpose.msra.mxu0 %v936
        %938 = vmatprep.subr.mxu0 0.0
        %939 = vmatpush1.xpose.msra.mxu0 0.0
        %940 = vmatprep.subr.mxu0 0.0
        %941 = vmatpush1.xpose.msra.mxu0 0.0
        %942 = vmatprep.subr.mxu0 0.0
        %943 = vmatpush1.xpose.msra.mxu0 0.0
        %944 = vmatprep.subr.mxu0 0.0
        %945 = vmatpush1.xpose.msra.mxu0 0.0
        %946 = vmatprep.subr.mxu0 0.0
        %947 = vmatpush1.xpose.msra.mxu0 0.0
        %948 = vmatprep.subr.mxu0 0.0
        %949 = vmatpush1.xpose.msra.mxu0 0.0
        %950 = vmatprep.subr.mxu0 0.0
        %951 = vmatpush1.xpose.msra.mxu0 0.0
        %952 = vmatprep.subr.mxu0 0.0
        %953 = vmatpush1.xpose.msra.mxu0 0.0
        %954 = vmatprep.subr.mxu0 0.0
        %955 = vmatpush1.xpose.msra.mxu0 0.0
        %956 = vmatprep.subr.mxu0 0.0
        %957 = vmatpush1.xpose.msra.mxu0 0.0
        %958 = vmatprep.subr.mxu0 0.0
        %959 = vmatpush1.xpose.msra.mxu0 0.0
        %960 = vmatprep.subr.mxu0 0.0
        %961 = vmatpush1.xpose.msra.mxu0 0.0
        %962 = vmatprep.subr.mxu0 0.0
        %963 = vmatpush1.xpose.msra.mxu0 0.0
        %964 = vmatprep.subr.mxu0 0.0
        %965 = vmatpush1.xpose.msra.mxu0 0.0
        %966 = vmatprep.subr.mxu0 0.0
        %967 = vmatpush1.xpose.msra.mxu0 0.0
        %968 = vmatprep.subr.mxu0 0.0
        %969 = vmatpush1.xpose.msra.mxu0 0.0
        %970 = vmatprep.subr.mxu0 0.0
        %971 = vmatpush1.xpose.msra.mxu0 0.0
        %972 = vmatprep.subr.mxu0 0.0
        %973 = vmatpush1.xpose.msra.mxu0 0.0
        %974 = vmatprep.subr.mxu0 0.0
        %975 = vmatpush1.xpose.msra.mxu0 0.0
        %976 = vmatprep.subr.mxu0 0.0
        %977 = vmatpush1.xpose.msra.mxu0 0.0
        %978 = vmatprep.subr.mxu0 0.0
        %979 = vmatpush1.xpose.msra.mxu0 0.0
        %980 = vmatprep.subr.mxu0 0.0
        %981 = vmatpush1.xpose.msra.mxu0 0.0
        %982 = vmatprep.subr.mxu0 0.0
        %983 = vmatpush1.xpose.msra.mxu0 0.0
        %984 = vmatprep.subr.mxu0 0.0
        %985 = vmatpush1.xpose.msra.mxu0 0.0
        %986 = vmatprep.subr.mxu0 0.0
        %987 = vmatpush1.xpose.msra.mxu0 0.0
        %988 = vmatprep.subr.mxu0 0.0
        %989 = vmatpush1.xpose.msra.mxu0 0.0
        %990 = vmatprep.subr.mxu0 0.0
        %991 = vmatpush1.xpose.msra.mxu0 0.0
        %992 = vmatprep.subr.mxu0 0.0
        %993 = vmatpush1.xpose.msra.mxu0 0.0
        %994 = vmatprep.subr.mxu0 0.0
        %995 = vmatpush1.xpose.msra.mxu0 0.0
        %996 = vmatprep.subr.mxu0 0.0
        %997 = vmatpush1.xpose.msra.mxu0 0.0
        %998 = vmatprep.subr.mxu0 0.0
        %999 = vmatpush1.xpose.msra.mxu0 0.0
        %1000 = vmatprep.mubr.f32.mxu0 0.0
        %v1001 = vand.u32 %v365, 4294901760
        %1002 = vmatmul.mubr.f32.gmra.mrb[0].mxu0 %v1001
        %v1003 = vpop.f32.mrb[0].mxu0
        %v1004 = vadd.f32 %v928, %v1003
        %v1005 = vpop.f32.mrb[0].mxu0
        %1006 = vdwg.mxu0
        %1007 = vmatprep.subr.mxu0 0.0
        %v1008 = vand.u32 %v373, 4294901760
        %v1009 = vsub.f32 %v373, %v1008
        %1010 = vmatpush1.xpose.msra.mxu0 %v1009
        %1011 = vmatprep.subr.mxu0 0.0
        %1012 = vmatpush1.xpose.msra.mxu0 0.0
        %1013 = vmatprep.subr.mxu0 0.0
        %1014 = vmatpush1.xpose.msra.mxu0 0.0
        %1015 = vmatprep.subr.mxu0 0.0
        %1016 = vmatpush1.xpose.msra.mxu0 0.0
        %1017 = vmatprep.subr.mxu0 0.0
        %1018 = vmatpush1.xpose.msra.mxu0 0.0
        %1019 = vmatprep.subr.mxu0 0.0
        %1020 = vmatpush1.xpose.msra.mxu0 0.0
        %1021 = vmatprep.subr.mxu0 0.0
        %1022 = vmatpush1.xpose.msra.mxu0 0.0
        %1023 = vmatprep.subr.mxu0 0.0
        %1024 = vmatpush1.xpose.msra.mxu0 0.0
        %1025 = vmatprep.subr.mxu0 0.0
        %1026 = vmatpush1.xpose.msra.mxu0 0.0
        %1027 = vmatprep.subr.mxu0 0.0
        %1028 = vmatpush1.xpose.msra.mxu0 0.0
        %1029 = vmatprep.subr.mxu0 0.0
        %1030 = vmatpush1.xpose.msra.mxu0 0.0
        %1031 = vmatprep.subr.mxu0 0.0
        %1032 = vmatpush1.xpose.msra.mxu0 0.0
        %1033 = vmatprep.subr.mxu0 0.0
        %1034 = vmatpush1.xpose.msra.mxu0 0.0
        %1035 = vmatprep.subr.mxu0 0.0
        %1036 = vmatpush1.xpose.msra.mxu0 0.0
        %1037 = vmatprep.subr.mxu0 0.0
        %1038 = vmatpush1.xpose.msra.mxu0 0.0
        %1039 = vmatprep.subr.mxu0 0.0
        %1040 = vmatpush1.xpose.msra.mxu0 0.0
        %1041 = vmatprep.subr.mxu0 0.0
        %1042 = vmatpush1.xpose.msra.mxu0 0.0
        %1043 = vmatprep.subr.mxu0 0.0
        %1044 = vmatpush1.xpose.msra.mxu0 0.0
        %1045 = vmatprep.subr.mxu0 0.0
        %1046 = vmatpush1.xpose.msra.mxu0 0.0
        %1047 = vmatprep.subr.mxu0 0.0
        %1048 = vmatpush1.xpose.msra.mxu0 0.0
        %1049 = vmatprep.subr.mxu0 0.0
        %1050 = vmatpush1.xpose.msra.mxu0 0.0
        %1051 = vmatprep.subr.mxu0 0.0
        %1052 = vmatpush1.xpose.msra.mxu0 0.0
        %1053 = vmatprep.subr.mxu0 0.0
        %1054 = vmatpush1.xpose.msra.mxu0 0.0
        %1055 = vmatprep.subr.mxu0 0.0
        %1056 = vmatpush1.xpose.msra.mxu0 0.0
        %1057 = vmatprep.subr.mxu0 0.0
        %1058 = vmatpush1.xpose.msra.mxu0 0.0
        %1059 = vmatprep.subr.mxu0 0.0
        %1060 = vmatpush1.xpose.msra.mxu0 0.0
        %1061 = vmatprep.subr.mxu0 0.0
        %1062 = vmatpush1.xpose.msra.mxu0 0.0
        %1063 = vmatprep.subr.mxu0 0.0
        %1064 = vmatpush1.xpose.msra.mxu0 0.0
        %1065 = vmatprep.subr.mxu0 0.0
        %1066 = vmatpush1.xpose.msra.mxu0 0.0
        %1067 = vmatprep.subr.mxu0 0.0
        %1068 = vmatpush1.xpose.msra.mxu0 0.0
        %1069 = vmatprep.subr.mxu0 0.0
        %1070 = vmatpush1.xpose.msra.mxu0 0.0
        %1071 = vmatprep.subr.mxu0 0.0
        %1072 = vmatpush1.xpose.msra.mxu0 0.0
        %1073 = vmatprep.mubr.f32.mxu0 0.0
        %v1074 = vand.u32 %v365, 4294901760
        %v1075 = vsub.f32 %v365, %v1074
        %1076 = vmatmul.mubr.f32.gmra.mrb[0].mxu0 %v1075
        %v1077 = vpop.f32.mrb[0].mxu0
        %v1078 = vadd.f32 %v1004, %v1077
        %v1079 = vpop.f32.mrb[0].mxu0
        %1080 = vdwg.mxu0
        %1081 = vmatprep.subr.mxu0 0.0
        %v1082 = vand.u32 %v373, 4294901760
        %1083 = vmatpush1.xpose.msra.mxu0 %v1082
        %1084 = vmatprep.subr.mxu0 0.0
        %1085 = vmatpush1.xpose.msra.mxu0 0.0
        %1086 = vmatprep.subr.mxu0 0.0
        %1087 = vmatpush1.xpose.msra.mxu0 0.0
        %1088 = vmatprep.subr.mxu0 0.0
        %1089 = vmatpush1.xpose.msra.mxu0 0.0
        %1090 = vmatprep.subr.mxu0 0.0
        %1091 = vmatpush1.xpose.msra.mxu0 0.0
        %1092 = vmatprep.subr.mxu0 0.0
        %1093 = vmatpush1.xpose.msra.mxu0 0.0
        %1094 = vmatprep.subr.mxu0 0.0
        %1095 = vmatpush1.xpose.msra.mxu0 0.0
        %1096 = vmatprep.subr.mxu0 0.0
        %1097 = vmatpush1.xpose.msra.mxu0 0.0
        %1098 = vmatprep.subr.mxu0 0.0
        %1099 = vmatpush1.xpose.msra.mxu0 0.0
        %1100 = vmatprep.subr.mxu0 0.0
        %1101 = vmatpush1.xpose.msra.mxu0 0.0
        %1102 = vmatprep.subr.mxu0 0.0
        %1103 = vmatpush1.xpose.msra.mxu0 0.0
        %1104 = vmatprep.subr.mxu0 0.0
        %1105 = vmatpush1.xpose.msra.mxu0 0.0
        %1106 = vmatprep.subr.mxu0 0.0
        %1107 = vmatpush1.xpose.msra.mxu0 0.0
        %1108 = vmatprep.subr.mxu0 0.0
        %1109 = vmatpush1.xpose.msra.mxu0 0.0
        %1110 = vmatprep.subr.mxu0 0.0
        %1111 = vmatpush1.xpose.msra.mxu0 0.0
        %1112 = vmatprep.subr.mxu0 0.0
        %1113 = vmatpush1.xpose.msra.mxu0 0.0
        %1114 = vmatprep.subr.mxu0 0.0
        %1115 = vmatpush1.xpose.msra.mxu0 0.0
        %1116 = vmatprep.subr.mxu0 0.0
        %1117 = vmatpush1.xpose.msra.mxu0 0.0
        %1118 = vmatprep.subr.mxu0 0.0
        %1119 = vmatpush1.xpose.msra.mxu0 0.0
        %1120 = vmatprep.subr.mxu0 0.0
        %1121 = vmatpush1.xpose.msra.mxu0 0.0
        %1122 = vmatprep.subr.mxu0 0.0
        %1123 = vmatpush1.xpose.msra.mxu0 0.0
        %1124 = vmatprep.subr.mxu0 0.0
        %1125 = vmatpush1.xpose.msra.mxu0 0.0
        %1126 = vmatprep.subr.mxu0 0.0
        %1127 = vmatpush1.xpose.msra.mxu0 0.0
        %1128 = vmatprep.subr.mxu0 0.0
        %1129 = vmatpush1.xpose.msra.mxu0 0.0
        %1130 = vmatprep.subr.mxu0 0.0
        %1131 = vmatpush1.xpose.msra.mxu0 0.0
        %1132 = vmatprep.subr.mxu0 0.0
        %1133 = vmatpush1.xpose.msra.mxu0 0.0
        %1134 = vmatprep.subr.mxu0 0.0
        %1135 = vmatpush1.xpose.msra.mxu0 0.0
        %1136 = vmatprep.subr.mxu0 0.0
        %1137 = vmatpush1.xpose.msra.mxu0 0.0
        %1138 = vmatprep.subr.mxu0 0.0
        %1139 = vmatpush1.xpose.msra.mxu0 0.0
        %1140 = vmatprep.subr.mxu0 0.0
        %1141 = vmatpush1.xpose.msra.mxu0 0.0
        %1142 = vmatprep.subr.mxu0 0.0
        %1143 = vmatpush1.xpose.msra.mxu0 0.0
        %1144 = vmatprep.subr.mxu0 0.0
        %1145 = vmatpush1.xpose.msra.mxu0 0.0
        %1146 = vmatprep.mubr.f32.mxu0 0.0
        %v1147 = vand.u32 %v365, 4294901760
        %v1148 = vsub.f32 %v365, %v1147
        %v1149 = vand.u32 %v1148, 4294901760
        %1150 = vmatmul.mubr.f32.gmra.mrb[0].mxu0 %v1149
        %v1151 = vpop.f32.mrb[0].mxu0
        %v1152 = vadd.f32 %v1078, %v1151
        %v1153 = vpop.f32.mrb[0].mxu0
        %1154 = vdwg.mxu0
        %1155 = vmatprep.subr.mxu0 0.0
        %v1156 = vand.u32 %v373, 4294901760
        %v1157 = vsub.f32 %v373, %v1156
        %v1158 = vand.u32 %v1157, 4294901760
        %1159 = vmatpush1.xpose.msra.mxu0 %v1158
        %1160 = vmatprep.subr.mxu0 0.0
        %1161 = vmatpush1.xpose.msra.mxu0 0.0
        %1162 = vmatprep.subr.mxu0 0.0
        %1163 = vmatpush1.xpose.msra.mxu0 0.0
        %1164 = vmatprep.subr.mxu0 0.0
        %1165 = vmatpush1.xpose.msra.mxu0 0.0
        %1166 = vmatprep.subr.mxu0 0.0
        %1167 = vmatpush1.xpose.msra.mxu0 0.0
        %1168 = vmatprep.subr.mxu0 0.0
        %1169 = vmatpush1.xpose.msra.mxu0 0.0
        %1170 = vmatprep.subr.mxu0 0.0
        %1171 = vmatpush1.xpose.msra.mxu0 0.0
        %1172 = vmatprep.subr.mxu0 0.0
        %1173 = vmatpush1.xpose.msra.mxu0 0.0
        %1174 = vmatprep.subr.mxu0 0.0
        %1175 = vmatpush1.xpose.msra.mxu0 0.0
        %1176 = vmatprep.subr.mxu0 0.0
        %1177 = vmatpush1.xpose.msra.mxu0 0.0
        %1178 = vmatprep.subr.mxu0 0.0
        %1179 = vmatpush1.xpose.msra.mxu0 0.0
        %1180 = vmatprep.subr.mxu0 0.0
        %1181 = vmatpush1.xpose.msra.mxu0 0.0
        %1182 = vmatprep.subr.mxu0 0.0
        %1183 = vmatpush1.xpose.msra.mxu0 0.0
        %1184 = vmatprep.subr.mxu0 0.0
        %1185 = vmatpush1.xpose.msra.mxu0 0.0
        %1186 = vmatprep.subr.mxu0 0.0
        %1187 = vmatpush1.xpose.msra.mxu0 0.0
        %1188 = vmatprep.subr.mxu0 0.0
        %1189 = vmatpush1.xpose.msra.mxu0 0.0
        %1190 = vmatprep.subr.mxu0 0.0
        %1191 = vmatpush1.xpose.msra.mxu0 0.0
        %1192 = vmatprep.subr.mxu0 0.0
        %1193 = vmatpush1.xpose.msra.mxu0 0.0
        %1194 = vmatprep.subr.mxu0 0.0
        %1195 = vmatpush1.xpose.msra.mxu0 0.0
        %1196 = vmatprep.subr.mxu0 0.0
        %1197 = vmatpush1.xpose.msra.mxu0 0.0
        %1198 = vmatprep.subr.mxu0 0.0
        %1199 = vmatpush1.xpose.msra.mxu0 0.0
        %1200 = vmatprep.subr.mxu0 0.0
        %1201 = vmatpush1.xpose.msra.mxu0 0.0
        %1202 = vmatprep.subr.mxu0 0.0
        %1203 = vmatpush1.xpose.msra.mxu0 0.0
        %1204 = vmatprep.subr.mxu0 0.0
        %1205 = vmatpush1.xpose.msra.mxu0 0.0
        %1206 = vmatprep.subr.mxu0 0.0
        %1207 = vmatpush1.xpose.msra.mxu0 0.0
        %1208 = vmatprep.subr.mxu0 0.0
        %1209 = vmatpush1.xpose.msra.mxu0 0.0
        %1210 = vmatprep.subr.mxu0 0.0
        %1211 = vmatpush1.xpose.msra.mxu0 0.0
        %1212 = vmatprep.subr.mxu0 0.0
        %1213 = vmatpush1.xpose.msra.mxu0 0.0
        %1214 = vmatprep.subr.mxu0 0.0
        %1215 = vmatpush1.xpose.msra.mxu0 0.0
        %1216 = vmatprep.subr.mxu0 0.0
        %1217 = vmatpush1.xpose.msra.mxu0 0.0
        %1218 = vmatprep.subr.mxu0 0.0
        %1219 = vmatpush1.xpose.msra.mxu0 0.0
        %1220 = vmatprep.subr.mxu0 0.0
        %1221 = vmatpush1.xpose.msra.mxu0 0.0
        %1222 = vmatprep.mubr.f32.mxu0 0.0
        %v1223 = vand.u32 %v365, 4294901760
        %1224 = vmatmul.mubr.f32.gmra.mrb[0].mxu0 %v1223
        %v1225 = vpop.f32.mrb[0].mxu0
        %v1226 = vadd.f32 %v1152, %v1225
        %v1227 = vpop.f32.mrb[0].mxu0
        %1228 = vdwg.mxu0
        %1229 = vmatprep.subr.mxu0 0.0
        %v1230 = vand.u32 %v373, 4294901760
        %1231 = vmatpush1.xpose.msra.mxu0 %v1230
        %1232 = vmatprep.subr.mxu0 0.0
        %1233 = vmatpush1.xpose.msra.mxu0 0.0
        %1234 = vmatprep.subr.mxu0 0.0
        %1235 = vmatpush1.xpose.msra.mxu0 0.0
        %1236 = vmatprep.subr.mxu0 0.0
        %1237 = vmatpush1.xpose.msra.mxu0 0.0
        %1238 = vmatprep.subr.mxu0 0.0
        %1239 = vmatpush1.xpose.msra.mxu0 0.0
        %1240 = vmatprep.subr.mxu0 0.0
        %1241 = vmatpush1.xpose.msra.mxu0 0.0
        %1242 = vmatprep.subr.mxu0 0.0
        %1243 = vmatpush1.xpose.msra.mxu0 0.0
        %1244 = vmatprep.subr.mxu0 0.0
        %1245 = vmatpush1.xpose.msra.mxu0 0.0
        %1246 = vmatprep.subr.mxu0 0.0
        %1247 = vmatpush1.xpose.msra.mxu0 0.0
        %1248 = vmatprep.subr.mxu0 0.0
        %1249 = vmatpush1.xpose.msra.mxu0 0.0
        %1250 = vmatprep.subr.mxu0 0.0
        %1251 = vmatpush1.xpose.msra.mxu0 0.0
        %1252 = vmatprep.subr.mxu0 0.0
        %1253 = vmatpush1.xpose.msra.mxu0 0.0
        %1254 = vmatprep.subr.mxu0 0.0
        %1255 = vmatpush1.xpose.msra.mxu0 0.0
        %1256 = vmatprep.subr.mxu0 0.0
        %1257 = vmatpush1.xpose.msra.mxu0 0.0
        %1258 = vmatprep.subr.mxu0 0.0
        %1259 = vmatpush1.xpose.msra.mxu0 0.0
        %1260 = vmatprep.subr.mxu0 0.0
        %1261 = vmatpush1.xpose.msra.mxu0 0.0
        %1262 = vmatprep.subr.mxu0 0.0
        %1263 = vmatpush1.xpose.msra.mxu0 0.0
        %1264 = vmatprep.subr.mxu0 0.0
        %1265 = vmatpush1.xpose.msra.mxu0 0.0
        %1266 = vmatprep.subr.mxu0 0.0
        %1267 = vmatpush1.xpose.msra.mxu0 0.0
        %1268 = vmatprep.subr.mxu0 0.0
        %1269 = vmatpush1.xpose.msra.mxu0 0.0
        %1270 = vmatprep.subr.mxu0 0.0
        %1271 = vmatpush1.xpose.msra.mxu0 0.0
        %1272 = vmatprep.subr.mxu0 0.0
        %1273 = vmatpush1.xpose.msra.mxu0 0.0
        %1274 = vmatprep.subr.mxu0 0.0
        %1275 = vmatpush1.xpose.msra.mxu0 0.0
        %1276 = vmatprep.subr.mxu0 0.0
        %1277 = vmatpush1.xpose.msra.mxu0 0.0
        %1278 = vmatprep.subr.mxu0 0.0
        %1279 = vmatpush1.xpose.msra.mxu0 0.0
        %1280 = vmatprep.subr.mxu0 0.0
        %1281 = vmatpush1.xpose.msra.mxu0 0.0
        %1282 = vmatprep.subr.mxu0 0.0
        %1283 = vmatpush1.xpose.msra.mxu0 0.0
        %1284 = vmatprep.subr.mxu0 0.0
        %1285 = vmatpush1.xpose.msra.mxu0 0.0
        %1286 = vmatprep.subr.mxu0 0.0
        %1287 = vmatpush1.xpose.msra.mxu0 0.0
        %1288 = vmatprep.subr.mxu0 0.0
        %1289 = vmatpush1.xpose.msra.mxu0 0.0
        %1290 = vmatprep.subr.mxu0 0.0
        %1291 = vmatpush1.xpose.msra.mxu0 0.0
        %1292 = vmatprep.subr.mxu0 0.0
        %1293 = vmatpush1.xpose.msra.mxu0 0.0
        %1294 = vmatprep.mubr.f32.mxu0 0.0
        %v1295 = vand.u32 %v365, 4294901760
        %1296 = vmatmul.mubr.f32.gmra.mrb[0].mxu0 %v1295
        %v1297 = vpop.f32.mrb[0].mxu0
        %v1298 = vadd.f32 %v1226, %v1297
        %v1299 = vpop.f32.mrb[0].mxu0
        %1300 = vdwg.mxu0
        %v1302 = vcombine.high %v370, %v370
        %v1305 = vcombine.high %v375, %v375
        %v1307 = vand.u32 %v1305, 4294901760
        %1308 = vmatprep.subr.mxu0 %v1307
        %v1309 = vand.u32 %v375, 4294901760
        %1310 = vmatpush1.xpose.msra.mxu0 %v1309
        %1311 = vmatprep.subr.mxu0 0.0
        %1312 = vmatpush1.xpose.msra.mxu0 0.0
        %1313 = vmatprep.subr.mxu0 0.0
        %1314 = vmatpush1.xpose.msra.mxu0 0.0
        %1315 = vmatprep.subr.mxu0 0.0
        %1316 = vmatpush1.xpose.msra.mxu0 0.0
        %1317 = vmatprep.subr.mxu0 0.0
        %1318 = vmatpush1.xpose.msra.mxu0 0.0
        %1319 = vmatprep.subr.mxu0 0.0
        %1320 = vmatpush1.xpose.msra.mxu0 0.0
        %1321 = vmatprep.subr.mxu0 0.0
        %1322 = vmatpush1.xpose.msra.mxu0 0.0
        %1323 = vmatprep.subr.mxu0 0.0
        %1324 = vmatpush1.xpose.msra.mxu0 0.0
        %1325 = vmatprep.subr.mxu0 0.0
        %1326 = vmatpush1.xpose.msra.mxu0 0.0
        %1327 = vmatprep.subr.mxu0 0.0
        %1328 = vmatpush1.xpose.msra.mxu0 0.0
        %1329 = vmatprep.subr.mxu0 0.0
        %1330 = vmatpush1.xpose.msra.mxu0 0.0
        %1331 = vmatprep.subr.mxu0 0.0
        %1332 = vmatpush1.xpose.msra.mxu0 0.0
        %1333 = vmatprep.subr.mxu0 0.0
        %1334 = vmatpush1.xpose.msra.mxu0 0.0
        %1335 = vmatprep.subr.mxu0 0.0
        %1336 = vmatpush1.xpose.msra.mxu0 0.0
        %1337 = vmatprep.subr.mxu0 0.0
        %1338 = vmatpush1.xpose.msra.mxu0 0.0
        %1339 = vmatprep.subr.mxu0 0.0
        %1340 = vmatpush1.xpose.msra.mxu0 0.0
        %1341 = vmatprep.subr.mxu0 0.0
        %1342 = vmatpush1.xpose.msra.mxu0 0.0
        %1343 = vmatprep.subr.mxu0 0.0
        %1344 = vmatpush1.xpose.msra.mxu0 0.0
        %1345 = vmatprep.subr.mxu0 0.0
        %1346 = vmatpush1.xpose.msra.mxu0 0.0
        %1347 = vmatprep.subr.mxu0 0.0
        %1348 = vmatpush1.xpose.msra.mxu0 0.0
        %1349 = vmatprep.subr.mxu0 0.0
        %1350 = vmatpush1.xpose.msra.mxu0 0.0
        %1351 = vmatprep.subr.mxu0 0.0
        %1352 = vmatpush1.xpose.msra.mxu0 0.0
        %1353 = vmatprep.subr.mxu0 0.0
        %1354 = vmatpush1.xpose.msra.mxu0 0.0
        %1355 = vmatprep.subr.mxu0 0.0
        %1356 = vmatpush1.xpose.msra.mxu0 0.0
        %1357 = vmatprep.subr.mxu0 0.0
        %1358 = vmatpush1.xpose.msra.mxu0 0.0
        %1359 = vmatprep.subr.mxu0 0.0
        %1360 = vmatpush1.xpose.msra.mxu0 0.0
        %1361 = vmatprep.subr.mxu0 0.0
        %1362 = vmatpush1.xpose.msra.mxu0 0.0
        %1363 = vmatprep.subr.mxu0 0.0
        %1364 = vmatpush1.xpose.msra.mxu0 0.0
        %1365 = vmatprep.subr.mxu0 0.0
        %1366 = vmatpush1.xpose.msra.mxu0 0.0
        %1367 = vmatprep.subr.mxu0 0.0
        %1368 = vmatpush1.xpose.msra.mxu0 0.0
        %1369 = vmatprep.subr.mxu0 0.0
        %1370 = vmatpush1.xpose.msra.mxu0 0.0
        %1371 = vmatprep.subr.mxu0 0.0
        %1372 = vmatpush1.xpose.msra.mxu0 0.0
        %v1373 = vand.u32 %v1302, 4294901760
        %v1374 = vsub.f32 %v1302, %v1373
        %v1375 = vand.u32 %v1374, 4294901760
        %v1376 = vsub.f32 %v1374, %v1375
        %v1377 = vand.u32 %v1376, 4294901760
        %1378 = vmatprep.mubr.f32.mxu0 %v1377
        %v1379 = vand.u32 %v370, 4294901760
        %v1380 = vsub.f32 %v370, %v1379
        %v1381 = vand.u32 %v1380, 4294901760
        %v1382 = vsub.f32 %v1380, %v1381
        %v1383 = vand.u32 %v1382, 4294901760
        %1384 = vmatmul.mubr.f32.gmra.mrb[0].mxu0 %v1383
        %v1385 = vpop.f32.mrb[0].mxu0
        %v1386 = vadd.f32 0.0, %v1385
        %v1387 = vpop.f32.mrb[0].mxu0
        %1388 = vdwg.mxu0
        %v1389 = vand.u32 %v1305, 4294901760
        %v1390 = vsub.f32 %v1305, %v1389
        %v1391 = vand.u32 %v1390, 4294901760
        %v1392 = vsub.f32 %v1390, %v1391
        %v1393 = vand.u32 %v1392, 4294901760
        %1394 = vmatprep.subr.mxu0 %v1393
        %v1395 = vand.u32 %v375, 4294901760
        %v1396 = vsub.f32 %v375, %v1395
        %v1397 = vand.u32 %v1396, 4294901760
        %v1398 = vsub.f32 %v1396, %v1397
        %v1399 = vand.u32 %v1398, 4294901760
        %1400 = vmatpush1.xpose.msra.mxu0 %v1399
        %1401 = vmatprep.subr.mxu0 0.0
        %1402 = vmatpush1.xpose.msra.mxu0 0.0
        %1403 = vmatprep.subr.mxu0 0.0
        %1404 = vmatpush1.xpose.msra.mxu0 0.0
        %1405 = vmatprep.subr.mxu0 0.0
        %1406 = vmatpush1.xpose.msra.mxu0 0.0
        %1407 = vmatprep.subr.mxu0 0.0
        %1408 = vmatpush1.xpose.msra.mxu0 0.0
        %1409 = vmatprep.subr.mxu0 0.0
        %1410 = vmatpush1.xpose.msra.mxu0 0.0
        %1411 = vmatprep.subr.mxu0 0.0
        %1412 = vmatpush1.xpose.msra.mxu0 0.0
        %1413 = vmatprep.subr.mxu0 0.0
        %1414 = vmatpush1.xpose.msra.mxu0 0.0
        %1415 = vmatprep.subr.mxu0 0.0
        %1416 = vmatpush1.xpose.msra.mxu0 0.0
        %1417 = vmatprep.subr.mxu0 0.0
        %1418 = vmatpush1.xpose.msra.mxu0 0.0
        %1419 = vmatprep.subr.mxu0 0.0
        %1420 = vmatpush1.xpose.msra.mxu0 0.0
        %1421 = vmatprep.subr.mxu0 0.0
        %1422 = vmatpush1.xpose.msra.mxu0 0.0
        %1423 = vmatprep.subr.mxu0 0.0
        %1424 = vmatpush1.xpose.msra.mxu0 0.0
        %1425 = vmatprep.subr.mxu0 0.0
        %1426 = vmatpush1.xpose.msra.mxu0 0.0
        %1427 = vmatprep.subr.mxu0 0.0
        %1428 = vmatpush1.xpose.msra.mxu0 0.0
        %1429 = vmatprep.subr.mxu0 0.0
        %1430 = vmatpush1.xpose.msra.mxu0 0.0
        %1431 = vmatprep.subr.mxu0 0.0
        %1432 = vmatpush1.xpose.msra.mxu0 0.0
        %1433 = vmatprep.subr.mxu0 0.0
        %1434 = vmatpush1.xpose.msra.mxu0 0.0
        %1435 = vmatprep.subr.mxu0 0.0
        %1436 = vmatpush1.xpose.msra.mxu0 0.0
        %1437 = vmatprep.subr.mxu0 0.0
        %1438 = vmatpush1.xpose.msra.mxu0 0.0
        %1439 = vmatprep.subr.mxu0 0.0
        %1440 = vmatpush1.xpose.msra.mxu0 0.0
        %1441 = vmatprep.subr.mxu0 0.0
        %1442 = vmatpush1.xpose.msra.mxu0 0.0
        %1443 = vmatprep.subr.mxu0 0.0
        %1444 = vmatpush1.xpose.msra.mxu0 0.0
        %1445 = vmatprep.subr.mxu0 0.0
        %1446 = vmatpush1.xpose.msra.mxu0 0.0
        %1447 = vmatprep.subr.mxu0 0.0
        %1448 = vmatpush1.xpose.msra.mxu0 0.0
        %1449 = vmatprep.subr.mxu0 0.0
        %1450 = vmatpush1.xpose.msra.mxu0 0.0
        %1451 = vmatprep.subr.mxu0 0.0
        %1452 = vmatpush1.xpose.msra.mxu0 0.0
        %1453 = vmatprep.subr.mxu0 0.0
        %1454 = vmatpush1.xpose.msra.mxu0 0.0
        %1455 = vmatprep.subr.mxu0 0.0
        %1456 = vmatpush1.xpose.msra.mxu0 0.0
        %1457 = vmatprep.subr.mxu0 0.0
        %1458 = vmatpush1.xpose.msra.mxu0 0.0
        %1459 = vmatprep.subr.mxu0 0.0
        %1460 = vmatpush1.xpose.msra.mxu0 0.0
        %1461 = vmatprep.subr.mxu0 0.0
        %1462 = vmatpush1.xpose.msra.mxu0 0.0
        %v1463 = vand.u32 %v1302, 4294901760
        %1464 = vmatprep.mubr.f32.mxu0 %v1463
        %v1465 = vand.u32 %v370, 4294901760
        %1466 = vmatmul.mubr.f32.gmra.mrb[0].mxu0 %v1465
        %v1467 = vpop.f32.mrb[0].mxu0
        %v1468 = vadd.f32 %v1386, %v1467
        %v1469 = vpop.f32.mrb[0].mxu0
        %1470 = vdwg.mxu0
        %v1471 = vand.u32 %v1305, 4294901760
        %v1472 = vsub.f32 %v1305, %v1471
        %1473 = vmatprep.subr.mxu0 %v1472
        %v1474 = vand.u32 %v375, 4294901760
        %v1475 = vsub.f32 %v375, %v1474
        %1476 = vmatpush1.xpose.msra.mxu0 %v1475
        %1477 = vmatprep.subr.mxu0 0.0
        %1478 = vmatpush1.xpose.msra.mxu0 0.0
        %1479 = vmatprep.subr.mxu0 0.0
        %1480 = vmatpush1.xpose.msra.mxu0 0.0
        %1481 = vmatprep.subr.mxu0 0.0
        %1482 = vmatpush1.xpose.msra.mxu0 0.0
        %1483 = vmatprep.subr.mxu0 0.0
        %1484 = vmatpush1.xpose.msra.mxu0 0.0
        %1485 = vmatprep.subr.mxu0 0.0
        %1486 = vmatpush1.xpose.msra.mxu0 0.0
        %1487 = vmatprep.subr.mxu0 0.0
        %1488 = vmatpush1.xpose.msra.mxu0 0.0
        %1489 = vmatprep.subr.mxu0 0.0
        %1490 = vmatpush1.xpose.msra.mxu0 0.0
        %1491 = vmatprep.subr.mxu0 0.0
        %1492 = vmatpush1.xpose.msra.mxu0 0.0
        %1493 = vmatprep.subr.mxu0 0.0
        %1494 = vmatpush1.xpose.msra.mxu0 0.0
        %1495 = vmatprep.subr.mxu0 0.0
        %1496 = vmatpush1.xpose.msra.mxu0 0.0
        %1497 = vmatprep.subr.mxu0 0.0
        %1498 = vmatpush1.xpose.msra.mxu0 0.0
        %1499 = vmatprep.subr.mxu0 0.0
        %1500 = vmatpush1.xpose.msra.mxu0 0.0
        %1501 = vmatprep.subr.mxu0 0.0
        %1502 = vmatpush1.xpose.msra.mxu0 0.0
        %1503 = vmatprep.subr.mxu0 0.0
        %1504 = vmatpush1.xpose.msra.mxu0 0.0
        %1505 = vmatprep.subr.mxu0 0.0
        %1506 = vmatpush1.xpose.msra.mxu0 0.0
        %1507 = vmatprep.subr.mxu0 0.0
        %1508 = vmatpush1.xpose.msra.mxu0 0.0
        %1509 = vmatprep.subr.mxu0 0.0
        %1510 = vmatpush1.xpose.msra.mxu0 0.0
        %1511 = vmatprep.subr.mxu0 0.0
        %1512 = vmatpush1.xpose.msra.mxu0 0.0
        %1513 = vmatprep.subr.mxu0 0.0
        %1514 = vmatpush1.xpose.msra.mxu0 0.0
        %1515 = vmatprep.subr.mxu0 0.0
        %1516 = vmatpush1.xpose.msra.mxu0 0.0
        %1517 = vmatprep.subr.mxu0 0.0
        %1518 = vmatpush1.xpose.msra.mxu0 0.0
        %1519 = vmatprep.subr.mxu0 0.0
        %1520 = vmatpush1.xpose.msra.mxu0 0.0
        %1521 = vmatprep.subr.mxu0 0.0
        %1522 = vmatpush1.xpose.msra.mxu0 0.0
        %1523 = vmatprep.subr.mxu0 0.0
        %1524 = vmatpush1.xpose.msra.mxu0 0.0
        %1525 = vmatprep.subr.mxu0 0.0
        %1526 = vmatpush1.xpose.msra.mxu0 0.0
        %1527 = vmatprep.subr.mxu0 0.0
        %1528 = vmatpush1.xpose.msra.mxu0 0.0
        %1529 = vmatprep.subr.mxu0 0.0
        %1530 = vmatpush1.xpose.msra.mxu0 0.0
        %1531 = vmatprep.subr.mxu0 0.0
        %1532 = vmatpush1.xpose.msra.mxu0 0.0
        %1533 = vmatprep.subr.mxu0 0.0
        %1534 = vmatpush1.xpose.msra.mxu0 0.0
        %1535 = vmatprep.subr.mxu0 0.0
        %1536 = vmatpush1.xpose.msra.mxu0 0.0
        %1537 = vmatprep.subr.mxu0 0.0
        %1538 = vmatpush1.xpose.msra.mxu0 0.0
        %v1539 = vand.u32 %v1302, 4294901760
        %v1540 = vsub.f32 %v1302, %v1539
        %1541 = vmatprep.mubr.f32.mxu0 %v1540
        %v1542 = vand.u32 %v370, 4294901760
        %v1543 = vsub.f32 %v370, %v1542
        %1544 = vmatmul.mubr.f32.gmra.mrb[0].mxu0 %v1543
        %v1545 = vpop.f32.mrb[0].mxu0
        %v1546 = vadd.f32 %v1468, %v1545
        %v1547 = vpop.f32.mrb[0].mxu0
        %1548 = vdwg.mxu0
        %v1549 = vand.u32 %v1305, 4294901760
        %1550 = vmatprep.subr.mxu0 %v1549
        %v1551 = vand.u32 %v375, 4294901760
        %1552 = vmatpush1.xpose.msra.mxu0 %v1551
        %1553 = vmatprep.subr.mxu0 0.0
        %1554 = vmatpush1.xpose.msra.mxu0 0.0
        %1555 = vmatprep.subr.mxu0 0.0
        %1556 = vmatpush1.xpose.msra.mxu0 0.0
        %1557 = vmatprep.subr.mxu0 0.0
        %1558 = vmatpush1.xpose.msra.mxu0 0.0
        %1559 = vmatprep.subr.mxu0 0.0
        %1560 = vmatpush1.xpose.msra.mxu0 0.0
        %1561 = vmatprep.subr.mxu0 0.0
        %1562 = vmatpush1.xpose.msra.mxu0 0.0
        %1563 = vmatprep.subr.mxu0 0.0
        %1564 = vmatpush1.xpose.msra.mxu0 0.0
        %1565 = vmatprep.subr.mxu0 0.0
        %1566 = vmatpush1.xpose.msra.mxu0 0.0
        %1567 = vmatprep.subr.mxu0 0.0
        %1568 = vmatpush1.xpose.msra.mxu0 0.0
        %1569 = vmatprep.subr.mxu0 0.0
        %1570 = vmatpush1.xpose.msra.mxu0 0.0
        %1571 = vmatprep.subr.mxu0 0.0
        %1572 = vmatpush1.xpose.msra.mxu0 0.0
        %1573 = vmatprep.subr.mxu0 0.0
        %1574 = vmatpush1.xpose.msra.mxu0 0.0
        %1575 = vmatprep.subr.mxu0 0.0
        %1576 = vmatpush1.xpose.msra.mxu0 0.0
        %1577 = vmatprep.subr.mxu0 0.0
        %1578 = vmatpush1.xpose.msra.mxu0 0.0
        %1579 = vmatprep.subr.mxu0 0.0
        %1580 = vmatpush1.xpose.msra.mxu0 0.0
        %1581 = vmatprep.subr.mxu0 0.0
        %1582 = vmatpush1.xpose.msra.mxu0 0.0
        %1583 = vmatprep.subr.mxu0 0.0
        %1584 = vmatpush1.xpose.msra.mxu0 0.0
        %1585 = vmatprep.subr.mxu0 0.0
        %1586 = vmatpush1.xpose.msra.mxu0 0.0
        %1587 = vmatprep.subr.mxu0 0.0
        %1588 = vmatpush1.xpose.msra.mxu0 0.0
        %1589 = vmatprep.subr.mxu0 0.0
        %1590 = vmatpush1.xpose.msra.mxu0 0.0
        %1591 = vmatprep.subr.mxu0 0.0
        %1592 = vmatpush1.xpose.msra.mxu0 0.0
        %1593 = vmatprep.subr.mxu0 0.0
        %1594 = vmatpush1.xpose.msra.mxu0 0.0
        %1595 = vmatprep.subr.mxu0 0.0
        %1596 = vmatpush1.xpose.msra.mxu0 0.0
        %1597 = vmatprep.subr.mxu0 0.0
        %1598 = vmatpush1.xpose.msra.mxu0 0.0
        %1599 = vmatprep.subr.mxu0 0.0
        %1600 = vmatpush1.xpose.msra.mxu0 0.0
        %1601 = vmatprep.subr.mxu0 0.0
        %1602 = vmatpush1.xpose.msra.mxu0 0.0
        %1603 = vmatprep.subr.mxu0 0.0
        %1604 = vmatpush1.xpose.msra.mxu0 0.0
        %1605 = vmatprep.subr.mxu0 0.0
        %1606 = vmatpush1.xpose.msra.mxu0 0.0
        %1607 = vmatprep.subr.mxu0 0.0
        %1608 = vmatpush1.xpose.msra.mxu0 0.0
        %1609 = vmatprep.subr.mxu0 0.0
        %1610 = vmatpush1.xpose.msra.mxu0 0.0
        %1611 = vmatprep.subr.mxu0 0.0
        %1612 = vmatpush1.xpose.msra.mxu0 0.0
        %1613 = vmatprep.subr.mxu0 0.0
        %1614 = vmatpush1.xpose.msra.mxu0 0.0
        %v1615 = vand.u32 %v1302, 4294901760
        %v1616 = vsub.f32 %v1302, %v1615
        %v1617 = vand.u32 %v1616, 4294901760
        %1618 = vmatprep.mubr.f32.mxu0 %v1617
        %v1619 = vand.u32 %v370, 4294901760
        %v1620 = vsub.f32 %v370, %v1619
        %v1621 = vand.u32 %v1620, 4294901760
        %1622 = vmatmul.mubr.f32.gmra.mrb[0].mxu0 %v1621
        %v1623 = vpop.f32.mrb[0].mxu0
        %v1624 = vadd.f32 %v1546, %v1623
        %v1625 = vpop.f32.mrb[0].mxu0
        %1626 = vdwg.mxu0
        %v1627 = vand.u32 %v1305, 4294901760
        %v1628 = vsub.f32 %v1305, %v1627
        %v1629 = vand.u32 %v1628, 4294901760
        %1630 = vmatprep.subr.mxu0 %v1629
        %v1631 = vand.u32 %v375, 4294901760
        %v1632 = vsub.f32 %v375, %v1631
        %v1633 = vand.u32 %v1632, 4294901760
        %1634 = vmatpush1.xpose.msra.mxu0 %v1633
        %1635 = vmatprep.subr.mxu0 0.0
        %1636 = vmatpush1.xpose.msra.mxu0 0.0
        %1637 = vmatprep.subr.mxu0 0.0
        %1638 = vmatpush1.xpose.msra.mxu0 0.0
        %1639 = vmatprep.subr.mxu0 0.0
        %1640 = vmatpush1.xpose.msra.mxu0 0.0
        %1641 = vmatprep.subr.mxu0 0.0
        %1642 = vmatpush1.xpose.msra.mxu0 0.0
        %1643 = vmatprep.subr.mxu0 0.0
        %1644 = vmatpush1.xpose.msra.mxu0 0.0
        %1645 = vmatprep.subr.mxu0 0.0
        %1646 = vmatpush1.xpose.msra.mxu0 0.0
        %1647 = vmatprep.subr.mxu0 0.0
        %1648 = vmatpush1.xpose.msra.mxu0 0.0
        %1649 = vmatprep.subr.mxu0 0.0
        %1650 = vmatpush1.xpose.msra.mxu0 0.0
        %1651 = vmatprep.subr.mxu0 0.0
        %1652 = vmatpush1.xpose.msra.mxu0 0.0
        %1653 = vmatprep.subr.mxu0 0.0
        %1654 = vmatpush1.xpose.msra.mxu0 0.0
        %1655 = vmatprep.subr.mxu0 0.0
        %1656 = vmatpush1.xpose.msra.mxu0 0.0
        %1657 = vmatprep.subr.mxu0 0.0
        %1658 = vmatpush1.xpose.msra.mxu0 0.0
        %1659 = vmatprep.subr.mxu0 0.0
        %1660 = vmatpush1.xpose.msra.mxu0 0.0
        %1661 = vmatprep.subr.mxu0 0.0
        %1662 = vmatpush1.xpose.msra.mxu0 0.0
        %1663 = vmatprep.subr.mxu0 0.0
        %1664 = vmatpush1.xpose.msra.mxu0 0.0
        %1665 = vmatprep.subr.mxu0 0.0
        %1666 = vmatpush1.xpose.msra.mxu0 0.0
        %1667 = vmatprep.subr.mxu0 0.0
        %1668 = vmatpush1.xpose.msra.mxu0 0.0
        %1669 = vmatprep.subr.mxu0 0.0
        %1670 = vmatpush1.xpose.msra.mxu0 0.0
        %1671 = vmatprep.subr.mxu0 0.0
        %1672 = vmatpush1.xpose.msra.mxu0 0.0
        %1673 = vmatprep.subr.mxu0 0.0
        %1674 = vmatpush1.xpose.msra.mxu0 0.0
        %1675 = vmatprep.subr.mxu0 0.0
        %1676 = vmatpush1.xpose.msra.mxu0 0.0
        %1677 = vmatprep.subr.mxu0 0.0
        %1678 = vmatpush1.xpose.msra.mxu0 0.0
        %1679 = vmatprep.subr.mxu0 0.0
        %1680 = vmatpush1.xpose.msra.mxu0 0.0
        %1681 = vmatprep.subr.mxu0 0.0
        %1682 = vmatpush1.xpose.msra.mxu0 0.0
        %1683 = vmatprep.subr.mxu0 0.0
        %1684 = vmatpush1.xpose.msra.mxu0 0.0
        %1685 = vmatprep.subr.mxu0 0.0
        %1686 = vmatpush1.xpose.msra.mxu0 0.0
        %1687 = vmatprep.subr.mxu0 0.0
        %1688 = vmatpush1.xpose.msra.mxu0 0.0
        %1689 = vmatprep.subr.mxu0 0.0
        %1690 = vmatpush1.xpose.msra.mxu0 0.0
        %1691 = vmatprep.subr.mxu0 0.0
        %1692 = vmatpush1.xpose.msra.mxu0 0.0
        %1693 = vmatprep.subr.mxu0 0.0
        %1694 = vmatpush1.xpose.msra.mxu0 0.0
        %1695 = vmatprep.subr.mxu0 0.0
        %1696 = vmatpush1.xpose.msra.mxu0 0.0
        %v1697 = vand.u32 %v1302, 4294901760
        %1698 = vmatprep.mubr.f32.mxu0 %v1697
        %v1699 = vand.u32 %v370, 4294901760
        %1700 = vmatmul.mubr.f32.gmra.mrb[0].mxu0 %v1699
        %v1701 = vpop.f32.mrb[0].mxu0
        %v1702 = vadd.f32 %v1624, %v1701
        %v1703 = vpop.f32.mrb[0].mxu0
        %1704 = vdwg.mxu0
        %v1705 = vand.u32 %v1305, 4294901760
        %1706 = vmatprep.subr.mxu0 %v1705
        %v1707 = vand.u32 %v375, 4294901760
        %1708 = vmatpush1.xpose.msra.mxu0 %v1707
        %1709 = vmatprep.subr.mxu0 0.0
        %1710 = vmatpush1.xpose.msra.mxu0 0.0
        %1711 = vmatprep.subr.mxu0 0.0
        %1712 = vmatpush1.xpose.msra.mxu0 0.0
        %1713 = vmatprep.subr.mxu0 0.0
        %1714 = vmatpush1.xpose.msra.mxu0 0.0
        %1715 = vmatprep.subr.mxu0 0.0
        %1716 = vmatpush1.xpose.msra.mxu0 0.0
        %1717 = vmatprep.subr.mxu0 0.0
        %1718 = vmatpush1.xpose.msra.mxu0 0.0
        %1719 = vmatprep.subr.mxu0 0.0
        %1720 = vmatpush1.xpose.msra.mxu0 0.0
        %1721 = vmatprep.subr.mxu0 0.0
        %1722 = vmatpush1.xpose.msra.mxu0 0.0
        %1723 = vmatprep.subr.mxu0 0.0
        %1724 = vmatpush1.xpose.msra.mxu0 0.0
        %1725 = vmatprep.subr.mxu0 0.0
        %1726 = vmatpush1.xpose.msra.mxu0 0.0
        %1727 = vmatprep.subr.mxu0 0.0
        %1728 = vmatpush1.xpose.msra.mxu0 0.0
        %1729 = vmatprep.subr.mxu0 0.0
        %1730 = vmatpush1.xpose.msra.mxu0 0.0
        %1731 = vmatprep.subr.mxu0 0.0
        %1732 = vmatpush1.xpose.msra.mxu0 0.0
        %1733 = vmatprep.subr.mxu0 0.0
        %1734 = vmatpush1.xpose.msra.mxu0 0.0
        %1735 = vmatprep.subr.mxu0 0.0
        %1736 = vmatpush1.xpose.msra.mxu0 0.0
        %1737 = vmatprep.subr.mxu0 0.0
        %1738 = vmatpush1.xpose.msra.mxu0 0.0
        %1739 = vmatprep.subr.mxu0 0.0
        %1740 = vmatpush1.xpose.msra.mxu0 0.0
        %1741 = vmatprep.subr.mxu0 0.0
        %1742 = vmatpush1.xpose.msra.mxu0 0.0
        %1743 = vmatprep.subr.mxu0 0.0
        %1744 = vmatpush1.xpose.msra.mxu0 0.0
        %1745 = vmatprep.subr.mxu0 0.0
        %1746 = vmatpush1.xpose.msra.mxu0 0.0
        %1747 = vmatprep.subr.mxu0 0.0
        %1748 = vmatpush1.xpose.msra.mxu0 0.0
        %1749 = vmatprep.subr.mxu0 0.0
        %1750 = vmatpush1.xpose.msra.mxu0 0.0
        %1751 = vmatprep.subr.mxu0 0.0
        %1752 = vmatpush1.xpose.msra.mxu0 0.0
        %1753 = vmatprep.subr.mxu0 0.0
        %1754 = vmatpush1.xpose.msra.mxu0 0.0
        %1755 = vmatprep.subr.mxu0 0.0
        %1756 = vmatpush1.xpose.msra.mxu0 0.0
        %1757 = vmatprep.subr.mxu0 0.0
        %1758 = vmatpush1.xpose.msra.mxu0 0.0
        %1759 = vmatprep.subr.mxu0 0.0
        %1760 = vmatpush1.xpose.msra.mxu0 0.0
        %1761 = vmatprep.subr.mxu0 0.0
        %1762 = vmatpush1.xpose.msra.mxu0 0.0
        %1763 = vmatprep.subr.mxu0 0.0
        %1764 = vmatpush1.xpose.msra.mxu0 0.0
        %1765 = vmatprep.subr.mxu0 0.0
        %1766 = vmatpush1.xpose.msra.mxu0 0.0
        %1767 = vmatprep.subr.mxu0 0.0
        %1768 = vmatpush1.xpose.msra.mxu0 0.0
        %1769 = vmatprep.subr.mxu0 0.0
        %1770 = vmatpush1.xpose.msra.mxu0 0.0
        %v1771 = vand.u32 %v1302, 4294901760
        %1772 = vmatprep.mubr.f32.mxu0 %v1771
        %v1773 = vand.u32 %v370, 4294901760
        %1774 = vmatmul.mubr.f32.gmra.mrb[0].mxu0 %v1773
        %v1775 = vpop.f32.mrb[0].mxu0
        %v1776 = vadd.f32 %v1702, %v1775
        %v1777 = vpop.f32.mrb[0].mxu0
        %1778 = vdwg.mxu0
        %1779 = vmatprep.subr.mxu0 0.0
        %v1780 = vand.u32 %v376, 4294901760
        %1781 = vmatpush1.xpose.msra.mxu0 %v1780
        %1782 = vmatprep.subr.mxu0 0.0
        %1783 = vmatpush1.xpose.msra.mxu0 0.0
        %1784 = vmatprep.subr.mxu0 0.0
        %1785 = vmatpush1.xpose.msra.mxu0 0.0
        %1786 = vmatprep.subr.mxu0 0.0
        %1787 = vmatpush1.xpose.msra.mxu0 0.0
        %1788 = vmatprep.subr.mxu0 0.0
        %1789 = vmatpush1.xpose.msra.mxu0 0.0
        %1790 = vmatprep.subr.mxu0 0.0
        %1791 = vmatpush1.xpose.msra.mxu0 0.0
        %1792 = vmatprep.subr.mxu0 0.0
        %1793 = vmatpush1.xpose.msra.mxu0 0.0
        %1794 = vmatprep.subr.mxu0 0.0
        %1795 = vmatpush1.xpose.msra.mxu0 0.0
        %1796 = vmatprep.subr.mxu0 0.0
        %1797 = vmatpush1.xpose.msra.mxu0 0.0
        %1798 = vmatprep.subr.mxu0 0.0
        %1799 = vmatpush1.xpose.msra.mxu0 0.0
        %1800 = vmatprep.subr.mxu0 0.0
        %1801 = vmatpush1.xpose.msra.mxu0 0.0
        %1802 = vmatprep.subr.mxu0 0.0
        %1803 = vmatpush1.xpose.msra.mxu0 0.0
        %1804 = vmatprep.subr.mxu0 0.0
        %1805 = vmatpush1.xpose.msra.mxu0 0.0
        %1806 = vmatprep.subr.mxu0 0.0
        %1807 = vmatpush1.xpose.msra.mxu0 0.0
        %1808 = vmatprep.subr.mxu0 0.0
        %1809 = vmatpush1.xpose.msra.mxu0 0.0
        %1810 = vmatprep.subr.mxu0 0.0
        %1811 = vmatpush1.xpose.msra.mxu0 0.0
        %1812 = vmatprep.subr.mxu0 0.0
        %1813 = vmatpush1.xpose.msra.mxu0 0.0
        %1814 = vmatprep.subr.mxu0 0.0
        %1815 = vmatpush1.xpose.msra.mxu0 0.0
        %1816 = vmatprep.subr.mxu0 0.0
        %1817 = vmatpush1.xpose.msra.mxu0 0.0
        %1818 = vmatprep.subr.mxu0 0.0
        %1819 = vmatpush1.xpose.msra.mxu0 0.0
        %1820 = vmatprep.subr.mxu0 0.0
        %1821 = vmatpush1.xpose.msra.mxu0 0.0
        %1822 = vmatprep.subr.mxu0 0.0
        %1823 = vmatpush1.xpose.msra.mxu0 0.0
        %1824 = vmatprep.subr.mxu0 0.0
        %1825 = vmatpush1.xpose.msra.mxu0 0.0
        %1826 = vmatprep.subr.mxu0 0.0
        %1827 = vmatpush1.xpose.msra.mxu0 0.0
        %1828 = vmatprep.subr.mxu0 0.0
        %1829 = vmatpush1.xpose.msra.mxu0 0.0
        %1830 = vmatprep.subr.mxu0 0.0
        %1831 = vmatpush1.xpose.msra.mxu0 0.0
        %1832 = vmatprep.subr.mxu0 0.0
        %1833 = vmatpush1.xpose.msra.mxu0 0.0
        %1834 = vmatprep.subr.mxu0 0.0
        %1835 = vmatpush1.xpose.msra.mxu0 0.0
        %1836 = vmatprep.subr.mxu0 0.0
        %1837 = vmatpush1.xpose.msra.mxu0 0.0
        %1838 = vmatprep.subr.mxu0 0.0
        %1839 = vmatpush1.xpose.msra.mxu0 0.0
        %1840 = vmatprep.subr.mxu0 0.0
        %1841 = vmatpush1.xpose.msra.mxu0 0.0
        %1842 = vmatprep.subr.mxu0 0.0
        %1843 = vmatpush1.xpose.msra.mxu0 0.0
        %1844 = vmatprep.mubr.f32.mxu0 0.0
        %v1845 = vand.u32 %v371, 4294901760
        %v1846 = vsub.f32 %v371, %v1845
        %v1847 = vand.u32 %v1846, 4294901760
        %v1848 = vsub.f32 %v1846, %v1847
        %v1849 = vand.u32 %v1848, 4294901760
        %1850 = vmatmul.mubr.f32.gmra.mrb[0].mxu0 %v1849
        %v1851 = vpop.f32.mrb[0].mxu0
        %v1852 = vadd.f32 %v1776, %v1851
        %v1853 = vpop.f32.mrb[0].mxu0
        %1854 = vdwg.mxu0
        %1855 = vmatprep.subr.mxu0 0.0
        %v1856 = vand.u32 %v376, 4294901760
        %v1857 = vsub.f32 %v376, %v1856
        %v1858 = vand.u32 %v1857, 4294901760
        %v1859 = vsub.f32 %v1857, %v1858
        %v1860 = vand.u32 %v1859, 4294901760
        %1861 = vmatpush1.xpose.msra.mxu0 %v1860
        %1862 = vmatprep.subr.mxu0 0.0
        %1863 = vmatpush1.xpose.msra.mxu0 0.0
        %1864 = vmatprep.subr.mxu0 0.0
        %1865 = vmatpush1.xpose.msra.mxu0 0.0
        %1866 = vmatprep.subr.mxu0 0.0
        %1867 = vmatpush1.xpose.msra.mxu0 0.0
        %1868 = vmatprep.subr.mxu0 0.0
        %1869 = vmatpush1.xpose.msra.mxu0 0.0
        %1870 = vmatprep.subr.mxu0 0.0
        %1871 = vmatpush1.xpose.msra.mxu0 0.0
        %1872 = vmatprep.subr.mxu0 0.0
        %1873 = vmatpush1.xpose.msra.mxu0 0.0
        %1874 = vmatprep.subr.mxu0 0.0
        %1875 = vmatpush1.xpose.msra.mxu0 0.0
        %1876 = vmatprep.subr.mxu0 0.0
        %1877 = vmatpush1.xpose.msra.mxu0 0.0
        %1878 = vmatprep.subr.mxu0 0.0
        %1879 = vmatpush1.xpose.msra.mxu0 0.0
        %1880 = vmatprep.subr.mxu0 0.0
        %1881 = vmatpush1.xpose.msra.mxu0 0.0
        %1882 = vmatprep.subr.mxu0 0.0
        %1883 = vmatpush1.xpose.msra.mxu0 0.0
        %1884 = vmatprep.subr.mxu0 0.0
        %1885 = vmatpush1.xpose.msra.mxu0 0.0
        %1886 = vmatprep.subr.mxu0 0.0
        %1887 = vmatpush1.xpose.msra.mxu0 0.0
        %1888 = vmatprep.subr.mxu0 0.0
        %1889 = vmatpush1.xpose.msra.mxu0 0.0
        %1890 = vmatprep.subr.mxu0 0.0
        %1891 = vmatpush1.xpose.msra.mxu0 0.0
        %1892 = vmatprep.subr.mxu0 0.0
        %1893 = vmatpush1.xpose.msra.mxu0 0.0
        %1894 = vmatprep.subr.mxu0 0.0
        %1895 = vmatpush1.xpose.msra.mxu0 0.0
        %1896 = vmatprep.subr.mxu0 0.0
        %1897 = vmatpush1.xpose.msra.mxu0 0.0
        %1898 = vmatprep.subr.mxu0 0.0
        %1899 = vmatpush1.xpose.msra.mxu0 0.0
        %1900 = vmatprep.subr.mxu0 0.0
        %1901 = vmatpush1.xpose.msra.mxu0 0.0
        %1902 = vmatprep.subr.mxu0 0.0
        %1903 = vmatpush1.xpose.msra.mxu0 0.0
        %1904 = vmatprep.subr.mxu0 0.0
        %1905 = vmatpush1.xpose.msra.mxu0 0.0
        %1906 = vmatprep.subr.mxu0 0.0
        %1907 = vmatpush1.xpose.msra.mxu0 0.0
        %1908 = vmatprep.subr.mxu0 0.0
        %1909 = vmatpush1.xpose.msra.mxu0 0.0
        %1910 = vmatprep.subr.mxu0 0.0
        %1911 = vmatpush1.xpose.msra.mxu0 0.0
        %1912 = vmatprep.subr.mxu0 0.0
        %1913 = vmatpush1.xpose.msra.mxu0 0.0
        %1914 = vmatprep.subr.mxu0 0.0
        %1915 = vmatpush1.xpose.msra.mxu0 0.0
        %1916 = vmatprep.subr.mxu0 0.0
        %1917 = vmatpush1.xpose.msra.mxu0 0.0
        %1918 = vmatprep.subr.mxu0 0.0
        %1919 = vmatpush1.xpose.msra.mxu0 0.0
        %1920 = vmatprep.subr.mxu0 0.0
        %1921 = vmatpush1.xpose.msra.mxu0 0.0
        %1922 = vmatprep.subr.mxu0 0.0
        %1923 = vmatpush1.xpose.msra.mxu0 0.0
        %1924 = vmatprep.mubr.f32.mxu0 0.0
        %v1925 = vand.u32 %v371, 4294901760
        %1926 = vmatmul.mubr.f32.gmra.mrb[0].mxu0 %v1925
        %v1927 = vpop.f32.mrb[0].mxu0
        %v1928 = vadd.f32 %v1852, %v1927
        %v1929 = vpop.f32.mrb[0].mxu0
        %1930 = vdwg.mxu0
        %1931 = vmatprep.subr.mxu0 0.0
        %v1932 = vand.u32 %v376, 4294901760
        %v1933 = vsub.f32 %v376, %v1932
        %1934 = vmatpush1.xpose.msra.mxu0 %v1933
        %1935 = vmatprep.subr.mxu0 0.0
        %1936 = vmatpush1.xpose.msra.mxu0 0.0
        %1937 = vmatprep.subr.mxu0 0.0
        %1938 = vmatpush1.xpose.msra.mxu0 0.0
        %1939 = vmatprep.subr.mxu0 0.0
        %1940 = vmatpush1.xpose.msra.mxu0 0.0
        %1941 = vmatprep.subr.mxu0 0.0
        %1942 = vmatpush1.xpose.msra.mxu0 0.0
        %1943 = vmatprep.subr.mxu0 0.0
        %1944 = vmatpush1.xpose.msra.mxu0 0.0
        %1945 = vmatprep.subr.mxu0 0.0
        %1946 = vmatpush1.xpose.msra.mxu0 0.0
        %1947 = vmatprep.subr.mxu0 0.0
        %1948 = vmatpush1.xpose.msra.mxu0 0.0
        %1949 = vmatprep.subr.mxu0 0.0
        %1950 = vmatpush1.xpose.msra.mxu0 0.0
        %1951 = vmatprep.subr.mxu0 0.0
        %1952 = vmatpush1.xpose.msra.mxu0 0.0
        %1953 = vmatprep.subr.mxu0 0.0
        %1954 = vmatpush1.xpose.msra.mxu0 0.0
        %1955 = vmatprep.subr.mxu0 0.0
        %1956 = vmatpush1.xpose.msra.mxu0 0.0
        %1957 = vmatprep.subr.mxu0 0.0
        %1958 = vmatpush1.xpose.msra.mxu0 0.0
        %1959 = vmatprep.subr.mxu0 0.0
        %1960 = vmatpush1.xpose.msra.mxu0 0.0
        %1961 = vmatprep.subr.mxu0 0.0
        %1962 = vmatpush1.xpose.msra.mxu0 0.0
        %1963 = vmatprep.subr.mxu0 0.0
        %1964 = vmatpush1.xpose.msra.mxu0 0.0
        %1965 = vmatprep.subr.mxu0 0.0
        %1966 = vmatpush1.xpose.msra.mxu0 0.0
        %1967 = vmatprep.subr.mxu0 0.0
        %1968 = vmatpush1.xpose.msra.mxu0 0.0
        %1969 = vmatprep.subr.mxu0 0.0
        %1970 = vmatpush1.xpose.msra.mxu0 0.0
        %1971 = vmatprep.subr.mxu0 0.0
        %1972 = vmatpush1.xpose.msra.mxu0 0.0
        %1973 = vmatprep.subr.mxu0 0.0
        %1974 = vmatpush1.xpose.msra.mxu0 0.0
        %1975 = vmatprep.subr.mxu0 0.0
        %1976 = vmatpush1.xpose.msra.mxu0 0.0
        %1977 = vmatprep.subr.mxu0 0.0
        %1978 = vmatpush1.xpose.msra.mxu0 0.0
        %1979 = vmatprep.subr.mxu0 0.0
        %1980 = vmatpush1.xpose.msra.mxu0 0.0
        %1981 = vmatprep.subr.mxu0 0.0
        %1982 = vmatpush1.xpose.msra.mxu0 0.0
        %1983 = vmatprep.subr.mxu0 0.0
        %1984 = vmatpush1.xpose.msra.mxu0 0.0
        %1985 = vmatprep.subr.mxu0 0.0
        %1986 = vmatpush1.xpose.msra.mxu0 0.0
        %1987 = vmatprep.subr.mxu0 0.0
        %1988 = vmatpush1.xpose.msra.mxu0 0.0
        %1989 = vmatprep.subr.mxu0 0.0
        %1990 = vmatpush1.xpose.msra.mxu0 0.0
        %1991 = vmatprep.subr.mxu0 0.0
        %1992 = vmatpush1.xpose.msra.mxu0 0.0
        %1993 = vmatprep.subr.mxu0 0.0
        %1994 = vmatpush1.xpose.msra.mxu0 0.0
        %1995 = vmatprep.subr.mxu0 0.0
        %1996 = vmatpush1.xpose.msra.mxu0 0.0
        %1997 = vmatprep.mubr.f32.mxu0 0.0
        %v1998 = vand.u32 %v371, 4294901760
        %v1999 = vsub.f32 %v371, %v1998
        %2000 = vmatmul.mubr.f32.gmra.mrb[0].mxu0 %v1999
        %v2001 = vpop.f32.mrb[0].mxu0
        %v2002 = vadd.f32 %v1928, %v2001
        %v2003 = vpop.f32.mrb[0].mxu0
        %2004 = vdwg.mxu0
        %2005 = vmatprep.subr.mxu0 0.0
        %v2006 = vand.u32 %v376, 4294901760
        %2007 = vmatpush1.xpose.msra.mxu0 %v2006
        %2008 = vmatprep.subr.mxu0 0.0
        %2009 = vmatpush1.xpose.msra.mxu0 0.0
        %2010 = vmatprep.subr.mxu0 0.0
        %2011 = vmatpush1.xpose.msra.mxu0 0.0
        %2012 = vmatprep.subr.mxu0 0.0
        %2013 = vmatpush1.xpose.msra.mxu0 0.0
        %2014 = vmatprep.subr.mxu0 0.0
        %2015 = vmatpush1.xpose.msra.mxu0 0.0
        %2016 = vmatprep.subr.mxu0 0.0
        %2017 = vmatpush1.xpose.msra.mxu0 0.0
        %2018 = vmatprep.subr.mxu0 0.0
        %2019 = vmatpush1.xpose.msra.mxu0 0.0
        %2020 = vmatprep.subr.mxu0 0.0
        %2021 = vmatpush1.xpose.msra.mxu0 0.0
        %2022 = vmatprep.subr.mxu0 0.0
        %2023 = vmatpush1.xpose.msra.mxu0 0.0
        %2024 = vmatprep.subr.mxu0 0.0
        %2025 = vmatpush1.xpose.msra.mxu0 0.0
        %2026 = vmatprep.subr.mxu0 0.0
        %2027 = vmatpush1.xpose.msra.mxu0 0.0
        %2028 = vmatprep.subr.mxu0 0.0
        %2029 = vmatpush1.xpose.msra.mxu0 0.0
        %2030 = vmatprep.subr.mxu0 0.0
        %2031 = vmatpush1.xpose.msra.mxu0 0.0
        %2032 = vmatprep.subr.mxu0 0.0
        %2033 = vmatpush1.xpose.msra.mxu0 0.0
        %2034 = vmatprep.subr.mxu0 0.0
        %2035 = vmatpush1.xpose.msra.mxu0 0.0
        %2036 = vmatprep.subr.mxu0 0.0
        %2037 = vmatpush1.xpose.msra.mxu0 0.0
        %2038 = vmatprep.subr.mxu0 0.0
        %2039 = vmatpush1.xpose.msra.mxu0 0.0
        %2040 = vmatprep.subr.mxu0 0.0
        %2041 = vmatpush1.xpose.msra.mxu0 0.0
        %2042 = vmatprep.subr.mxu0 0.0
        %2043 = vmatpush1.xpose.msra.mxu0 0.0
        %2044 = vmatprep.subr.mxu0 0.0
        %2045 = vmatpush1.xpose.msra.mxu0 0.0
        %2046 = vmatprep.subr.mxu0 0.0
        %2047 = vmatpush1.xpose.msra.mxu0 0.0
        %2048 = vmatprep.subr.mxu0 0.0
        %2049 = vmatpush1.xpose.msra.mxu0 0.0
        %2050 = vmatprep.subr.mxu0 0.0
        %2051 = vmatpush1.xpose.msra.mxu0 0.0
        %2052 = vmatprep.subr.mxu0 0.0
        %2053 = vmatpush1.xpose.msra.mxu0 0.0
        %2054 = vmatprep.subr.mxu0 0.0
        %2055 = vmatpush1.xpose.msra.mxu0 0.0
        %2056 = vmatprep.subr.mxu0 0.0
        %2057 = vmatpush1.xpose.msra.mxu0 0.0
        %2058 = vmatprep.subr.mxu0 0.0
        %2059 = vmatpush1.xpose.msra.mxu0 0.0
        %2060 = vmatprep.subr.mxu0 0.0
        %2061 = vmatpush1.xpose.msra.mxu0 0.0
        %2062 = vmatprep.subr.mxu0 0.0
        %2063 = vmatpush1.xpose.msra.mxu0 0.0
        %2064 = vmatprep.subr.mxu0 0.0
        %2065 = vmatpush1.xpose.msra.mxu0 0.0
        %2066 = vmatprep.subr.mxu0 0.0
        %2067 = vmatpush1.xpose.msra.mxu0 0.0
        %2068 = vmatprep.subr.mxu0 0.0
        %2069 = vmatpush1.xpose.msra.mxu0 0.0
        %2070 = vmatprep.mubr.f32.mxu0 0.0
        %v2071 = vand.u32 %v371, 4294901760
        %v2072 = vsub.f32 %v371, %v2071
        %v2073 = vand.u32 %v2072, 4294901760
        %2074 = vmatmul.mubr.f32.gmra.mrb[0].mxu0 %v2073
        %v2075 = vpop.f32.mrb[0].mxu0
        %v2076 = vadd.f32 %v2002, %v2075
        %v2077 = vpop.f32.mrb[0].mxu0
        %2078 = vdwg.mxu0
        %2079 = vmatprep.subr.mxu0 0.0
        %v2080 = vand.u32 %v376, 4294901760
        %v2081 = vsub.f32 %v376, %v2080
        %v2082 = vand.u32 %v2081, 4294901760
        %2083 = vmatpush1.xpose.msra.mxu0 %v2082
        %2084 = vmatprep.subr.mxu0 0.0
        %2085 = vmatpush1.xpose.msra.mxu0 0.0
        %2086 = vmatprep.subr.mxu0 0.0
        %2087 = vmatpush1.xpose.msra.mxu0 0.0
        %2088 = vmatprep.subr.mxu0 0.0
        %2089 = vmatpush1.xpose.msra.mxu0 0.0
        %2090 = vmatprep.subr.mxu0 0.0
        %2091 = vmatpush1.xpose.msra.mxu0 0.0
        %2092 = vmatprep.subr.mxu0 0.0
        %2093 = vmatpush1.xpose.msra.mxu0 0.0
        %2094 = vmatprep.subr.mxu0 0.0
        %2095 = vmatpush1.xpose.msra.mxu0 0.0
        %2096 = vmatprep.subr.mxu0 0.0
        %2097 = vmatpush1.xpose.msra.mxu0 0.0
        %2098 = vmatprep.subr.mxu0 0.0
        %2099 = vmatpush1.xpose.msra.mxu0 0.0
        %2100 = vmatprep.subr.mxu0 0.0
        %2101 = vmatpush1.xpose.msra.mxu0 0.0
        %2102 = vmatprep.subr.mxu0 0.0
        %2103 = vmatpush1.xpose.msra.mxu0 0.0
        %2104 = vmatprep.subr.mxu0 0.0
        %2105 = vmatpush1.xpose.msra.mxu0 0.0
        %2106 = vmatprep.subr.mxu0 0.0
        %2107 = vmatpush1.xpose.msra.mxu0 0.0
        %2108 = vmatprep.subr.mxu0 0.0
        %2109 = vmatpush1.xpose.msra.mxu0 0.0
        %2110 = vmatprep.subr.mxu0 0.0
        %2111 = vmatpush1.xpose.msra.mxu0 0.0
        %2112 = vmatprep.subr.mxu0 0.0
        %2113 = vmatpush1.xpose.msra.mxu0 0.0
        %2114 = vmatprep.subr.mxu0 0.0
        %2115 = vmatpush1.xpose.msra.mxu0 0.0
        %2116 = vmatprep.subr.mxu0 0.0
        %2117 = vmatpush1.xpose.msra.mxu0 0.0
        %2118 = vmatprep.subr.mxu0 0.0
        %2119 = vmatpush1.xpose.msra.mxu0 0.0
        %2120 = vmatprep.subr.mxu0 0.0
        %2121 = vmatpush1.xpose.msra.mxu0 0.0
        %2122 = vmatprep.subr.mxu0 0.0
        %2123 = vmatpush1.xpose.msra.mxu0 0.0
        %2124 = vmatprep.subr.mxu0 0.0
        %2125 = vmatpush1.xpose.msra.mxu0 0.0
        %2126 = vmatprep.subr.mxu0 0.0
        %2127 = vmatpush1.xpose.msra.mxu0 0.0
        %2128 = vmatprep.subr.mxu0 0.0
        %2129 = vmatpush1.xpose.msra.mxu0 0.0
        %2130 = vmatprep.subr.mxu0 0.0
        %2131 = vmatpush1.xpose.msra.mxu0 0.0
        %2132 = vmatprep.subr.mxu0 0.0
        %2133 = vmatpush1.xpose.msra.mxu0 0.0
        %2134 = vmatprep.subr.mxu0 0.0
        %2135 = vmatpush1.xpose.msra.mxu0 0.0
        %2136 = vmatprep.subr.mxu0 0.0
        %2137 = vmatpush1.xpose.msra.mxu0 0.0
        %2138 = vmatprep.subr.mxu0 0.0
        %2139 = vmatpush1.xpose.msra.mxu0 0.0
        %2140 = vmatprep.subr.mxu0 0.0
        %2141 = vmatpush1.xpose.msra.mxu0 0.0
        %2142 = vmatprep.subr.mxu0 0.0
        %2143 = vmatpush1.xpose.msra.mxu0 0.0
        %2144 = vmatprep.subr.mxu0 0.0
        %2145 = vmatpush1.xpose.msra.mxu0 0.0
        %2146 = vmatprep.mubr.f32.mxu0 0.0
        %v2147 = vand.u32 %v371, 4294901760
        %2148 = vmatmul.mubr.f32.gmra.mrb[0].mxu0 %v2147
        %v2149 = vpop.f32.mrb[0].mxu0
        %v2150 = vadd.f32 %v2076, %v2149
        %v2151 = vpop.f32.mrb[0].mxu0
        %2152 = vdwg.mxu0
        %2153 = vmatprep.subr.mxu0 0.0
        %v2154 = vand.u32 %v376, 4294901760
        %2155 = vmatpush1.xpose.msra.mxu0 %v2154
        %2156 = vmatprep.subr.mxu0 0.0
        %2157 = vmatpush1.xpose.msra.mxu0 0.0
        %2158 = vmatprep.subr.mxu0 0.0
        %2159 = vmatpush1.xpose.msra.mxu0 0.0
        %2160 = vmatprep.subr.mxu0 0.0
        %2161 = vmatpush1.xpose.msra.mxu0 0.0
        %2162 = vmatprep.subr.mxu0 0.0
        %2163 = vmatpush1.xpose.msra.mxu0 0.0
        %2164 = vmatprep.subr.mxu0 0.0
        %2165 = vmatpush1.xpose.msra.mxu0 0.0
        %2166 = vmatprep.subr.mxu0 0.0
        %2167 = vmatpush1.xpose.msra.mxu0 0.0
        %2168 = vmatprep.subr.mxu0 0.0
        %2169 = vmatpush1.xpose.msra.mxu0 0.0
        %2170 = vmatprep.subr.mxu0 0.0
        %2171 = vmatpush1.xpose.msra.mxu0 0.0
        %2172 = vmatprep.subr.mxu0 0.0
        %2173 = vmatpush1.xpose.msra.mxu0 0.0
        %2174 = vmatprep.subr.mxu0 0.0
        %2175 = vmatpush1.xpose.msra.mxu0 0.0
        %2176 = vmatprep.subr.mxu0 0.0
        %2177 = vmatpush1.xpose.msra.mxu0 0.0
        %2178 = vmatprep.subr.mxu0 0.0
        %2179 = vmatpush1.xpose.msra.mxu0 0.0
        %2180 = vmatprep.subr.mxu0 0.0
        %2181 = vmatpush1.xpose.msra.mxu0 0.0
        %2182 = vmatprep.subr.mxu0 0.0
        %2183 = vmatpush1.xpose.msra.mxu0 0.0
        %2184 = vmatprep.subr.mxu0 0.0
        %2185 = vmatpush1.xpose.msra.mxu0 0.0
        %2186 = vmatprep.subr.mxu0 0.0
        %2187 = vmatpush1.xpose.msra.mxu0 0.0
        %2188 = vmatprep.subr.mxu0 0.0
        %2189 = vmatpush1.xpose.msra.mxu0 0.0
        %2190 = vmatprep.subr.mxu0 0.0
        %2191 = vmatpush1.xpose.msra.mxu0 0.0
        %2192 = vmatprep.subr.mxu0 0.0
        %2193 = vmatpush1.xpose.msra.mxu0 0.0
        %2194 = vmatprep.subr.mxu0 0.0
        %2195 = vmatpush1.xpose.msra.mxu0 0.0
        %2196 = vmatprep.subr.mxu0 0.0
        %2197 = vmatpush1.xpose.msra.mxu0 0.0
        %2198 = vmatprep.subr.mxu0 0.0
        %2199 = vmatpush1.xpose.msra.mxu0 0.0
        %2200 = vmatprep.subr.mxu0 0.0
        %2201 = vmatpush1.xpose.msra.mxu0 0.0
        %2202 = vmatprep.subr.mxu0 0.0
        %2203 = vmatpush1.xpose.msra.mxu0 0.0
        %2204 = vmatprep.subr.mxu0 0.0
        %2205 = vmatpush1.xpose.msra.mxu0 0.0
        %2206 = vmatprep.subr.mxu0 0.0
        %2207 = vmatpush1.xpose.msra.mxu0 0.0
        %2208 = vmatprep.subr.mxu0 0.0
        %2209 = vmatpush1.xpose.msra.mxu0 0.0
        %2210 = vmatprep.subr.mxu0 0.0
        %2211 = vmatpush1.xpose.msra.mxu0 0.0
        %2212 = vmatprep.subr.mxu0 0.0
        %2213 = vmatpush1.xpose.msra.mxu0 0.0
        %2214 = vmatprep.subr.mxu0 0.0
        %2215 = vmatpush1.xpose.msra.mxu0 0.0
        %2216 = vmatprep.subr.mxu0 0.0
        %2217 = vmatpush1.xpose.msra.mxu0 0.0
        %2218 = vmatprep.mubr.f32.mxu0 0.0
        %v2219 = vand.u32 %v371, 4294901760
        %2220 = vmatmul.mubr.f32.gmra.mrb[0].mxu0 %v2219
        %v2221 = vpop.f32.mrb[0].mxu0
        %v2222 = vadd.f32 %v2150, %v2221
        %v2223 = vpop.f32.mrb[0].mxu0
        %2224 = vdwg.mxu0
        %v2225 = vand.u32 %v381, 4294901760
        %2226 = vmatprep.subr.mxu0 %v2225
        %v2227 = vand.u32 %v372, 4294901760
        %2228 = vmatpush1.xpose.msra.mxu0 %v2227
        %2229 = vmatprep.subr.mxu0 0.0
        %2230 = vmatpush1.xpose.msra.mxu0 0.0
        %2231 = vmatprep.subr.mxu0 0.0
        %2232 = vmatpush1.xpose.msra.mxu0 0.0
        %2233 = vmatprep.subr.mxu0 0.0
        %2234 = vmatpush1.xpose.msra.mxu0 0.0
        %2235 = vmatprep.subr.mxu0 0.0
        %2236 = vmatpush1.xpose.msra.mxu0 0.0
        %2237 = vmatprep.subr.mxu0 0.0
        %2238 = vmatpush1.xpose.msra.mxu0 0.0
        %2239 = vmatprep.subr.mxu0 0.0
        %2240 = vmatpush1.xpose.msra.mxu0 0.0
        %2241 = vmatprep.subr.mxu0 0.0
        %2242 = vmatpush1.xpose.msra.mxu0 0.0
        %2243 = vmatprep.subr.mxu0 0.0
        %2244 = vmatpush1.xpose.msra.mxu0 0.0
        %2245 = vmatprep.subr.mxu0 0.0
        %2246 = vmatpush1.xpose.msra.mxu0 0.0
        %2247 = vmatprep.subr.mxu0 0.0
        %2248 = vmatpush1.xpose.msra.mxu0 0.0
        %2249 = vmatprep.subr.mxu0 0.0
        %2250 = vmatpush1.xpose.msra.mxu0 0.0
        %2251 = vmatprep.subr.mxu0 0.0
        %2252 = vmatpush1.xpose.msra.mxu0 0.0
        %2253 = vmatprep.subr.mxu0 0.0
        %2254 = vmatpush1.xpose.msra.mxu0 0.0
        %2255 = vmatprep.subr.mxu0 0.0
        %2256 = vmatpush1.xpose.msra.mxu0 0.0
        %2257 = vmatprep.subr.mxu0 0.0
        %2258 = vmatpush1.xpose.msra.mxu0 0.0
        %2259 = vmatprep.subr.mxu0 0.0
        %2260 = vmatpush1.xpose.msra.mxu0 0.0
        %2261 = vmatprep.subr.mxu0 0.0
        %2262 = vmatpush1.xpose.msra.mxu0 0.0
        %2263 = vmatprep.subr.mxu0 0.0
        %2264 = vmatpush1.xpose.msra.mxu0 0.0
        %2265 = vmatprep.subr.mxu0 0.0
        %2266 = vmatpush1.xpose.msra.mxu0 0.0
        %2267 = vmatprep.subr.mxu0 0.0
        %2268 = vmatpush1.xpose.msra.mxu0 0.0
        %2269 = vmatprep.subr.mxu0 0.0
        %2270 = vmatpush1.xpose.msra.mxu0 0.0
        %2271 = vmatprep.subr.mxu0 0.0
        %2272 = vmatpush1.xpose.msra.mxu0 0.0
        %2273 = vmatprep.subr.mxu0 0.0
        %2274 = vmatpush1.xpose.msra.mxu0 0.0
        %2275 = vmatprep.subr.mxu0 0.0
        %2276 = vmatpush1.xpose.msra.mxu0 0.0
        %2277 = vmatprep.subr.mxu0 0.0
        %2278 = vmatpush1.xpose.msra.mxu0 0.0
        %2279 = vmatprep.subr.mxu0 0.0
        %2280 = vmatpush1.xpose.msra.mxu0 0.0
        %2281 = vmatprep.subr.mxu0 0.0
        %2282 = vmatpush1.xpose.msra.mxu0 0.0
        %2283 = vmatprep.subr.mxu0 0.0
        %2284 = vmatpush1.xpose.msra.mxu0 0.0
        %2285 = vmatprep.subr.mxu0 0.0
        %2286 = vmatpush1.xpose.msra.mxu0 0.0
        %2287 = vmatprep.subr.mxu0 0.0
        %2288 = vmatpush1.xpose.msra.mxu0 0.0
        %2289 = vmatprep.subr.mxu0 0.0
        %2290 = vmatpush1.xpose.msra.mxu0 0.0
        %v2291 = vand.u32 %v1302, 4294901760
        %v2292 = vsub.f32 %v1302, %v2291
        %v2293 = vand.u32 %v2292, 4294901760
        %v2294 = vsub.f32 %v2292, %v2293
        %v2295 = vand.u32 %v2294, 4294901760
        %2296 = vmatprep.mubr.f32.mxu0 %v2295
        %v2297 = vand.u32 %v370, 4294901760
        %v2298 = vsub.f32 %v370, %v2297
        %v2299 = vand.u32 %v2298, 4294901760
        %v2300 = vsub.f32 %v2298, %v2299
        %v2301 = vand.u32 %v2300, 4294901760
        %2302 = vmatmul.mubr.f32.gmra.mrb[0].mxu0 %v2301
        %v2303 = vpop.f32.mrb[0].mxu0
        %v2304 = vadd.f32 0.0, %v2303
        %v2305 = vpop.f32.mrb[0].mxu0
        %2306 = vdwg.mxu0
        %v2307 = vand.u32 %v381, 4294901760
        %v2308 = vsub.f32 %v381, %v2307
        %v2309 = vand.u32 %v2308, 4294901760
        %v2310 = vsub.f32 %v2308, %v2309
        %v2311 = vand.u32 %v2310, 4294901760
        %2312 = vmatprep.subr.mxu0 %v2311
        %v2313 = vand.u32 %v372, 4294901760
        %v2314 = vsub.f32 %v372, %v2313
        %v2315 = vand.u32 %v2314, 4294901760
        %v2316 = vsub.f32 %v2314, %v2315
        %v2317 = vand.u32 %v2316, 4294901760
        %2318 = vmatpush1.xpose.msra.mxu0 %v2317
        %2319 = vmatprep.subr.mxu0 0.0
        %2320 = vmatpush1.xpose.msra.mxu0 0.0
        %2321 = vmatprep.subr.mxu0 0.0
        %2322 = vmatpush1.xpose.msra.mxu0 0.0
        %2323 = vmatprep.subr.mxu0 0.0
        %2324 = vmatpush1.xpose.msra.mxu0 0.0
        %2325 = vmatprep.subr.mxu0 0.0
        %2326 = vmatpush1.xpose.msra.mxu0 0.0
        %2327 = vmatprep.subr.mxu0 0.0
        %2328 = vmatpush1.xpose.msra.mxu0 0.0
        %2329 = vmatprep.subr.mxu0 0.0
        %2330 = vmatpush1.xpose.msra.mxu0 0.0
        %2331 = vmatprep.subr.mxu0 0.0
        %2332 = vmatpush1.xpose.msra.mxu0 0.0
        %2333 = vmatprep.subr.mxu0 0.0
        %2334 = vmatpush1.xpose.msra.mxu0 0.0
        %2335 = vmatprep.subr.mxu0 0.0
        %2336 = vmatpush1.xpose.msra.mxu0 0.0
        %2337 = vmatprep.subr.mxu0 0.0
        %2338 = vmatpush1.xpose.msra.mxu0 0.0
        %2339 = vmatprep.subr.mxu0 0.0
        %2340 = vmatpush1.xpose.msra.mxu0 0.0
        %2341 = vmatprep.subr.mxu0 0.0
        %2342 = vmatpush1.xpose.msra.mxu0 0.0
        %2343 = vmatprep.subr.mxu0 0.0
        %2344 = vmatpush1.xpose.msra.mxu0 0.0
        %2345 = vmatprep.subr.mxu0 0.0
        %2346 = vmatpush1.xpose.msra.mxu0 0.0
        %2347 = vmatprep.subr.mxu0 0.0
        %2348 = vmatpush1.xpose.msra.mxu0 0.0
        %2349 = vmatprep.subr.mxu0 0.0
        %2350 = vmatpush1.xpose.msra.mxu0 0.0
        %2351 = vmatprep.subr.mxu0 0.0
        %2352 = vmatpush1.xpose.msra.mxu0 0.0
        %2353 = vmatprep.subr.mxu0 0.0
        %2354 = vmatpush1.xpose.msra.mxu0 0.0
        %2355 = vmatprep.subr.mxu0 0.0
        %2356 = vmatpush1.xpose.msra.mxu0 0.0
        %2357 = vmatprep.subr.mxu0 0.0
        %2358 = vmatpush1.xpose.msra.mxu0 0.0
        %2359 = vmatprep.subr.mxu0 0.0
        %2360 = vmatpush1.xpose.msra.mxu0 0.0
        %2361 = vmatprep.subr.mxu0 0.0
        %2362 = vmatpush1.xpose.msra.mxu0 0.0
        %2363 = vmatprep.subr.mxu0 0.0
        %2364 = vmatpush1.xpose.msra.mxu0 0.0
        %2365 = vmatprep.subr.mxu0 0.0
        %2366 = vmatpush1.xpose.msra.mxu0 0.0
        %2367 = vmatprep.subr.mxu0 0.0
        %2368 = vmatpush1.xpose.msra.mxu0 0.0
        %2369 = vmatprep.subr.mxu0 0.0
        %2370 = vmatpush1.xpose.msra.mxu0 0.0
        %2371 = vmatprep.subr.mxu0 0.0
        %2372 = vmatpush1.xpose.msra.mxu0 0.0
        %2373 = vmatprep.subr.mxu0 0.0
        %2374 = vmatpush1.xpose.msra.mxu0 0.0
        %2375 = vmatprep.subr.mxu0 0.0
        %2376 = vmatpush1.xpose.msra.mxu0 0.0
        %2377 = vmatprep.subr.mxu0 0.0
        %2378 = vmatpush1.xpose.msra.mxu0 0.0
        %2379 = vmatprep.subr.mxu0 0.0
        %2380 = vmatpush1.xpose.msra.mxu0 0.0
        %v2381 = vand.u32 %v1302, 4294901760
        %2382 = vmatprep.mubr.f32.mxu0 %v2381
        %v2383 = vand.u32 %v370, 4294901760
        %2384 = vmatmul.mubr.f32.gmra.mrb[0].mxu0 %v2383
        %v2385 = vpop.f32.mrb[0].mxu0
        %v2386 = vadd.f32 %v2304, %v2385
        %v2387 = vpop.f32.mrb[0].mxu0
        %2388 = vdwg.mxu0
        %v2389 = vand.u32 %v381, 4294901760
        %v2390 = vsub.f32 %v381, %v2389
        %2391 = vmatprep.subr.mxu0 %v2390
        %v2392 = vand.u32 %v372, 4294901760
        %v2393 = vsub.f32 %v372, %v2392
        %2394 = vmatpush1.xpose.msra.mxu0 %v2393
        %2395 = vmatprep.subr.mxu0 0.0
        %2396 = vmatpush1.xpose.msra.mxu0 0.0
        %2397 = vmatprep.subr.mxu0 0.0
        %2398 = vmatpush1.xpose.msra.mxu0 0.0
        %2399 = vmatprep.subr.mxu0 0.0
        %2400 = vmatpush1.xpose.msra.mxu0 0.0
        %2401 = vmatprep.subr.mxu0 0.0
        %2402 = vmatpush1.xpose.msra.mxu0 0.0
        %2403 = vmatprep.subr.mxu0 0.0
        %2404 = vmatpush1.xpose.msra.mxu0 0.0
        %2405 = vmatprep.subr.mxu0 0.0
        %2406 = vmatpush1.xpose.msra.mxu0 0.0
        %2407 = vmatprep.subr.mxu0 0.0
        %2408 = vmatpush1.xpose.msra.mxu0 0.0
        %2409 = vmatprep.subr.mxu0 0.0
        %2410 = vmatpush1.xpose.msra.mxu0 0.0
        %2411 = vmatprep.subr.mxu0 0.0
        %2412 = vmatpush1.xpose.msra.mxu0 0.0
        %2413 = vmatprep.subr.mxu0 0.0
        %2414 = vmatpush1.xpose.msra.mxu0 0.0
        %2415 = vmatprep.subr.mxu0 0.0
        %2416 = vmatpush1.xpose.msra.mxu0 0.0
        %2417 = vmatprep.subr.mxu0 0.0
        %2418 = vmatpush1.xpose.msra.mxu0 0.0
        %2419 = vmatprep.subr.mxu0 0.0
        %2420 = vmatpush1.xpose.msra.mxu0 0.0
        %2421 = vmatprep.subr.mxu0 0.0
        %2422 = vmatpush1.xpose.msra.mxu0 0.0
        %2423 = vmatprep.subr.mxu0 0.0
        %2424 = vmatpush1.xpose.msra.mxu0 0.0
        %2425 = vmatprep.subr.mxu0 0.0
        %2426 = vmatpush1.xpose.msra.mxu0 0.0
        %2427 = vmatprep.subr.mxu0 0.0
        %2428 = vmatpush1.xpose.msra.mxu0 0.0
        %2429 = vmatprep.subr.mxu0 0.0
        %2430 = vmatpush1.xpose.msra.mxu0 0.0
        %2431 = vmatprep.subr.mxu0 0.0
        %2432 = vmatpush1.xpose.msra.mxu0 0.0
        %2433 = vmatprep.subr.mxu0 0.0
        %2434 = vmatpush1.xpose.msra.mxu0 0.0
        %2435 = vmatprep.subr.mxu0 0.0
        %2436 = vmatpush1.xpose.msra.mxu0 0.0
        %2437 = vmatprep.subr.mxu0 0.0
        %2438 = vmatpush1.xpose.msra.mxu0 0.0
        %2439 = vmatprep.subr.mxu0 0.0
        %2440 = vmatpush1.xpose.msra.mxu0 0.0
        %2441 = vmatprep.subr.mxu0 0.0
        %2442 = vmatpush1.xpose.msra.mxu0 0.0
        %2443 = vmatprep.subr.mxu0 0.0
        %2444 = vmatpush1.xpose.msra.mxu0 0.0
        %2445 = vmatprep.subr.mxu0 0.0
        %2446 = vmatpush1.xpose.msra.mxu0 0.0
        %2447 = vmatprep.subr.mxu0 0.0
        %2448 = vmatpush1.xpose.msra.mxu0 0.0
        %2449 = vmatprep.subr.mxu0 0.0
        %2450 = vmatpush1.xpose.msra.mxu0 0.0
        %2451 = vmatprep.subr.mxu0 0.0
        %2452 = vmatpush1.xpose.msra.mxu0 0.0
        %2453 = vmatprep.subr.mxu0 0.0
        %2454 = vmatpush1.xpose.msra.mxu0 0.0
        %2455 = vmatprep.subr.mxu0 0.0
        %2456 = vmatpush1.xpose.msra.mxu0 0.0
        %v2457 = vand.u32 %v1302, 4294901760
        %v2458 = vsub.f32 %v1302, %v2457
        %2459 = vmatprep.mubr.f32.mxu0 %v2458
        %v2460 = vand.u32 %v370, 4294901760
        %v2461 = vsub.f32 %v370, %v2460
        %2462 = vmatmul.mubr.f32.gmra.mrb[0].mxu0 %v2461
        %v2463 = vpop.f32.mrb[0].mxu0
        %v2464 = vadd.f32 %v2386, %v2463
        %v2465 = vpop.f32.mrb[0].mxu0
        %2466 = vdwg.mxu0
        %v2467 = vand.u32 %v381, 4294901760
        %2468 = vmatprep.subr.mxu0 %v2467
        %v2469 = vand.u32 %v372, 4294901760
        %2470 = vmatpush1.xpose.msra.mxu0 %v2469
        %2471 = vmatprep.subr.mxu0 0.0
        %2472 = vmatpush1.xpose.msra.mxu0 0.0
        %2473 = vmatprep.subr.mxu0 0.0
        %2474 = vmatpush1.xpose.msra.mxu0 0.0
        %2475 = vmatprep.subr.mxu0 0.0
        %2476 = vmatpush1.xpose.msra.mxu0 0.0
        %2477 = vmatprep.subr.mxu0 0.0
        %2478 = vmatpush1.xpose.msra.mxu0 0.0
        %2479 = vmatprep.subr.mxu0 0.0
        %2480 = vmatpush1.xpose.msra.mxu0 0.0
        %2481 = vmatprep.subr.mxu0 0.0
        %2482 = vmatpush1.xpose.msra.mxu0 0.0
        %2483 = vmatprep.subr.mxu0 0.0
        %2484 = vmatpush1.xpose.msra.mxu0 0.0
        %2485 = vmatprep.subr.mxu0 0.0
        %2486 = vmatpush1.xpose.msra.mxu0 0.0
        %2487 = vmatprep.subr.mxu0 0.0
        %2488 = vmatpush1.xpose.msra.mxu0 0.0
        %2489 = vmatprep.subr.mxu0 0.0
        %2490 = vmatpush1.xpose.msra.mxu0 0.0
        %2491 = vmatprep.subr.mxu0 0.0
        %2492 = vmatpush1.xpose.msra.mxu0 0.0
        %2493 = vmatprep.subr.mxu0 0.0
        %2494 = vmatpush1.xpose.msra.mxu0 0.0
        %2495 = vmatprep.subr.mxu0 0.0
        %2496 = vmatpush1.xpose.msra.mxu0 0.0
        %2497 = vmatprep.subr.mxu0 0.0
        %2498 = vmatpush1.xpose.msra.mxu0 0.0
        %2499 = vmatprep.subr.mxu0 0.0
        %2500 = vmatpush1.xpose.msra.mxu0 0.0
        %2501 = vmatprep.subr.mxu0 0.0
        %2502 = vmatpush1.xpose.msra.mxu0 0.0
        %2503 = vmatprep.subr.mxu0 0.0
        %2504 = vmatpush1.xpose.msra.mxu0 0.0
        %2505 = vmatprep.subr.mxu0 0.0
        %2506 = vmatpush1.xpose.msra.mxu0 0.0
        %2507 = vmatprep.subr.mxu0 0.0
        %2508 = vmatpush1.xpose.msra.mxu0 0.0
        %2509 = vmatprep.subr.mxu0 0.0
        %2510 = vmatpush1.xpose.msra.mxu0 0.0
        %2511 = vmatprep.subr.mxu0 0.0
        %2512 = vmatpush1.xpose.msra.mxu0 0.0
        %2513 = vmatprep.subr.mxu0 0.0
        %2514 = vmatpush1.xpose.msra.mxu0 0.0
        %2515 = vmatprep.subr.mxu0 0.0
        %2516 = vmatpush1.xpose.msra.mxu0 0.0
        %2517 = vmatprep.subr.mxu0 0.0
        %2518 = vmatpush1.xpose.msra.mxu0 0.0
        %2519 = vmatprep.subr.mxu0 0.0
        %2520 = vmatpush1.xpose.msra.mxu0 0.0
        %2521 = vmatprep.subr.mxu0 0.0
        %2522 = vmatpush1.xpose.msra.mxu0 0.0
        %2523 = vmatprep.subr.mxu0 0.0
        %2524 = vmatpush1.xpose.msra.mxu0 0.0
        %2525 = vmatprep.subr.mxu0 0.0
        %2526 = vmatpush1.xpose.msra.mxu0 0.0
        %2527 = vmatprep.subr.mxu0 0.0
        %2528 = vmatpush1.xpose.msra.mxu0 0.0
        %2529 = vmatprep.subr.mxu0 0.0
        %2530 = vmatpush1.xpose.msra.mxu0 0.0
        %2531 = vmatprep.subr.mxu0 0.0
        %2532 = vmatpush1.xpose.msra.mxu0 0.0
        %v2533 = vand.u32 %v1302, 4294901760
        %v2534 = vsub.f32 %v1302, %v2533
        %v2535 = vand.u32 %v2534, 4294901760
        %2536 = vmatprep.mubr.f32.mxu0 %v2535
        %v2537 = vand.u32 %v370, 4294901760
        %v2538 = vsub.f32 %v370, %v2537
        %v2539 = vand.u32 %v2538, 4294901760
        %2540 = vmatmul.mubr.f32.gmra.mrb[0].mxu0 %v2539
        %v2541 = vpop.f32.mrb[0].mxu0
        %v2542 = vadd.f32 %v2464, %v2541
        %v2543 = vpop.f32.mrb[0].mxu0
        %2544 = vdwg.mxu0
        %v2545 = vand.u32 %v381, 4294901760
        %v2546 = vsub.f32 %v381, %v2545
        %v2547 = vand.u32 %v2546, 4294901760
        %2548 = vmatprep.subr.mxu0 %v2547
        %v2549 = vand.u32 %v372, 4294901760
        %v2550 = vsub.f32 %v372, %v2549
        %v2551 = vand.u32 %v2550, 4294901760
        %2552 = vmatpush1.xpose.msra.mxu0 %v2551
        %2553 = vmatprep.subr.mxu0 0.0
        %2554 = vmatpush1.xpose.msra.mxu0 0.0
        %2555 = vmatprep.subr.mxu0 0.0
        %2556 = vmatpush1.xpose.msra.mxu0 0.0
        %2557 = vmatprep.subr.mxu0 0.0
        %2558 = vmatpush1.xpose.msra.mxu0 0.0
        %2559 = vmatprep.subr.mxu0 0.0
        %2560 = vmatpush1.xpose.msra.mxu0 0.0
        %2561 = vmatprep.subr.mxu0 0.0
        %2562 = vmatpush1.xpose.msra.mxu0 0.0
        %2563 = vmatprep.subr.mxu0 0.0
        %2564 = vmatpush1.xpose.msra.mxu0 0.0
        %2565 = vmatprep.subr.mxu0 0.0
        %2566 = vmatpush1.xpose.msra.mxu0 0.0
        %2567 = vmatprep.subr.mxu0 0.0
        %2568 = vmatpush1.xpose.msra.mxu0 0.0
        %2569 = vmatprep.subr.mxu0 0.0
        %2570 = vmatpush1.xpose.msra.mxu0 0.0
        %2571 = vmatprep.subr.mxu0 0.0
        %2572 = vmatpush1.xpose.msra.mxu0 0.0
        %2573 = vmatprep.subr.mxu0 0.0
        %2574 = vmatpush1.xpose.msra.mxu0 0.0
        %2575 = vmatprep.subr.mxu0 0.0
        %2576 = vmatpush1.xpose.msra.mxu0 0.0
        %2577 = vmatprep.subr.mxu0 0.0
        %2578 = vmatpush1.xpose.msra.mxu0 0.0
        %2579 = vmatprep.subr.mxu0 0.0
        %2580 = vmatpush1.xpose.msra.mxu0 0.0
        %2581 = vmatprep.subr.mxu0 0.0
        %2582 = vmatpush1.xpose.msra.mxu0 0.0
        %2583 = vmatprep.subr.mxu0 0.0
        %2584 = vmatpush1.xpose.msra.mxu0 0.0
        %2585 = vmatprep.subr.mxu0 0.0
        %2586 = vmatpush1.xpose.msra.mxu0 0.0
        %2587 = vmatprep.subr.mxu0 0.0
        %2588 = vmatpush1.xpose.msra.mxu0 0.0
        %2589 = vmatprep.subr.mxu0 0.0
        %2590 = vmatpush1.xpose.msra.mxu0 0.0
        %2591 = vmatprep.subr.mxu0 0.0
        %2592 = vmatpush1.xpose.msra.mxu0 0.0
        %2593 = vmatprep.subr.mxu0 0.0
        %2594 = vmatpush1.xpose.msra.mxu0 0.0
        %2595 = vmatprep.subr.mxu0 0.0
        %2596 = vmatpush1.xpose.msra.mxu0 0.0
        %2597 = vmatprep.subr.mxu0 0.0
        %2598 = vmatpush1.xpose.msra.mxu0 0.0
        %2599 = vmatprep.subr.mxu0 0.0
        %2600 = vmatpush1.xpose.msra.mxu0 0.0
        %2601 = vmatprep.subr.mxu0 0.0
        %2602 = vmatpush1.xpose.msra.mxu0 0.0
        %2603 = vmatprep.subr.mxu0 0.0
        %2604 = vmatpush1.xpose.msra.mxu0 0.0
        %2605 = vmatprep.subr.mxu0 0.0
        %2606 = vmatpush1.xpose.msra.mxu0 0.0
        %2607 = vmatprep.subr.mxu0 0.0
        %2608 = vmatpush1.xpose.msra.mxu0 0.0
        %2609 = vmatprep.subr.mxu0 0.0
        %2610 = vmatpush1.xpose.msra.mxu0 0.0
        %2611 = vmatprep.subr.mxu0 0.0
        %2612 = vmatpush1.xpose.msra.mxu0 0.0
        %2613 = vmatprep.subr.mxu0 0.0
        %2614 = vmatpush1.xpose.msra.mxu0 0.0
        %v2615 = vand.u32 %v1302, 4294901760
        %2616 = vmatprep.mubr.f32.mxu0 %v2615
        %v2617 = vand.u32 %v370, 4294901760
        %2618 = vmatmul.mubr.f32.gmra.mrb[0].mxu0 %v2617
        %v2619 = vpop.f32.mrb[0].mxu0
        %v2620 = vadd.f32 %v2542, %v2619
        %v2621 = vpop.f32.mrb[0].mxu0
        %2622 = vdwg.mxu0
        %v2623 = vand.u32 %v381, 4294901760
        %2624 = vmatprep.subr.mxu0 %v2623
        %v2625 = vand.u32 %v372, 4294901760
        %2626 = vmatpush1.xpose.msra.mxu0 %v2625
        %2627 = vmatprep.subr.mxu0 0.0
        %2628 = vmatpush1.xpose.msra.mxu0 0.0
        %2629 = vmatprep.subr.mxu0 0.0
        %2630 = vmatpush1.xpose.msra.mxu0 0.0
        %2631 = vmatprep.subr.mxu0 0.0
        %2632 = vmatpush1.xpose.msra.mxu0 0.0
        %2633 = vmatprep.subr.mxu0 0.0
        %2634 = vmatpush1.xpose.msra.mxu0 0.0
        %2635 = vmatprep.subr.mxu0 0.0
        %2636 = vmatpush1.xpose.msra.mxu0 0.0
        %2637 = vmatprep.subr.mxu0 0.0
        %2638 = vmatpush1.xpose.msra.mxu0 0.0
        %2639 = vmatprep.subr.mxu0 0.0
        %2640 = vmatpush1.xpose.msra.mxu0 0.0
        %2641 = vmatprep.subr.mxu0 0.0
        %2642 = vmatpush1.xpose.msra.mxu0 0.0
        %2643 = vmatprep.subr.mxu0 0.0
        %2644 = vmatpush1.xpose.msra.mxu0 0.0
        %2645 = vmatprep.subr.mxu0 0.0
        %2646 = vmatpush1.xpose.msra.mxu0 0.0
        %2647 = vmatprep.subr.mxu0 0.0
        %2648 = vmatpush1.xpose.msra.mxu0 0.0
        %2649 = vmatprep.subr.mxu0 0.0
        %2650 = vmatpush1.xpose.msra.mxu0 0.0
        %2651 = vmatprep.subr.mxu0 0.0
        %2652 = vmatpush1.xpose.msra.mxu0 0.0
        %2653 = vmatprep.subr.mxu0 0.0
        %2654 = vmatpush1.xpose.msra.mxu0 0.0
        %2655 = vmatprep.subr.mxu0 0.0
        %2656 = vmatpush1.xpose.msra.mxu0 0.0
        %2657 = vmatprep.subr.mxu0 0.0
        %2658 = vmatpush1.xpose.msra.mxu0 0.0
        %2659 = vmatprep.subr.mxu0 0.0
        %2660 = vmatpush1.xpose.msra.mxu0 0.0
        %2661 = vmatprep.subr.mxu0 0.0
        %2662 = vmatpush1.xpose.msra.mxu0 0.0
        %2663 = vmatprep.subr.mxu0 0.0
        %2664 = vmatpush1.xpose.msra.mxu0 0.0
        %2665 = vmatprep.subr.mxu0 0.0
        %2666 = vmatpush1.xpose.msra.mxu0 0.0
        %2667 = vmatprep.subr.mxu0 0.0
        %2668 = vmatpush1.xpose.msra.mxu0 0.0
        %2669 = vmatprep.subr.mxu0 0.0
        %2670 = vmatpush1.xpose.msra.mxu0 0.0
        %2671 = vmatprep.subr.mxu0 0.0
        %2672 = vmatpush1.xpose.msra.mxu0 0.0
        %2673 = vmatprep.subr.mxu0 0.0
        %2674 = vmatpush1.xpose.msra.mxu0 0.0
        %2675 = vmatprep.subr.mxu0 0.0
        %2676 = vmatpush1.xpose.msra.mxu0 0.0
        %2677 = vmatprep.subr.mxu0 0.0
        %2678 = vmatpush1.xpose.msra.mxu0 0.0
        %2679 = vmatprep.subr.mxu0 0.0
        %2680 = vmatpush1.xpose.msra.mxu0 0.0
        %2681 = vmatprep.subr.mxu0 0.0
        %2682 = vmatpush1.xpose.msra.mxu0 0.0
        %2683 = vmatprep.subr.mxu0 0.0
        %2684 = vmatpush1.xpose.msra.mxu0 0.0
        %2685 = vmatprep.subr.mxu0 0.0
        %2686 = vmatpush1.xpose.msra.mxu0 0.0
        %2687 = vmatprep.subr.mxu0 0.0
        %2688 = vmatpush1.xpose.msra.mxu0 0.0
        %v2689 = vand.u32 %v1302, 4294901760
        %2690 = vmatprep.mubr.f32.mxu0 %v2689
        %v2691 = vand.u32 %v370, 4294901760
        %2692 = vmatmul.mubr.f32.gmra.mrb[0].mxu0 %v2691
        %v2693 = vpop.f32.mrb[0].mxu0
        %v2694 = vadd.f32 %v2620, %v2693
        %v2695 = vpop.f32.mrb[0].mxu0
        %2696 = vdwg.mxu0
        %2697 = vmatprep.subr.mxu0 0.0
        %v2698 = vand.u32 %v373, 4294901760
        %2699 = vmatpush1.xpose.msra.mxu0 %v2698
        %2700 = vmatprep.subr.mxu0 0.0
        %2701 = vmatpush1.xpose.msra.mxu0 0.0
        %2702 = vmatprep.subr.mxu0 0.0
        %2703 = vmatpush1.xpose.msra.mxu0 0.0
        %2704 = vmatprep.subr.mxu0 0.0
        %2705 = vmatpush1.xpose.msra.mxu0 0.0
        %2706 = vmatprep.subr.mxu0 0.0
        %2707 = vmatpush1.xpose.msra.mxu0 0.0
        %2708 = vmatprep.subr.mxu0 0.0
        %2709 = vmatpush1.xpose.msra.mxu0 0.0
        %2710 = vmatprep.subr.mxu0 0.0
        %2711 = vmatpush1.xpose.msra.mxu0 0.0
        %2712 = vmatprep.subr.mxu0 0.0
        %2713 = vmatpush1.xpose.msra.mxu0 0.0
        %2714 = vmatprep.subr.mxu0 0.0
        %2715 = vmatpush1.xpose.msra.mxu0 0.0
        %2716 = vmatprep.subr.mxu0 0.0
        %2717 = vmatpush1.xpose.msra.mxu0 0.0
        %2718 = vmatprep.subr.mxu0 0.0
        %2719 = vmatpush1.xpose.msra.mxu0 0.0
        %2720 = vmatprep.subr.mxu0 0.0
        %2721 = vmatpush1.xpose.msra.mxu0 0.0
        %2722 = vmatprep.subr.mxu0 0.0
        %2723 = vmatpush1.xpose.msra.mxu0 0.0
        %2724 = vmatprep.subr.mxu0 0.0
        %2725 = vmatpush1.xpose.msra.mxu0 0.0
        %2726 = vmatprep.subr.mxu0 0.0
        %2727 = vmatpush1.xpose.msra.mxu0 0.0
        %2728 = vmatprep.subr.mxu0 0.0
        %2729 = vmatpush1.xpose.msra.mxu0 0.0
        %2730 = vmatprep.subr.mxu0 0.0
        %2731 = vmatpush1.xpose.msra.mxu0 0.0
        %2732 = vmatprep.subr.mxu0 0.0
        %2733 = vmatpush1.xpose.msra.mxu0 0.0
        %2734 = vmatprep.subr.mxu0 0.0
        %2735 = vmatpush1.xpose.msra.mxu0 0.0
        %2736 = vmatprep.subr.mxu0 0.0
        %2737 = vmatpush1.xpose.msra.mxu0 0.0
        %2738 = vmatprep.subr.mxu0 0.0
        %2739 = vmatpush1.xpose.msra.mxu0 0.0
        %2740 = vmatprep.subr.mxu0 0.0
        %2741 = vmatpush1.xpose.msra.mxu0 0.0
        %2742 = vmatprep.subr.mxu0 0.0
        %2743 = vmatpush1.xpose.msra.mxu0 0.0
        %2744 = vmatprep.subr.mxu0 0.0
        %2745 = vmatpush1.xpose.msra.mxu0 0.0
        %2746 = vmatprep.subr.mxu0 0.0
        %2747 = vmatpush1.xpose.msra.mxu0 0.0
        %2748 = vmatprep.subr.mxu0 0.0
        %2749 = vmatpush1.xpose.msra.mxu0 0.0
        %2750 = vmatprep.subr.mxu0 0.0
        %2751 = vmatpush1.xpose.msra.mxu0 0.0
        %2752 = vmatprep.subr.mxu0 0.0
        %2753 = vmatpush1.xpose.msra.mxu0 0.0
        %2754 = vmatprep.subr.mxu0 0.0
        %2755 = vmatpush1.xpose.msra.mxu0 0.0
        %2756 = vmatprep.subr.mxu0 0.0
        %2757 = vmatpush1.xpose.msra.mxu0 0.0
        %2758 = vmatprep.subr.mxu0 0.0
        %2759 = vmatpush1.xpose.msra.mxu0 0.0
        %2760 = vmatprep.subr.mxu0 0.0
        %2761 = vmatpush1.xpose.msra.mxu0 0.0
        %2762 = vmatprep.mubr.f32.mxu0 0.0
        %v2763 = vand.u32 %v371, 4294901760
        %v2764 = vsub.f32 %v371, %v2763
        %v2765 = vand.u32 %v2764, 4294901760
        %v2766 = vsub.f32 %v2764, %v2765
        %v2767 = vand.u32 %v2766, 4294901760
        %2768 = vmatmul.mubr.f32.gmra.mrb[0].mxu0 %v2767
        %v2769 = vpop.f32.mrb[0].mxu0
        %v2770 = vadd.f32 %v2694, %v2769
        %v2771 = vpop.f32.mrb[0].mxu0
        %2772 = vdwg.mxu0
        %2773 = vmatprep.subr.mxu0 0.0
        %v2774 = vand.u32 %v373, 4294901760
        %v2775 = vsub.f32 %v373, %v2774
        %v2776 = vand.u32 %v2775, 4294901760
        %v2777 = vsub.f32 %v2775, %v2776
        %v2778 = vand.u32 %v2777, 4294901760
        %2779 = vmatpush1.xpose.msra.mxu0 %v2778
        %2780 = vmatprep.subr.mxu0 0.0
        %2781 = vmatpush1.xpose.msra.mxu0 0.0
        %2782 = vmatprep.subr.mxu0 0.0
        %2783 = vmatpush1.xpose.msra.mxu0 0.0
        %2784 = vmatprep.subr.mxu0 0.0
        %2785 = vmatpush1.xpose.msra.mxu0 0.0
        %2786 = vmatprep.subr.mxu0 0.0
        %2787 = vmatpush1.xpose.msra.mxu0 0.0
        %2788 = vmatprep.subr.mxu0 0.0
        %2789 = vmatpush1.xpose.msra.mxu0 0.0
        %2790 = vmatprep.subr.mxu0 0.0
        %2791 = vmatpush1.xpose.msra.mxu0 0.0
        %2792 = vmatprep.subr.mxu0 0.0
        %2793 = vmatpush1.xpose.msra.mxu0 0.0
        %2794 = vmatprep.subr.mxu0 0.0
        %2795 = vmatpush1.xpose.msra.mxu0 0.0
        %2796 = vmatprep.subr.mxu0 0.0
        %2797 = vmatpush1.xpose.msra.mxu0 0.0
        %2798 = vmatprep.subr.mxu0 0.0
        %2799 = vmatpush1.xpose.msra.mxu0 0.0
        %2800 = vmatprep.subr.mxu0 0.0
        %2801 = vmatpush1.xpose.msra.mxu0 0.0
        %2802 = vmatprep.subr.mxu0 0.0
        %2803 = vmatpush1.xpose.msra.mxu0 0.0
        %2804 = vmatprep.subr.mxu0 0.0
        %2805 = vmatpush1.xpose.msra.mxu0 0.0
        %2806 = vmatprep.subr.mxu0 0.0
        %2807 = vmatpush1.xpose.msra.mxu0 0.0
        %2808 = vmatprep.subr.mxu0 0.0
        %2809 = vmatpush1.xpose.msra.mxu0 0.0
        %2810 = vmatprep.subr.mxu0 0.0
        %2811 = vmatpush1.xpose.msra.mxu0 0.0
        %2812 = vmatprep.subr.mxu0 0.0
        %2813 = vmatpush1.xpose.msra.mxu0 0.0
        %2814 = vmatprep.subr.mxu0 0.0
        %2815 = vmatpush1.xpose.msra.mxu0 0.0
        %2816 = vmatprep.subr.mxu0 0.0
        %2817 = vmatpush1.xpose.msra.mxu0 0.0
        %2818 = vmatprep.subr.mxu0 0.0
        %2819 = vmatpush1.xpose.msra.mxu0 0.0
        %2820 = vmatprep.subr.mxu0 0.0
        %2821 = vmatpush1.xpose.msra.mxu0 0.0
        %2822 = vmatprep.subr.mxu0 0.0
        %2823 = vmatpush1.xpose.msra.mxu0 0.0
        %2824 = vmatprep.subr.mxu0 0.0
        %2825 = vmatpush1.xpose.msra.mxu0 0.0
        %2826 = vmatprep.subr.mxu0 0.0
        %2827 = vmatpush1.xpose.msra.mxu0 0.0
        %2828 = vmatprep.subr.mxu0 0.0
        %2829 = vmatpush1.xpose.msra.mxu0 0.0
        %2830 = vmatprep.subr.mxu0 0.0
        %2831 = vmatpush1.xpose.msra.mxu0 0.0
        %2832 = vmatprep.subr.mxu0 0.0
        %2833 = vmatpush1.xpose.msra.mxu0 0.0
        %2834 = vmatprep.subr.mxu0 0.0
        %2835 = vmatpush1.xpose.msra.mxu0 0.0
        %2836 = vmatprep.subr.mxu0 0.0
        %2837 = vmatpush1.xpose.msra.mxu0 0.0
        %2838 = vmatprep.subr.mxu0 0.0
        %2839 = vmatpush1.xpose.msra.mxu0 0.0
        %2840 = vmatprep.subr.mxu0 0.0
        %2841 = vmatpush1.xpose.msra.mxu0 0.0
        %2842 = vmatprep.mubr.f32.mxu0 0.0
        %v2843 = vand.u32 %v371, 4294901760
        %2844 = vmatmul.mubr.f32.gmra.mrb[0].mxu0 %v2843
        %v2845 = vpop.f32.mrb[0].mxu0
        %v2846 = vadd.f32 %v2770, %v2845
        %v2847 = vpop.f32.mrb[0].mxu0
        %2848 = vdwg.mxu0
        %2849 = vmatprep.subr.mxu0 0.0
        %v2850 = vand.u32 %v373, 4294901760
        %v2851 = vsub.f32 %v373, %v2850
        %2852 = vmatpush1.xpose.msra.mxu0 %v2851
        %2853 = vmatprep.subr.mxu0 0.0
        %2854 = vmatpush1.xpose.msra.mxu0 0.0
        %2855 = vmatprep.subr.mxu0 0.0
        %2856 = vmatpush1.xpose.msra.mxu0 0.0
        %2857 = vmatprep.subr.mxu0 0.0
        %2858 = vmatpush1.xpose.msra.mxu0 0.0
        %2859 = vmatprep.subr.mxu0 0.0
        %2860 = vmatpush1.xpose.msra.mxu0 0.0
        %2861 = vmatprep.subr.mxu0 0.0
        %2862 = vmatpush1.xpose.msra.mxu0 0.0
        %2863 = vmatprep.subr.mxu0 0.0
        %2864 = vmatpush1.xpose.msra.mxu0 0.0
        %2865 = vmatprep.subr.mxu0 0.0
        %2866 = vmatpush1.xpose.msra.mxu0 0.0
        %2867 = vmatprep.subr.mxu0 0.0
        %2868 = vmatpush1.xpose.msra.mxu0 0.0
        %2869 = vmatprep.subr.mxu0 0.0
        %2870 = vmatpush1.xpose.msra.mxu0 0.0
        %2871 = vmatprep.subr.mxu0 0.0
        %2872 = vmatpush1.xpose.msra.mxu0 0.0
        %2873 = vmatprep.subr.mxu0 0.0
        %2874 = vmatpush1.xpose.msra.mxu0 0.0
        %2875 = vmatprep.subr.mxu0 0.0
        %2876 = vmatpush1.xpose.msra.mxu0 0.0
        %2877 = vmatprep.subr.mxu0 0.0
        %2878 = vmatpush1.xpose.msra.mxu0 0.0
        %2879 = vmatprep.subr.mxu0 0.0
        %2880 = vmatpush1.xpose.msra.mxu0 0.0
        %2881 = vmatprep.subr.mxu0 0.0
        %2882 = vmatpush1.xpose.msra.mxu0 0.0
        %2883 = vmatprep.subr.mxu0 0.0
        %2884 = vmatpush1.xpose.msra.mxu0 0.0
        %2885 = vmatprep.subr.mxu0 0.0
        %2886 = vmatpush1.xpose.msra.mxu0 0.0
        %2887 = vmatprep.subr.mxu0 0.0
        %2888 = vmatpush1.xpose.msra.mxu0 0.0
        %2889 = vmatprep.subr.mxu0 0.0
        %2890 = vmatpush1.xpose.msra.mxu0 0.0
        %2891 = vmatprep.subr.mxu0 0.0
        %2892 = vmatpush1.xpose.msra.mxu0 0.0
        %2893 = vmatprep.subr.mxu0 0.0
        %2894 = vmatpush1.xpose.msra.mxu0 0.0
        %2895 = vmatprep.subr.mxu0 0.0
        %2896 = vmatpush1.xpose.msra.mxu0 0.0
        %2897 = vmatprep.subr.mxu0 0.0
        %2898 = vmatpush1.xpose.msra.mxu0 0.0
        %2899 = vmatprep.subr.mxu0 0.0
        %2900 = vmatpush1.xpose.msra.mxu0 0.0
        %2901 = vmatprep.subr.mxu0 0.0
        %2902 = vmatpush1.xpose.msra.mxu0 0.0
        %2903 = vmatprep.subr.mxu0 0.0
        %2904 = vmatpush1.xpose.msra.mxu0 0.0
        %2905 = vmatprep.subr.mxu0 0.0
        %2906 = vmatpush1.xpose.msra.mxu0 0.0
        %2907 = vmatprep.subr.mxu0 0.0
        %2908 = vmatpush1.xpose.msra.mxu0 0.0
        %2909 = vmatprep.subr.mxu0 0.0
        %2910 = vmatpush1.xpose.msra.mxu0 0.0
        %2911 = vmatprep.subr.mxu0 0.0
        %2912 = vmatpush1.xpose.msra.mxu0 0.0
        %2913 = vmatprep.subr.mxu0 0.0
        %2914 = vmatpush1.xpose.msra.mxu0 0.0
        %2915 = vmatprep.mubr.f32.mxu0 0.0
        %v2916 = vand.u32 %v371, 4294901760
        %v2917 = vsub.f32 %v371, %v2916
        %2918 = vmatmul.mubr.f32.gmra.mrb[0].mxu0 %v2917
        %v2919 = vpop.f32.mrb[0].mxu0
        %v2920 = vadd.f32 %v2846, %v2919
        %v2921 = vpop.f32.mrb[0].mxu0
        %2922 = vdwg.mxu0
        %2923 = vmatprep.subr.mxu0 0.0
        %v2924 = vand.u32 %v373, 4294901760
        %2925 = vmatpush1.xpose.msra.mxu0 %v2924
        %2926 = vmatprep.subr.mxu0 0.0
        %2927 = vmatpush1.xpose.msra.mxu0 0.0
        %2928 = vmatprep.subr.mxu0 0.0
        %2929 = vmatpush1.xpose.msra.mxu0 0.0
        %2930 = vmatprep.subr.mxu0 0.0
        %2931 = vmatpush1.xpose.msra.mxu0 0.0
        %2932 = vmatprep.subr.mxu0 0.0
        %2933 = vmatpush1.xpose.msra.mxu0 0.0
        %2934 = vmatprep.subr.mxu0 0.0
        %2935 = vmatpush1.xpose.msra.mxu0 0.0
        %2936 = vmatprep.subr.mxu0 0.0
        %2937 = vmatpush1.xpose.msra.mxu0 0.0
        %2938 = vmatprep.subr.mxu0 0.0
        %2939 = vmatpush1.xpose.msra.mxu0 0.0
        %2940 = vmatprep.subr.mxu0 0.0
        %2941 = vmatpush1.xpose.msra.mxu0 0.0
        %2942 = vmatprep.subr.mxu0 0.0
        %2943 = vmatpush1.xpose.msra.mxu0 0.0
        %2944 = vmatprep.subr.mxu0 0.0
        %2945 = vmatpush1.xpose.msra.mxu0 0.0
        %2946 = vmatprep.subr.mxu0 0.0
        %2947 = vmatpush1.xpose.msra.mxu0 0.0
        %2948 = vmatprep.subr.mxu0 0.0
        %2949 = vmatpush1.xpose.msra.mxu0 0.0
        %2950 = vmatprep.subr.mxu0 0.0
        %2951 = vmatpush1.xpose.msra.mxu0 0.0
        %2952 = vmatprep.subr.mxu0 0.0
        %2953 = vmatpush1.xpose.msra.mxu0 0.0
        %2954 = vmatprep.subr.mxu0 0.0
        %2955 = vmatpush1.xpose.msra.mxu0 0.0
        %2956 = vmatprep.subr.mxu0 0.0
        %2957 = vmatpush1.xpose.msra.mxu0 0.0
        %2958 = vmatprep.subr.mxu0 0.0
        %2959 = vmatpush1.xpose.msra.mxu0 0.0
        %2960 = vmatprep.subr.mxu0 0.0
        %2961 = vmatpush1.xpose.msra.mxu0 0.0
        %2962 = vmatprep.subr.mxu0 0.0
        %2963 = vmatpush1.xpose.msra.mxu0 0.0
        %2964 = vmatprep.subr.mxu0 0.0
        %2965 = vmatpush1.xpose.msra.mxu0 0.0
        %2966 = vmatprep.subr.mxu0 0.0
        %2967 = vmatpush1.xpose.msra.mxu0 0.0
        %2968 = vmatprep.subr.mxu0 0.0
        %2969 = vmatpush1.xpose.msra.mxu0 0.0
        %2970 = vmatprep.subr.mxu0 0.0
        %2971 = vmatpush1.xpose.msra.mxu0 0.0
        %2972 = vmatprep.subr.mxu0 0.0
        %2973 = vmatpush1.xpose.msra.mxu0 0.0
        %2974 = vmatprep.subr.mxu0 0.0
        %2975 = vmatpush1.xpose.msra.mxu0 0.0
        %2976 = vmatprep.subr.mxu0 0.0
        %2977 = vmatpush1.xpose.msra.mxu0 0.0
        %2978 = vmatprep.subr.mxu0 0.0
        %2979 = vmatpush1.xpose.msra.mxu0 0.0
        %2980 = vmatprep.subr.mxu0 0.0
        %2981 = vmatpush1.xpose.msra.mxu0 0.0
        %2982 = vmatprep.subr.mxu0 0.0
        %2983 = vmatpush1.xpose.msra.mxu0 0.0
        %2984 = vmatprep.subr.mxu0 0.0
        %2985 = vmatpush1.xpose.msra.mxu0 0.0
        %2986 = vmatprep.subr.mxu0 0.0
        %2987 = vmatpush1.xpose.msra.mxu0 0.0
        %2988 = vmatprep.mubr.f32.mxu0 0.0
        %v2989 = vand.u32 %v371, 4294901760
        %v2990 = vsub.f32 %v371, %v2989
        %v2991 = vand.u32 %v2990, 4294901760
        %2992 = vmatmul.mubr.f32.gmra.mrb[0].mxu0 %v2991
        %v2993 = vpop.f32.mrb[0].mxu0
        %v2994 = vadd.f32 %v2920, %v2993
        %v2995 = vpop.f32.mrb[0].mxu0
        %2996 = vdwg.mxu0
        %2997 = vmatprep.subr.mxu0 0.0
        %v2998 = vand.u32 %v373, 4294901760
        %v2999 = vsub.f32 %v373, %v2998
        %v3000 = vand.u32 %v2999, 4294901760
        %3001 = vmatpush1.xpose.msra.mxu0 %v3000
        %3002 = vmatprep.subr.mxu0 0.0
        %3003 = vmatpush1.xpose.msra.mxu0 0.0
        %3004 = vmatprep.subr.mxu0 0.0
        %3005 = vmatpush1.xpose.msra.mxu0 0.0
        %3006 = vmatprep.subr.mxu0 0.0
        %3007 = vmatpush1.xpose.msra.mxu0 0.0
        %3008 = vmatprep.subr.mxu0 0.0
        %3009 = vmatpush1.xpose.msra.mxu0 0.0
        %3010 = vmatprep.subr.mxu0 0.0
        %3011 = vmatpush1.xpose.msra.mxu0 0.0
        %3012 = vmatprep.subr.mxu0 0.0
        %3013 = vmatpush1.xpose.msra.mxu0 0.0
        %3014 = vmatprep.subr.mxu0 0.0
        %3015 = vmatpush1.xpose.msra.mxu0 0.0
        %3016 = vmatprep.subr.mxu0 0.0
        %3017 = vmatpush1.xpose.msra.mxu0 0.0
        %3018 = vmatprep.subr.mxu0 0.0
        %3019 = vmatpush1.xpose.msra.mxu0 0.0
        %3020 = vmatprep.subr.mxu0 0.0
        %3021 = vmatpush1.xpose.msra.mxu0 0.0
        %3022 = vmatprep.subr.mxu0 0.0
        %3023 = vmatpush1.xpose.msra.mxu0 0.0
        %3024 = vmatprep.subr.mxu0 0.0
        %3025 = vmatpush1.xpose.msra.mxu0 0.0
        %3026 = vmatprep.subr.mxu0 0.0
        %3027 = vmatpush1.xpose.msra.mxu0 0.0
        %3028 = vmatprep.subr.mxu0 0.0
        %3029 = vmatpush1.xpose.msra.mxu0 0.0
        %3030 = vmatprep.subr.mxu0 0.0
        %3031 = vmatpush1.xpose.msra.mxu0 0.0
        %3032 = vmatprep.subr.mxu0 0.0
        %3033 = vmatpush1.xpose.msra.mxu0 0.0
        %3034 = vmatprep.subr.mxu0 0.0
        %3035 = vmatpush1.xpose.msra.mxu0 0.0
        %3036 = vmatprep.subr.mxu0 0.0
        %3037 = vmatpush1.xpose.msra.mxu0 0.0
        %3038 = vmatprep.subr.mxu0 0.0
        %3039 = vmatpush1.xpose.msra.mxu0 0.0
        %3040 = vmatprep.subr.mxu0 0.0
        %3041 = vmatpush1.xpose.msra.mxu0 0.0
        %3042 = vmatprep.subr.mxu0 0.0
        %3043 = vmatpush1.xpose.msra.mxu0 0.0
        %3044 = vmatprep.subr.mxu0 0.0
        %3045 = vmatpush1.xpose.msra.mxu0 0.0
        %3046 = vmatprep.subr.mxu0 0.0
        %3047 = vmatpush1.xpose.msra.mxu0 0.0
        %3048 = vmatprep.subr.mxu0 0.0
        %3049 = vmatpush1.xpose.msra.mxu0 0.0
        %3050 = vmatprep.subr.mxu0 0.0
        %3051 = vmatpush1.xpose.msra.mxu0 0.0
        %3052 = vmatprep.subr.mxu0 0.0
        %3053 = vmatpush1.xpose.msra.mxu0 0.0
        %3054 = vmatprep.subr.mxu0 0.0
        %3055 = vmatpush1.xpose.msra.mxu0 0.0
        %3056 = vmatprep.subr.mxu0 0.0
        %3057 = vmatpush1.xpose.msra.mxu0 0.0
        %3058 = vmatprep.subr.mxu0 0.0
        %3059 = vmatpush1.xpose.msra.mxu0 0.0
        %3060 = vmatprep.subr.mxu0 0.0
        %3061 = vmatpush1.xpose.msra.mxu0 0.0
        %3062 = vmatprep.subr.mxu0 0.0
        %3063 = vmatpush1.xpose.msra.mxu0 0.0
        %3064 = vmatprep.mubr.f32.mxu0 0.0
        %v3065 = vand.u32 %v371, 4294901760
        %3066 = vmatmul.mubr.f32.gmra.mrb[0].mxu0 %v3065
        %v3067 = vpop.f32.mrb[0].mxu0
        %v3068 = vadd.f32 %v2994, %v3067
        %v3069 = vpop.f32.mrb[0].mxu0
        %3070 = vdwg.mxu0
        %3071 = vmatprep.subr.mxu0 0.0
        %v3072 = vand.u32 %v373, 4294901760
        %3073 = vmatpush1.xpose.msra.mxu0 %v3072
        %3074 = vmatprep.subr.mxu0 0.0
        %3075 = vmatpush1.xpose.msra.mxu0 0.0
        %3076 = vmatprep.subr.mxu0 0.0
        %3077 = vmatpush1.xpose.msra.mxu0 0.0
        %3078 = vmatprep.subr.mxu0 0.0
        %3079 = vmatpush1.xpose.msra.mxu0 0.0
        %3080 = vmatprep.subr.mxu0 0.0
        %3081 = vmatpush1.xpose.msra.mxu0 0.0
        %3082 = vmatprep.subr.mxu0 0.0
        %3083 = vmatpush1.xpose.msra.mxu0 0.0
        %3084 = vmatprep.subr.mxu0 0.0
        %3085 = vmatpush1.xpose.msra.mxu0 0.0
        %3086 = vmatprep.subr.mxu0 0.0
        %3087 = vmatpush1.xpose.msra.mxu0 0.0
        %3088 = vmatprep.subr.mxu0 0.0
        %3089 = vmatpush1.xpose.msra.mxu0 0.0
        %3090 = vmatprep.subr.mxu0 0.0
        %3091 = vmatpush1.xpose.msra.mxu0 0.0
        %3092 = vmatprep.subr.mxu0 0.0
        %3093 = vmatpush1.xpose.msra.mxu0 0.0
        %3094 = vmatprep.subr.mxu0 0.0
        %3095 = vmatpush1.xpose.msra.mxu0 0.0
        %3096 = vmatprep.subr.mxu0 0.0
        %3097 = vmatpush1.xpose.msra.mxu0 0.0
        %3098 = vmatprep.subr.mxu0 0.0
        %3099 = vmatpush1.xpose.msra.mxu0 0.0
        %3100 = vmatprep.subr.mxu0 0.0
        %3101 = vmatpush1.xpose.msra.mxu0 0.0
        %3102 = vmatprep.subr.mxu0 0.0
        %3103 = vmatpush1.xpose.msra.mxu0 0.0
        %3104 = vmatprep.subr.mxu0 0.0
        %3105 = vmatpush1.xpose.msra.mxu0 0.0
        %3106 = vmatprep.subr.mxu0 0.0
        %3107 = vmatpush1.xpose.msra.mxu0 0.0
        %3108 = vmatprep.subr.mxu0 0.0
        %3109 = vmatpush1.xpose.msra.mxu0 0.0
        %3110 = vmatprep.subr.mxu0 0.0
        %3111 = vmatpush1.xpose.msra.mxu0 0.0
        %3112 = vmatprep.subr.mxu0 0.0
        %3113 = vmatpush1.xpose.msra.mxu0 0.0
        %3114 = vmatprep.subr.mxu0 0.0
        %3115 = vmatpush1.xpose.msra.mxu0 0.0
        %3116 = vmatprep.subr.mxu0 0.0
        %3117 = vmatpush1.xpose.msra.mxu0 0.0
        %3118 = vmatprep.subr.mxu0 0.0
        %3119 = vmatpush1.xpose.msra.mxu0 0.0
        %3120 = vmatprep.subr.mxu0 0.0
        %3121 = vmatpush1.xpose.msra.mxu0 0.0
        %3122 = vmatprep.subr.mxu0 0.0
        %3123 = vmatpush1.xpose.msra.mxu0 0.0
        %3124 = vmatprep.subr.mxu0 0.0
        %3125 = vmatpush1.xpose.msra.mxu0 0.0
        %3126 = vmatprep.subr.mxu0 0.0
        %3127 = vmatpush1.xpose.msra.mxu0 0.0
        %3128 = vmatprep.subr.mxu0 0.0
        %3129 = vmatpush1.xpose.msra.mxu0 0.0
        %3130 = vmatprep.subr.mxu0 0.0
        %3131 = vmatpush1.xpose.msra.mxu0 0.0
        %3132 = vmatprep.subr.mxu0 0.0
        %3133 = vmatpush1.xpose.msra.mxu0 0.0
        %3134 = vmatprep.subr.mxu0 0.0
        %3135 = vmatpush1.xpose.msra.mxu0 0.0
        %3136 = vmatprep.mubr.f32.mxu0 0.0
        %v3137 = vand.u32 %v371, 4294901760
        %3138 = vmatmul.mubr.f32.gmra.mrb[0].mxu0 %v3137
        %v3139 = vpop.f32.mrb[0].mxu0
        %v3140 = vadd.f32 %v3068, %v3139
        %v3141 = vpop.f32.mrb[0].mxu0
        %3142 = vdwg.mxu0
        %v3143 = vand.u32 %v1305, 4294901760
        %3144 = vmatprep.subr.mxu0 %v3143
        %v3145 = vand.u32 %v375, 4294901760
        %3146 = vmatpush1.xpose.msra.mxu0 %v3145
        %3147 = vmatprep.subr.mxu0 0.0
        %3148 = vmatpush1.xpose.msra.mxu0 0.0
        %3149 = vmatprep.subr.mxu0 0.0
        %3150 = vmatpush1.xpose.msra.mxu0 0.0
        %3151 = vmatprep.subr.mxu0 0.0
        %3152 = vmatpush1.xpose.msra.mxu0 0.0
        %3153 = vmatprep.subr.mxu0 0.0
        %3154 = vmatpush1.xpose.msra.mxu0 0.0
        %3155 = vmatprep.subr.mxu0 0.0
        %3156 = vmatpush1.xpose.msra.mxu0 0.0
        %3157 = vmatprep.subr.mxu0 0.0
        %3158 = vmatpush1.xpose.msra.mxu0 0.0
        %3159 = vmatprep.subr.mxu0 0.0
        %3160 = vmatpush1.xpose.msra.mxu0 0.0
        %3161 = vmatprep.subr.mxu0 0.0
        %3162 = vmatpush1.xpose.msra.mxu0 0.0
        %3163 = vmatprep.subr.mxu0 0.0
        %3164 = vmatpush1.xpose.msra.mxu0 0.0
        %3165 = vmatprep.subr.mxu0 0.0
        %3166 = vmatpush1.xpose.msra.mxu0 0.0
        %3167 = vmatprep.subr.mxu0 0.0
        %3168 = vmatpush1.xpose.msra.mxu0 0.0
        %3169 = vmatprep.subr.mxu0 0.0
        %3170 = vmatpush1.xpose.msra.mxu0 0.0
        %3171 = vmatprep.subr.mxu0 0.0
        %3172 = vmatpush1.xpose.msra.mxu0 0.0
        %3173 = vmatprep.subr.mxu0 0.0
        %3174 = vmatpush1.xpose.msra.mxu0 0.0
        %3175 = vmatprep.subr.mxu0 0.0
        %3176 = vmatpush1.xpose.msra.mxu0 0.0
        %3177 = vmatprep.subr.mxu0 0.0
        %3178 = vmatpush1.xpose.msra.mxu0 0.0
        %3179 = vmatprep.subr.mxu0 0.0
        %3180 = vmatpush1.xpose.msra.mxu0 0.0
        %3181 = vmatprep.subr.mxu0 0.0
        %3182 = vmatpush1.xpose.msra.mxu0 0.0
        %3183 = vmatprep.subr.mxu0 0.0
        %3184 = vmatpush1.xpose.msra.mxu0 0.0
        %3185 = vmatprep.subr.mxu0 0.0
        %3186 = vmatpush1.xpose.msra.mxu0 0.0
        %3187 = vmatprep.subr.mxu0 0.0
        %3188 = vmatpush1.xpose.msra.mxu0 0.0
        %3189 = vmatprep.subr.mxu0 0.0
        %3190 = vmatpush1.xpose.msra.mxu0 0.0
        %3191 = vmatprep.subr.mxu0 0.0
        %3192 = vmatpush1.xpose.msra.mxu0 0.0
        %3193 = vmatprep.subr.mxu0 0.0
        %3194 = vmatpush1.xpose.msra.mxu0 0.0
        %3195 = vmatprep.subr.mxu0 0.0
        %3196 = vmatpush1.xpose.msra.mxu0 0.0
        %3197 = vmatprep.subr.mxu0 0.0
        %3198 = vmatpush1.xpose.msra.mxu0 0.0
        %3199 = vmatprep.subr.mxu0 0.0
        %3200 = vmatpush1.xpose.msra.mxu0 0.0
        %3201 = vmatprep.subr.mxu0 0.0
        %3202 = vmatpush1.xpose.msra.mxu0 0.0
        %3203 = vmatprep.subr.mxu0 0.0
        %3204 = vmatpush1.xpose.msra.mxu0 0.0
        %3205 = vmatprep.subr.mxu0 0.0
        %3206 = vmatpush1.xpose.msra.mxu0 0.0
        %3207 = vmatprep.subr.mxu0 0.0
        %3208 = vmatpush1.xpose.msra.mxu0 0.0
        %v3209 = vand.u32 %v378, 4294901760
        %v3210 = vsub.f32 %v378, %v3209
        %v3211 = vand.u32 %v3210, 4294901760
        %v3212 = vsub.f32 %v3210, %v3211
        %v3213 = vand.u32 %v3212, 4294901760
        %3214 = vmatprep.mubr.f32.mxu0 %v3213
        %v3215 = vand.u32 %v364, 4294901760
        %v3216 = vsub.f32 %v364, %v3215
        %v3217 = vand.u32 %v3216, 4294901760
        %v3218 = vsub.f32 %v3216, %v3217
        %v3219 = vand.u32 %v3218, 4294901760
        %3220 = vmatmul.mubr.f32.gmra.mrb[0].mxu0 %v3219
        %v3221 = vpop.f32.mrb[0].mxu0
        %v3222 = vadd.f32 %v3140, %v3221
        %v3223 = vpop.f32.mrb[0].mxu0
        %3224 = vdwg.mxu0
        %v3225 = vand.u32 %v1305, 4294901760
        %v3226 = vsub.f32 %v1305, %v3225
        %v3227 = vand.u32 %v3226, 4294901760
        %v3228 = vsub.f32 %v3226, %v3227
        %v3229 = vand.u32 %v3228, 4294901760
        %3230 = vmatprep.subr.mxu0 %v3229
        %v3231 = vand.u32 %v375, 4294901760
        %v3232 = vsub.f32 %v375, %v3231
        %v3233 = vand.u32 %v3232, 4294901760
        %v3234 = vsub.f32 %v3232, %v3233
        %v3235 = vand.u32 %v3234, 4294901760
        %3236 = vmatpush1.xpose.msra.mxu0 %v3235
        %3237 = vmatprep.subr.mxu0 0.0
        %3238 = vmatpush1.xpose.msra.mxu0 0.0
        %3239 = vmatprep.subr.mxu0 0.0
        %3240 = vmatpush1.xpose.msra.mxu0 0.0
        %3241 = vmatprep.subr.mxu0 0.0
        %3242 = vmatpush1.xpose.msra.mxu0 0.0
        %3243 = vmatprep.subr.mxu0 0.0
        %3244 = vmatpush1.xpose.msra.mxu0 0.0
        %3245 = vmatprep.subr.mxu0 0.0
        %3246 = vmatpush1.xpose.msra.mxu0 0.0
        %3247 = vmatprep.subr.mxu0 0.0
        %3248 = vmatpush1.xpose.msra.mxu0 0.0
        %3249 = vmatprep.subr.mxu0 0.0
        %3250 = vmatpush1.xpose.msra.mxu0 0.0
        %3251 = vmatprep.subr.mxu0 0.0
        %3252 = vmatpush1.xpose.msra.mxu0 0.0
        %3253 = vmatprep.subr.mxu0 0.0
        %3254 = vmatpush1.xpose.msra.mxu0 0.0
        %3255 = vmatprep.subr.mxu0 0.0
        %3256 = vmatpush1.xpose.msra.mxu0 0.0
        %3257 = vmatprep.subr.mxu0 0.0
        %3258 = vmatpush1.xpose.msra.mxu0 0.0
        %3259 = vmatprep.subr.mxu0 0.0
        %3260 = vmatpush1.xpose.msra.mxu0 0.0
        %3261 = vmatprep.subr.mxu0 0.0
        %3262 = vmatpush1.xpose.msra.mxu0 0.0
        %3263 = vmatprep.subr.mxu0 0.0
        %3264 = vmatpush1.xpose.msra.mxu0 0.0
        %3265 = vmatprep.subr.mxu0 0.0
        %3266 = vmatpush1.xpose.msra.mxu0 0.0
        %3267 = vmatprep.subr.mxu0 0.0
        %3268 = vmatpush1.xpose.msra.mxu0 0.0
        %3269 = vmatprep.subr.mxu0 0.0
        %3270 = vmatpush1.xpose.msra.mxu0 0.0
        %3271 = vmatprep.subr.mxu0 0.0
        %3272 = vmatpush1.xpose.msra.mxu0 0.0
        %3273 = vmatprep.subr.mxu0 0.0
        %3274 = vmatpush1.xpose.msra.mxu0 0.0
        %3275 = vmatprep.subr.mxu0 0.0
        %3276 = vmatpush1.xpose.msra.mxu0 0.0
        %3277 = vmatprep.subr.mxu0 0.0
        %3278 = vmatpush1.xpose.msra.mxu0 0.0
        %3279 = vmatprep.subr.mxu0 0.0
        %3280 = vmatpush1.xpose.msra.mxu0 0.0
        %3281 = vmatprep.subr.mxu0 0.0
        %3282 = vmatpush1.xpose.msra.mxu0 0.0
        %3283 = vmatprep.subr.mxu0 0.0
        %3284 = vmatpush1.xpose.msra.mxu0 0.0
        %3285 = vmatprep.subr.mxu0 0.0
        %3286 = vmatpush1.xpose.msra.mxu0 0.0
        %3287 = vmatprep.subr.mxu0 0.0
        %3288 = vmatpush1.xpose.msra.mxu0 0.0
        %3289 = vmatprep.subr.mxu0 0.0
        %3290 = vmatpush1.xpose.msra.mxu0 0.0
        %3291 = vmatprep.subr.mxu0 0.0
        %3292 = vmatpush1.xpose.msra.mxu0 0.0
        %3293 = vmatprep.subr.mxu0 0.0
        %3294 = vmatpush1.xpose.msra.mxu0 0.0
        %3295 = vmatprep.subr.mxu0 0.0
        %3296 = vmatpush1.xpose.msra.mxu0 0.0
        %3297 = vmatprep.subr.mxu0 0.0
        %3298 = vmatpush1.xpose.msra.mxu0 0.0
        %v3299 = vand.u32 %v378, 4294901760
        %3300 = vmatprep.mubr.f32.mxu0 %v3299
        %v3301 = vand.u32 %v364, 4294901760
        %3302 = vmatmul.mubr.f32.gmra.mrb[0].mxu0 %v3301
        %v3303 = vpop.f32.mrb[0].mxu0
        %v3304 = vadd.f32 %v3222, %v3303
        %v3305 = vpop.f32.mrb[0].mxu0
        %3306 = vdwg.mxu0
        %v3307 = vand.u32 %v1305, 4294901760
        %v3308 = vsub.f32 %v1305, %v3307
        %3309 = vmatprep.subr.mxu0 %v3308
        %v3310 = vand.u32 %v375, 4294901760
        %v3311 = vsub.f32 %v375, %v3310
        %3312 = vmatpush1.xpose.msra.mxu0 %v3311
        %3313 = vmatprep.subr.mxu0 0.0
        %3314 = vmatpush1.xpose.msra.mxu0 0.0
        %3315 = vmatprep.subr.mxu0 0.0
        %3316 = vmatpush1.xpose.msra.mxu0 0.0
        %3317 = vmatprep.subr.mxu0 0.0
        %3318 = vmatpush1.xpose.msra.mxu0 0.0
        %3319 = vmatprep.subr.mxu0 0.0
        %3320 = vmatpush1.xpose.msra.mxu0 0.0
        %3321 = vmatprep.subr.mxu0 0.0
        %3322 = vmatpush1.xpose.msra.mxu0 0.0
        %3323 = vmatprep.subr.mxu0 0.0
        %3324 = vmatpush1.xpose.msra.mxu0 0.0
        %3325 = vmatprep.subr.mxu0 0.0
        %3326 = vmatpush1.xpose.msra.mxu0 0.0
        %3327 = vmatprep.subr.mxu0 0.0
        %3328 = vmatpush1.xpose.msra.mxu0 0.0
        %3329 = vmatprep.subr.mxu0 0.0
        %3330 = vmatpush1.xpose.msra.mxu0 0.0
        %3331 = vmatprep.subr.mxu0 0.0
        %3332 = vmatpush1.xpose.msra.mxu0 0.0
        %3333 = vmatprep.subr.mxu0 0.0
        %3334 = vmatpush1.xpose.msra.mxu0 0.0
        %3335 = vmatprep.subr.mxu0 0.0
        %3336 = vmatpush1.xpose.msra.mxu0 0.0
        %3337 = vmatprep.subr.mxu0 0.0
        %3338 = vmatpush1.xpose.msra.mxu0 0.0
        %3339 = vmatprep.subr.mxu0 0.0
        %3340 = vmatpush1.xpose.msra.mxu0 0.0
        %3341 = vmatprep.subr.mxu0 0.0
        %3342 = vmatpush1.xpose.msra.mxu0 0.0
        %3343 = vmatprep.subr.mxu0 0.0
        %3344 = vmatpush1.xpose.msra.mxu0 0.0
        %3345 = vmatprep.subr.mxu0 0.0
        %3346 = vmatpush1.xpose.msra.mxu0 0.0
        %3347 = vmatprep.subr.mxu0 0.0
        %3348 = vmatpush1.xpose.msra.mxu0 0.0
        %3349 = vmatprep.subr.mxu0 0.0
        %3350 = vmatpush1.xpose.msra.mxu0 0.0
        %3351 = vmatprep.subr.mxu0 0.0
        %3352 = vmatpush1.xpose.msra.mxu0 0.0
        %3353 = vmatprep.subr.mxu0 0.0
        %3354 = vmatpush1.xpose.msra.mxu0 0.0
        %3355 = vmatprep.subr.mxu0 0.0
        %3356 = vmatpush1.xpose.msra.mxu0 0.0
        %3357 = vmatprep.subr.mxu0 0.0
        %3358 = vmatpush1.xpose.msra.mxu0 0.0
        %3359 = vmatprep.subr.mxu0 0.0
        %3360 = vmatpush1.xpose.msra.mxu0 0.0
        %3361 = vmatprep.subr.mxu0 0.0
        %3362 = vmatpush1.xpose.msra.mxu0 0.0
        %3363 = vmatprep.subr.mxu0 0.0
        %3364 = vmatpush1.xpose.msra.mxu0 0.0
        %3365 = vmatprep.subr.mxu0 0.0
        %3366 = vmatpush1.xpose.msra.mxu0 0.0
        %3367 = vmatprep.subr.mxu0 0.0
        %3368 = vmatpush1.xpose.msra.mxu0 0.0
        %3369 = vmatprep.subr.mxu0 0.0
        %3370 = vmatpush1.xpose.msra.mxu0 0.0
        %3371 = vmatprep.subr.mxu0 0.0
        %3372 = vmatpush1.xpose.msra.mxu0 0.0
        %3373 = vmatprep.subr.mxu0 0.0
        %3374 = vmatpush1.xpose.msra.mxu0 0.0
        %v3375 = vand.u32 %v378, 4294901760
        %v3376 = vsub.f32 %v378, %v3375
        %3377 = vmatprep.mubr.f32.mxu0 %v3376
        %v3378 = vand.u32 %v364, 4294901760
        %v3379 = vsub.f32 %v364, %v3378
        %3380 = vmatmul.mubr.f32.gmra.mrb[0].mxu0 %v3379
        %v3381 = vpop.f32.mrb[0].mxu0
        %v3382 = vadd.f32 %v3304, %v3381
        %v3383 = vpop.f32.mrb[0].mxu0
        %3384 = vdwg.mxu0
        %v3385 = vand.u32 %v1305, 4294901760
        %3386 = vmatprep.subr.mxu0 %v3385
        %v3387 = vand.u32 %v375, 4294901760
        %3388 = vmatpush1.xpose.msra.mxu0 %v3387
        %3389 = vmatprep.subr.mxu0 0.0
        %3390 = vmatpush1.xpose.msra.mxu0 0.0
        %3391 = vmatprep.subr.mxu0 0.0
        %3392 = vmatpush1.xpose.msra.mxu0 0.0
        %3393 = vmatprep.subr.mxu0 0.0
        %3394 = vmatpush1.xpose.msra.mxu0 0.0
        %3395 = vmatprep.subr.mxu0 0.0
        %3396 = vmatpush1.xpose.msra.mxu0 0.0
        %3397 = vmatprep.subr.mxu0 0.0
        %3398 = vmatpush1.xpose.msra.mxu0 0.0
        %3399 = vmatprep.subr.mxu0 0.0
        %3400 = vmatpush1.xpose.msra.mxu0 0.0
        %3401 = vmatprep.subr.mxu0 0.0
        %3402 = vmatpush1.xpose.msra.mxu0 0.0
        %3403 = vmatprep.subr.mxu0 0.0
        %3404 = vmatpush1.xpose.msra.mxu0 0.0
        %3405 = vmatprep.subr.mxu0 0.0
        %3406 = vmatpush1.xpose.msra.mxu0 0.0
        %3407 = vmatprep.subr.mxu0 0.0
        %3408 = vmatpush1.xpose.msra.mxu0 0.0
        %3409 = vmatprep.subr.mxu0 0.0
        %3410 = vmatpush1.xpose.msra.mxu0 0.0
        %3411 = vmatprep.subr.mxu0 0.0
        %3412 = vmatpush1.xpose.msra.mxu0 0.0
        %3413 = vmatprep.subr.mxu0 0.0
        %3414 = vmatpush1.xpose.msra.mxu0 0.0
        %3415 = vmatprep.subr.mxu0 0.0
        %3416 = vmatpush1.xpose.msra.mxu0 0.0
        %3417 = vmatprep.subr.mxu0 0.0
        %3418 = vmatpush1.xpose.msra.mxu0 0.0
        %3419 = vmatprep.subr.mxu0 0.0
        %3420 = vmatpush1.xpose.msra.mxu0 0.0
        %3421 = vmatprep.subr.mxu0 0.0
        %3422 = vmatpush1.xpose.msra.mxu0 0.0
        %3423 = vmatprep.subr.mxu0 0.0
        %3424 = vmatpush1.xpose.msra.mxu0 0.0
        %3425 = vmatprep.subr.mxu0 0.0
        %3426 = vmatpush1.xpose.msra.mxu0 0.0
        %3427 = vmatprep.subr.mxu0 0.0
        %3428 = vmatpush1.xpose.msra.mxu0 0.0
        %3429 = vmatprep.subr.mxu0 0.0
        %3430 = vmatpush1.xpose.msra.mxu0 0.0
        %3431 = vmatprep.subr.mxu0 0.0
        %3432 = vmatpush1.xpose.msra.mxu0 0.0
        %3433 = vmatprep.subr.mxu0 0.0
        %3434 = vmatpush1.xpose.msra.mxu0 0.0
        %3435 = vmatprep.subr.mxu0 0.0
        %3436 = vmatpush1.xpose.msra.mxu0 0.0
        %3437 = vmatprep.subr.mxu0 0.0
        %3438 = vmatpush1.xpose.msra.mxu0 0.0
        %3439 = vmatprep.subr.mxu0 0.0
        %3440 = vmatpush1.xpose.msra.mxu0 0.0
        %3441 = vmatprep.subr.mxu0 0.0
        %3442 = vmatpush1.xpose.msra.mxu0 0.0
        %3443 = vmatprep.subr.mxu0 0.0
        %3444 = vmatpush1.xpose.msra.mxu0 0.0
        %3445 = vmatprep.subr.mxu0 0.0
        %3446 = vmatpush1.xpose.msra.mxu0 0.0
        %3447 = vmatprep.subr.mxu0 0.0
        %3448 = vmatpush1.xpose.msra.mxu0 0.0
        %3449 = vmatprep.subr.mxu0 0.0
        %3450 = vmatpush1.xpose.msra.mxu0 0.0
        %v3451 = vand.u32 %v378, 4294901760
        %v3452 = vsub.f32 %v378, %v3451
        %v3453 = vand.u32 %v3452, 4294901760
        %3454 = vmatprep.mubr.f32.mxu0 %v3453
        %v3455 = vand.u32 %v364, 4294901760
        %v3456 = vsub.f32 %v364, %v3455
        %v3457 = vand.u32 %v3456, 4294901760
        %3458 = vmatmul.mubr.f32.gmra.mrb[0].mxu0 %v3457
        %v3459 = vpop.f32.mrb[0].mxu0
        %v3460 = vadd.f32 %v3382, %v3459
        %v3461 = vpop.f32.mrb[0].mxu0
        %3462 = vdwg.mxu0
        %v3463 = vand.u32 %v1305, 4294901760
        %v3464 = vsub.f32 %v1305, %v3463
        %v3465 = vand.u32 %v3464, 4294901760
        %3466 = vmatprep.subr.mxu0 %v3465
        %v3467 = vand.u32 %v375, 4294901760
        %v3468 = vsub.f32 %v375, %v3467
        %v3469 = vand.u32 %v3468, 4294901760
        %3470 = vmatpush1.xpose.msra.mxu0 %v3469
        %3471 = vmatprep.subr.mxu0 0.0
        %3472 = vmatpush1.xpose.msra.mxu0 0.0
        %3473 = vmatprep.subr.mxu0 0.0
        %3474 = vmatpush1.xpose.msra.mxu0 0.0
        %3475 = vmatprep.subr.mxu0 0.0
        %3476 = vmatpush1.xpose.msra.mxu0 0.0
        %3477 = vmatprep.subr.mxu0 0.0
        %3478 = vmatpush1.xpose.msra.mxu0 0.0
        %3479 = vmatprep.subr.mxu0 0.0
        %3480 = vmatpush1.xpose.msra.mxu0 0.0
        %3481 = vmatprep.subr.mxu0 0.0
        %3482 = vmatpush1.xpose.msra.mxu0 0.0
        %3483 = vmatprep.subr.mxu0 0.0
        %3484 = vmatpush1.xpose.msra.mxu0 0.0
        %3485 = vmatprep.subr.mxu0 0.0
        %3486 = vmatpush1.xpose.msra.mxu0 0.0
        %3487 = vmatprep.subr.mxu0 0.0
        %3488 = vmatpush1.xpose.msra.mxu0 0.0
        %3489 = vmatprep.subr.mxu0 0.0
        %3490 = vmatpush1.xpose.msra.mxu0 0.0
        %3491 = vmatprep.subr.mxu0 0.0
        %3492 = vmatpush1.xpose.msra.mxu0 0.0
        %3493 = vmatprep.subr.mxu0 0.0
        %3494 = vmatpush1.xpose.msra.mxu0 0.0
        %3495 = vmatprep.subr.mxu0 0.0
        %3496 = vmatpush1.xpose.msra.mxu0 0.0
        %3497 = vmatprep.subr.mxu0 0.0
        %3498 = vmatpush1.xpose.msra.mxu0 0.0
        %3499 = vmatprep.subr.mxu0 0.0
        %3500 = vmatpush1.xpose.msra.mxu0 0.0
        %3501 = vmatprep.subr.mxu0 0.0
        %3502 = vmatpush1.xpose.msra.mxu0 0.0
        %3503 = vmatprep.subr.mxu0 0.0
        %3504 = vmatpush1.xpose.msra.mxu0 0.0
        %3505 = vmatprep.subr.mxu0 0.0
        %3506 = vmatpush1.xpose.msra.mxu0 0.0
        %3507 = vmatprep.subr.mxu0 0.0
        %3508 = vmatpush1.xpose.msra.mxu0 0.0
        %3509 = vmatprep.subr.mxu0 0.0
        %3510 = vmatpush1.xpose.msra.mxu0 0.0
        %3511 = vmatprep.subr.mxu0 0.0
        %3512 = vmatpush1.xpose.msra.mxu0 0.0
        %3513 = vmatprep.subr.mxu0 0.0
        %3514 = vmatpush1.xpose.msra.mxu0 0.0
        %3515 = vmatprep.subr.mxu0 0.0
        %3516 = vmatpush1.xpose.msra.mxu0 0.0
        %3517 = vmatprep.subr.mxu0 0.0
        %3518 = vmatpush1.xpose.msra.mxu0 0.0
        %3519 = vmatprep.subr.mxu0 0.0
        %3520 = vmatpush1.xpose.msra.mxu0 0.0
        %3521 = vmatprep.subr.mxu0 0.0
        %3522 = vmatpush1.xpose.msra.mxu0 0.0
        %3523 = vmatprep.subr.mxu0 0.0
        %3524 = vmatpush1.xpose.msra.mxu0 0.0
        %3525 = vmatprep.subr.mxu0 0.0
        %3526 = vmatpush1.xpose.msra.mxu0 0.0
        %3527 = vmatprep.subr.mxu0 0.0
        %3528 = vmatpush1.xpose.msra.mxu0 0.0
        %3529 = vmatprep.subr.mxu0 0.0
        %3530 = vmatpush1.xpose.msra.mxu0 0.0
        %3531 = vmatprep.subr.mxu0 0.0
        %3532 = vmatpush1.xpose.msra.mxu0 0.0
        %v3533 = vand.u32 %v378, 4294901760
        %3534 = vmatprep.mubr.f32.mxu0 %v3533
        %v3535 = vand.u32 %v364, 4294901760
        %3536 = vmatmul.mubr.f32.gmra.mrb[0].mxu0 %v3535
        %v3537 = vpop.f32.mrb[0].mxu0
        %v3538 = vadd.f32 %v3460, %v3537
        %v3539 = vpop.f32.mrb[0].mxu0
        %3540 = vdwg.mxu0
        %v3541 = vand.u32 %v1305, 4294901760
        %3542 = vmatprep.subr.mxu0 %v3541
        %v3543 = vand.u32 %v375, 4294901760
        %3544 = vmatpush1.xpose.msra.mxu0 %v3543
        %3545 = vmatprep.subr.mxu0 0.0
        %3546 = vmatpush1.xpose.msra.mxu0 0.0
        %3547 = vmatprep.subr.mxu0 0.0
        %3548 = vmatpush1.xpose.msra.mxu0 0.0
        %3549 = vmatprep.subr.mxu0 0.0
        %3550 = vmatpush1.xpose.msra.mxu0 0.0
        %3551 = vmatprep.subr.mxu0 0.0
        %3552 = vmatpush1.xpose.msra.mxu0 0.0
        %3553 = vmatprep.subr.mxu0 0.0
        %3554 = vmatpush1.xpose.msra.mxu0 0.0
        %3555 = vmatprep.subr.mxu0 0.0
        %3556 = vmatpush1.xpose.msra.mxu0 0.0
        %3557 = vmatprep.subr.mxu0 0.0
        %3558 = vmatpush1.xpose.msra.mxu0 0.0
        %3559 = vmatprep.subr.mxu0 0.0
        %3560 = vmatpush1.xpose.msra.mxu0 0.0
        %3561 = vmatprep.subr.mxu0 0.0
        %3562 = vmatpush1.xpose.msra.mxu0 0.0
        %3563 = vmatprep.subr.mxu0 0.0
        %3564 = vmatpush1.xpose.msra.mxu0 0.0
        %3565 = vmatprep.subr.mxu0 0.0
        %3566 = vmatpush1.xpose.msra.mxu0 0.0
        %3567 = vmatprep.subr.mxu0 0.0
        %3568 = vmatpush1.xpose.msra.mxu0 0.0
        %3569 = vmatprep.subr.mxu0 0.0
        %3570 = vmatpush1.xpose.msra.mxu0 0.0
        %3571 = vmatprep.subr.mxu0 0.0
        %3572 = vmatpush1.xpose.msra.mxu0 0.0
        %3573 = vmatprep.subr.mxu0 0.0
        %3574 = vmatpush1.xpose.msra.mxu0 0.0
        %3575 = vmatprep.subr.mxu0 0.0
        %3576 = vmatpush1.xpose.msra.mxu0 0.0
        %3577 = vmatprep.subr.mxu0 0.0
        %3578 = vmatpush1.xpose.msra.mxu0 0.0
        %3579 = vmatprep.subr.mxu0 0.0
        %3580 = vmatpush1.xpose.msra.mxu0 0.0
        %3581 = vmatprep.subr.mxu0 0.0
        %3582 = vmatpush1.xpose.msra.mxu0 0.0
        %3583 = vmatprep.subr.mxu0 0.0
        %3584 = vmatpush1.xpose.msra.mxu0 0.0
        %3585 = vmatprep.subr.mxu0 0.0
        %3586 = vmatpush1.xpose.msra.mxu0 0.0
        %3587 = vmatprep.subr.mxu0 0.0
        %3588 = vmatpush1.xpose.msra.mxu0 0.0
        %3589 = vmatprep.subr.mxu0 0.0
        %3590 = vmatpush1.xpose.msra.mxu0 0.0
        %3591 = vmatprep.subr.mxu0 0.0
        %3592 = vmatpush1.xpose.msra.mxu0 0.0
        %3593 = vmatprep.subr.mxu0 0.0
        %3594 = vmatpush1.xpose.msra.mxu0 0.0
        %3595 = vmatprep.subr.mxu0 0.0
        %3596 = vmatpush1.xpose.msra.mxu0 0.0
        %3597 = vmatprep.subr.mxu0 0.0
        %3598 = vmatpush1.xpose.msra.mxu0 0.0
        %3599 = vmatprep.subr.mxu0 0.0
        %3600 = vmatpush1.xpose.msra.mxu0 0.0
        %3601 = vmatprep.subr.mxu0 0.0
        %3602 = vmatpush1.xpose.msra.mxu0 0.0
        %3603 = vmatprep.subr.mxu0 0.0
        %3604 = vmatpush1.xpose.msra.mxu0 0.0
        %3605 = vmatprep.subr.mxu0 0.0
        %3606 = vmatpush1.xpose.msra.mxu0 0.0
        %v3607 = vand.u32 %v378, 4294901760
        %3608 = vmatprep.mubr.f32.mxu0 %v3607
        %v3609 = vand.u32 %v364, 4294901760
        %3610 = vmatmul.mubr.f32.gmra.mrb[0].mxu0 %v3609
        %v3611 = vpop.f32.mrb[0].mxu0
        %v3612 = vadd.f32 %v3538, %v3611
        %v3613 = vpop.f32.mrb[0].mxu0
        %3614 = vdwg.mxu0
        %3615 = vmatprep.subr.mxu0 0.0
        %v3616 = vand.u32 %v376, 4294901760
        %3617 = vmatpush1.xpose.msra.mxu0 %v3616
        %3618 = vmatprep.subr.mxu0 0.0
        %3619 = vmatpush1.xpose.msra.mxu0 0.0
        %3620 = vmatprep.subr.mxu0 0.0
        %3621 = vmatpush1.xpose.msra.mxu0 0.0
        %3622 = vmatprep.subr.mxu0 0.0
        %3623 = vmatpush1.xpose.msra.mxu0 0.0
        %3624 = vmatprep.subr.mxu0 0.0
        %3625 = vmatpush1.xpose.msra.mxu0 0.0
        %3626 = vmatprep.subr.mxu0 0.0
        %3627 = vmatpush1.xpose.msra.mxu0 0.0
        %3628 = vmatprep.subr.mxu0 0.0
        %3629 = vmatpush1.xpose.msra.mxu0 0.0
        %3630 = vmatprep.subr.mxu0 0.0
        %3631 = vmatpush1.xpose.msra.mxu0 0.0
        %3632 = vmatprep.subr.mxu0 0.0
        %3633 = vmatpush1.xpose.msra.mxu0 0.0
        %3634 = vmatprep.subr.mxu0 0.0
        %3635 = vmatpush1.xpose.msra.mxu0 0.0
        %3636 = vmatprep.subr.mxu0 0.0
        %3637 = vmatpush1.xpose.msra.mxu0 0.0
        %3638 = vmatprep.subr.mxu0 0.0
        %3639 = vmatpush1.xpose.msra.mxu0 0.0
        %3640 = vmatprep.subr.mxu0 0.0
        %3641 = vmatpush1.xpose.msra.mxu0 0.0
        %3642 = vmatprep.subr.mxu0 0.0
        %3643 = vmatpush1.xpose.msra.mxu0 0.0
        %3644 = vmatprep.subr.mxu0 0.0
        %3645 = vmatpush1.xpose.msra.mxu0 0.0
        %3646 = vmatprep.subr.mxu0 0.0
        %3647 = vmatpush1.xpose.msra.mxu0 0.0
        %3648 = vmatprep.subr.mxu0 0.0
        %3649 = vmatpush1.xpose.msra.mxu0 0.0
        %3650 = vmatprep.subr.mxu0 0.0
        %3651 = vmatpush1.xpose.msra.mxu0 0.0
        %3652 = vmatprep.subr.mxu0 0.0
        %3653 = vmatpush1.xpose.msra.mxu0 0.0
        %3654 = vmatprep.subr.mxu0 0.0
        %3655 = vmatpush1.xpose.msra.mxu0 0.0
        %3656 = vmatprep.subr.mxu0 0.0
        %3657 = vmatpush1.xpose.msra.mxu0 0.0
        %3658 = vmatprep.subr.mxu0 0.0
        %3659 = vmatpush1.xpose.msra.mxu0 0.0
        %3660 = vmatprep.subr.mxu0 0.0
        %3661 = vmatpush1.xpose.msra.mxu0 0.0
        %3662 = vmatprep.subr.mxu0 0.0
        %3663 = vmatpush1.xpose.msra.mxu0 0.0
        %3664 = vmatprep.subr.mxu0 0.0
        %3665 = vmatpush1.xpose.msra.mxu0 0.0
        %3666 = vmatprep.subr.mxu0 0.0
        %3667 = vmatpush1.xpose.msra.mxu0 0.0
        %3668 = vmatprep.subr.mxu0 0.0
        %3669 = vmatpush1.xpose.msra.mxu0 0.0
        %3670 = vmatprep.subr.mxu0 0.0
        %3671 = vmatpush1.xpose.msra.mxu0 0.0
        %3672 = vmatprep.subr.mxu0 0.0
        %3673 = vmatpush1.xpose.msra.mxu0 0.0
        %3674 = vmatprep.subr.mxu0 0.0
        %3675 = vmatpush1.xpose.msra.mxu0 0.0
        %3676 = vmatprep.subr.mxu0 0.0
        %3677 = vmatpush1.xpose.msra.mxu0 0.0
        %3678 = vmatprep.subr.mxu0 0.0
        %3679 = vmatpush1.xpose.msra.mxu0 0.0
        %3680 = vmatprep.mubr.f32.mxu0 0.0
        %v3681 = vand.u32 %v365, 4294901760
        %v3682 = vsub.f32 %v365, %v3681
        %v3683 = vand.u32 %v3682, 4294901760
        %v3684 = vsub.f32 %v3682, %v3683
        %v3685 = vand.u32 %v3684, 4294901760
        %3686 = vmatmul.mubr.f32.gmra.mrb[0].mxu0 %v3685
        %v3687 = vpop.f32.mrb[0].mxu0
        %v3688 = vadd.f32 %v3612, %v3687
        %v3689 = vpop.f32.mrb[0].mxu0
        %3690 = vdwg.mxu0
        %3691 = vmatprep.subr.mxu0 0.0
        %v3692 = vand.u32 %v376, 4294901760
        %v3693 = vsub.f32 %v376, %v3692
        %v3694 = vand.u32 %v3693, 4294901760
        %v3695 = vsub.f32 %v3693, %v3694
        %v3696 = vand.u32 %v3695, 4294901760
        %3697 = vmatpush1.xpose.msra.mxu0 %v3696
        %3698 = vmatprep.subr.mxu0 0.0
        %3699 = vmatpush1.xpose.msra.mxu0 0.0
        %3700 = vmatprep.subr.mxu0 0.0
        %3701 = vmatpush1.xpose.msra.mxu0 0.0
        %3702 = vmatprep.subr.mxu0 0.0
        %3703 = vmatpush1.xpose.msra.mxu0 0.0
        %3704 = vmatprep.subr.mxu0 0.0
        %3705 = vmatpush1.xpose.msra.mxu0 0.0
        %3706 = vmatprep.subr.mxu0 0.0
        %3707 = vmatpush1.xpose.msra.mxu0 0.0
        %3708 = vmatprep.subr.mxu0 0.0
        %3709 = vmatpush1.xpose.msra.mxu0 0.0
        %3710 = vmatprep.subr.mxu0 0.0
        %3711 = vmatpush1.xpose.msra.mxu0 0.0
        %3712 = vmatprep.subr.mxu0 0.0
        %3713 = vmatpush1.xpose.msra.mxu0 0.0
        %3714 = vmatprep.subr.mxu0 0.0
        %3715 = vmatpush1.xpose.msra.mxu0 0.0
        %3716 = vmatprep.subr.mxu0 0.0
        %3717 = vmatpush1.xpose.msra.mxu0 0.0
        %3718 = vmatprep.subr.mxu0 0.0
        %3719 = vmatpush1.xpose.msra.mxu0 0.0
        %3720 = vmatprep.subr.mxu0 0.0
        %3721 = vmatpush1.xpose.msra.mxu0 0.0
        %3722 = vmatprep.subr.mxu0 0.0
        %3723 = vmatpush1.xpose.msra.mxu0 0.0
        %3724 = vmatprep.subr.mxu0 0.0
        %3725 = vmatpush1.xpose.msra.mxu0 0.0
        %3726 = vmatprep.subr.mxu0 0.0
        %3727 = vmatpush1.xpose.msra.mxu0 0.0
        %3728 = vmatprep.subr.mxu0 0.0
        %3729 = vmatpush1.xpose.msra.mxu0 0.0
        %3730 = vmatprep.subr.mxu0 0.0
        %3731 = vmatpush1.xpose.msra.mxu0 0.0
        %3732 = vmatprep.subr.mxu0 0.0
        %3733 = vmatpush1.xpose.msra.mxu0 0.0
        %3734 = vmatprep.subr.mxu0 0.0
        %3735 = vmatpush1.xpose.msra.mxu0 0.0
        %3736 = vmatprep.subr.mxu0 0.0
        %3737 = vmatpush1.xpose.msra.mxu0 0.0
        %3738 = vmatprep.subr.mxu0 0.0
        %3739 = vmatpush1.xpose.msra.mxu0 0.0
        %3740 = vmatprep.subr.mxu0 0.0
        %3741 = vmatpush1.xpose.msra.mxu0 0.0
        %3742 = vmatprep.subr.mxu0 0.0
        %3743 = vmatpush1.xpose.msra.mxu0 0.0
        %3744 = vmatprep.subr.mxu0 0.0
        %3745 = vmatpush1.xpose.msra.mxu0 0.0
        %3746 = vmatprep.subr.mxu0 0.0
        %3747 = vmatpush1.xpose.msra.mxu0 0.0
        %3748 = vmatprep.subr.mxu0 0.0
        %3749 = vmatpush1.xpose.msra.mxu0 0.0
        %3750 = vmatprep.subr.mxu0 0.0
        %3751 = vmatpush1.xpose.msra.mxu0 0.0
        %3752 = vmatprep.subr.mxu0 0.0
        %3753 = vmatpush1.xpose.msra.mxu0 0.0
        %3754 = vmatprep.subr.mxu0 0.0
        %3755 = vmatpush1.xpose.msra.mxu0 0.0
        %3756 = vmatprep.subr.mxu0 0.0
        %3757 = vmatpush1.xpose.msra.mxu0 0.0
        %3758 = vmatprep.subr.mxu0 0.0
        %3759 = vmatpush1.xpose.msra.mxu0 0.0
        %3760 = vmatprep.mubr.f32.mxu0 0.0
        %v3761 = vand.u32 %v365, 4294901760
        %3762 = vmatmul.mubr.f32.gmra.mrb[0].mxu0 %v3761
        %v3763 = vpop.f32.mrb[0].mxu0
        %v3764 = vadd.f32 %v3688, %v3763
        %v3765 = vpop.f32.mrb[0].mxu0
        %3766 = vdwg.mxu0
        %3767 = vmatprep.subr.mxu0 0.0
        %v3768 = vand.u32 %v376, 4294901760
        %v3769 = vsub.f32 %v376, %v3768
        %3770 = vmatpush1.xpose.msra.mxu0 %v3769
        %3771 = vmatprep.subr.mxu0 0.0
        %3772 = vmatpush1.xpose.msra.mxu0 0.0
        %3773 = vmatprep.subr.mxu0 0.0
        %3774 = vmatpush1.xpose.msra.mxu0 0.0
        %3775 = vmatprep.subr.mxu0 0.0
        %3776 = vmatpush1.xpose.msra.mxu0 0.0
        %3777 = vmatprep.subr.mxu0 0.0
        %3778 = vmatpush1.xpose.msra.mxu0 0.0
        %3779 = vmatprep.subr.mxu0 0.0
        %3780 = vmatpush1.xpose.msra.mxu0 0.0
        %3781 = vmatprep.subr.mxu0 0.0
        %3782 = vmatpush1.xpose.msra.mxu0 0.0
        %3783 = vmatprep.subr.mxu0 0.0
        %3784 = vmatpush1.xpose.msra.mxu0 0.0
        %3785 = vmatprep.subr.mxu0 0.0
        %3786 = vmatpush1.xpose.msra.mxu0 0.0
        %3787 = vmatprep.subr.mxu0 0.0
        %3788 = vmatpush1.xpose.msra.mxu0 0.0
        %3789 = vmatprep.subr.mxu0 0.0
        %3790 = vmatpush1.xpose.msra.mxu0 0.0
        %3791 = vmatprep.subr.mxu0 0.0
        %3792 = vmatpush1.xpose.msra.mxu0 0.0
        %3793 = vmatprep.subr.mxu0 0.0
        %3794 = vmatpush1.xpose.msra.mxu0 0.0
        %3795 = vmatprep.subr.mxu0 0.0
        %3796 = vmatpush1.xpose.msra.mxu0 0.0
        %3797 = vmatprep.subr.mxu0 0.0
        %3798 = vmatpush1.xpose.msra.mxu0 0.0
        %3799 = vmatprep.subr.mxu0 0.0
        %3800 = vmatpush1.xpose.msra.mxu0 0.0
        %3801 = vmatprep.subr.mxu0 0.0
        %3802 = vmatpush1.xpose.msra.mxu0 0.0
        %3803 = vmatprep.subr.mxu0 0.0
        %3804 = vmatpush1.xpose.msra.mxu0 0.0
        %3805 = vmatprep.subr.mxu0 0.0
        %3806 = vmatpush1.xpose.msra.mxu0 0.0
        %3807 = vmatprep.subr.mxu0 0.0
        %3808 = vmatpush1.xpose.msra.mxu0 0.0
        %3809 = vmatprep.subr.mxu0 0.0
        %3810 = vmatpush1.xpose.msra.mxu0 0.0
        %3811 = vmatprep.subr.mxu0 0.0
        %3812 = vmatpush1.xpose.msra.mxu0 0.0
        %3813 = vmatprep.subr.mxu0 0.0
        %3814 = vmatpush1.xpose.msra.mxu0 0.0
        %3815 = vmatprep.subr.mxu0 0.0
        %3816 = vmatpush1.xpose.msra.mxu0 0.0
        %3817 = vmatprep.subr.mxu0 0.0
        %3818 = vmatpush1.xpose.msra.mxu0 0.0
        %3819 = vmatprep.subr.mxu0 0.0
        %3820 = vmatpush1.xpose.msra.mxu0 0.0
        %3821 = vmatprep.subr.mxu0 0.0
        %3822 = vmatpush1.xpose.msra.mxu0 0.0
        %3823 = vmatprep.subr.mxu0 0.0
        %3824 = vmatpush1.xpose.msra.mxu0 0.0
        %3825 = vmatprep.subr.mxu0 0.0
        %3826 = vmatpush1.xpose.msra.mxu0 0.0
        %3827 = vmatprep.subr.mxu0 0.0
        %3828 = vmatpush1.xpose.msra.mxu0 0.0
        %3829 = vmatprep.subr.mxu0 0.0
        %3830 = vmatpush1.xpose.msra.mxu0 0.0
        %3831 = vmatprep.subr.mxu0 0.0
        %3832 = vmatpush1.xpose.msra.mxu0 0.0
        %3833 = vmatprep.mubr.f32.mxu0 0.0
        %v3834 = vand.u32 %v365, 4294901760
        %v3835 = vsub.f32 %v365, %v3834
        %3836 = vmatmul.mubr.f32.gmra.mrb[0].mxu0 %v3835
        %v3837 = vpop.f32.mrb[0].mxu0
        %v3838 = vadd.f32 %v3764, %v3837
        %v3839 = vpop.f32.mrb[0].mxu0
        %3840 = vdwg.mxu0
        %3841 = vmatprep.subr.mxu0 0.0
        %v3842 = vand.u32 %v376, 4294901760
        %3843 = vmatpush1.xpose.msra.mxu0 %v3842
        %3844 = vmatprep.subr.mxu0 0.0
        %3845 = vmatpush1.xpose.msra.mxu0 0.0
        %3846 = vmatprep.subr.mxu0 0.0
        %3847 = vmatpush1.xpose.msra.mxu0 0.0
        %3848 = vmatprep.subr.mxu0 0.0
        %3849 = vmatpush1.xpose.msra.mxu0 0.0
        %3850 = vmatprep.subr.mxu0 0.0
        %3851 = vmatpush1.xpose.msra.mxu0 0.0
        %3852 = vmatprep.subr.mxu0 0.0
        %3853 = vmatpush1.xpose.msra.mxu0 0.0
        %3854 = vmatprep.subr.mxu0 0.0
        %3855 = vmatpush1.xpose.msra.mxu0 0.0
        %3856 = vmatprep.subr.mxu0 0.0
        %3857 = vmatpush1.xpose.msra.mxu0 0.0
        %3858 = vmatprep.subr.mxu0 0.0
        %3859 = vmatpush1.xpose.msra.mxu0 0.0
        %3860 = vmatprep.subr.mxu0 0.0
        %3861 = vmatpush1.xpose.msra.mxu0 0.0
        %3862 = vmatprep.subr.mxu0 0.0
        %3863 = vmatpush1.xpose.msra.mxu0 0.0
        %3864 = vmatprep.subr.mxu0 0.0
        %3865 = vmatpush1.xpose.msra.mxu0 0.0
        %3866 = vmatprep.subr.mxu0 0.0
        %3867 = vmatpush1.xpose.msra.mxu0 0.0
        %3868 = vmatprep.subr.mxu0 0.0
        %3869 = vmatpush1.xpose.msra.mxu0 0.0
        %3870 = vmatprep.subr.mxu0 0.0
        %3871 = vmatpush1.xpose.msra.mxu0 0.0
        %3872 = vmatprep.subr.mxu0 0.0
        %3873 = vmatpush1.xpose.msra.mxu0 0.0
        %3874 = vmatprep.subr.mxu0 0.0
        %3875 = vmatpush1.xpose.msra.mxu0 0.0
        %3876 = vmatprep.subr.mxu0 0.0
        %3877 = vmatpush1.xpose.msra.mxu0 0.0
        %3878 = vmatprep.subr.mxu0 0.0
        %3879 = vmatpush1.xpose.msra.mxu0 0.0
        %3880 = vmatprep.subr.mxu0 0.0
        %3881 = vmatpush1.xpose.msra.mxu0 0.0
        %3882 = vmatprep.subr.mxu0 0.0
        %3883 = vmatpush1.xpose.msra.mxu0 0.0
        %3884 = vmatprep.subr.mxu0 0.0
        %3885 = vmatpush1.xpose.msra.mxu0 0.0
        %3886 = vmatprep.subr.mxu0 0.0
        %3887 = vmatpush1.xpose.msra.mxu0 0.0
        %3888 = vmatprep.subr.mxu0 0.0
        %3889 = vmatpush1.xpose.msra.mxu0 0.0
        %3890 = vmatprep.subr.mxu0 0.0
        %3891 = vmatpush1.xpose.msra.mxu0 0.0
        %3892 = vmatprep.subr.mxu0 0.0
        %3893 = vmatpush1.xpose.msra.mxu0 0.0
        %3894 = vmatprep.subr.mxu0 0.0
        %3895 = vmatpush1.xpose.msra.mxu0 0.0
        %3896 = vmatprep.subr.mxu0 0.0
        %3897 = vmatpush1.xpose.msra.mxu0 0.0
        %3898 = vmatprep.subr.mxu0 0.0
        %3899 = vmatpush1.xpose.msra.mxu0 0.0
        %3900 = vmatprep.subr.mxu0 0.0
        %3901 = vmatpush1.xpose.msra.mxu0 0.0
        %3902 = vmatprep.subr.mxu0 0.0
        %3903 = vmatpush1.xpose.msra.mxu0 0.0
        %3904 = vmatprep.subr.mxu0 0.0
        %3905 = vmatpush1.xpose.msra.mxu0 0.0
        %3906 = vmatprep.mubr.f32.mxu0 0.0
        %v3907 = vand.u32 %v365, 4294901760
        %v3908 = vsub.f32 %v365, %v3907
        %v3909 = vand.u32 %v3908, 4294901760
        %3910 = vmatmul.mubr.f32.gmra.mrb[0].mxu0 %v3909
        %v3911 = vpop.f32.mrb[0].mxu0
        %v3912 = vadd.f32 %v3838, %v3911
        %v3913 = vpop.f32.mrb[0].mxu0
        %3914 = vdwg.mxu0
        %3915 = vmatprep.subr.mxu0 0.0
        %v3916 = vand.u32 %v376, 4294901760
        %v3917 = vsub.f32 %v376, %v3916
        %v3918 = vand.u32 %v3917, 4294901760
        %3919 = vmatpush1.xpose.msra.mxu0 %v3918
        %3920 = vmatprep.subr.mxu0 0.0
        %3921 = vmatpush1.xpose.msra.mxu0 0.0
        %3922 = vmatprep.subr.mxu0 0.0
        %3923 = vmatpush1.xpose.msra.mxu0 0.0
        %3924 = vmatprep.subr.mxu0 0.0
        %3925 = vmatpush1.xpose.msra.mxu0 0.0
        %3926 = vmatprep.subr.mxu0 0.0
        %3927 = vmatpush1.xpose.msra.mxu0 0.0
        %3928 = vmatprep.subr.mxu0 0.0
        %3929 = vmatpush1.xpose.msra.mxu0 0.0
        %3930 = vmatprep.subr.mxu0 0.0
        %3931 = vmatpush1.xpose.msra.mxu0 0.0
        %3932 = vmatprep.subr.mxu0 0.0
        %3933 = vmatpush1.xpose.msra.mxu0 0.0
        %3934 = vmatprep.subr.mxu0 0.0
        %3935 = vmatpush1.xpose.msra.mxu0 0.0
        %3936 = vmatprep.subr.mxu0 0.0
        %3937 = vmatpush1.xpose.msra.mxu0 0.0
        %3938 = vmatprep.subr.mxu0 0.0
        %3939 = vmatpush1.xpose.msra.mxu0 0.0
        %3940 = vmatprep.subr.mxu0 0.0
        %3941 = vmatpush1.xpose.msra.mxu0 0.0
        %3942 = vmatprep.subr.mxu0 0.0
        %3943 = vmatpush1.xpose.msra.mxu0 0.0
        %3944 = vmatprep.subr.mxu0 0.0
        %3945 = vmatpush1.xpose.msra.mxu0 0.0
        %3946 = vmatprep.subr.mxu0 0.0
        %3947 = vmatpush1.xpose.msra.mxu0 0.0
        %3948 = vmatprep.subr.mxu0 0.0
        %3949 = vmatpush1.xpose.msra.mxu0 0.0
        %3950 = vmatprep.subr.mxu0 0.0
        %3951 = vmatpush1.xpose.msra.mxu0 0.0
        %3952 = vmatprep.subr.mxu0 0.0
        %3953 = vmatpush1.xpose.msra.mxu0 0.0
        %3954 = vmatprep.subr.mxu0 0.0
        %3955 = vmatpush1.xpose.msra.mxu0 0.0
        %3956 = vmatprep.subr.mxu0 0.0
        %3957 = vmatpush1.xpose.msra.mxu0 0.0
        %3958 = vmatprep.subr.mxu0 0.0
        %3959 = vmatpush1.xpose.msra.mxu0 0.0
        %3960 = vmatprep.subr.mxu0 0.0
        %3961 = vmatpush1.xpose.msra.mxu0 0.0
        %3962 = vmatprep.subr.mxu0 0.0
        %3963 = vmatpush1.xpose.msra.mxu0 0.0
        %3964 = vmatprep.subr.mxu0 0.0
        %3965 = vmatpush1.xpose.msra.mxu0 0.0
        %3966 = vmatprep.subr.mxu0 0.0
        %3967 = vmatpush1.xpose.msra.mxu0 0.0
        %3968 = vmatprep.subr.mxu0 0.0
        %3969 = vmatpush1.xpose.msra.mxu0 0.0
        %3970 = vmatprep.subr.mxu0 0.0
        %3971 = vmatpush1.xpose.msra.mxu0 0.0
        %3972 = vmatprep.subr.mxu0 0.0
        %3973 = vmatpush1.xpose.msra.mxu0 0.0
        %3974 = vmatprep.subr.mxu0 0.0
        %3975 = vmatpush1.xpose.msra.mxu0 0.0
        %3976 = vmatprep.subr.mxu0 0.0
        %3977 = vmatpush1.xpose.msra.mxu0 0.0
        %3978 = vmatprep.subr.mxu0 0.0
        %3979 = vmatpush1.xpose.msra.mxu0 0.0
        %3980 = vmatprep.subr.mxu0 0.0
        %3981 = vmatpush1.xpose.msra.mxu0 0.0
        %3982 = vmatprep.mubr.f32.mxu0 0.0
        %v3983 = vand.u32 %v365, 4294901760
        %3984 = vmatmul.mubr.f32.gmra.mrb[0].mxu0 %v3983
        %v3985 = vpop.f32.mrb[0].mxu0
        %v3986 = vadd.f32 %v3912, %v3985
        %v3987 = vpop.f32.mrb[0].mxu0
        %3988 = vdwg.mxu0
        %3989 = vmatprep.subr.mxu0 0.0
        %v3990 = vand.u32 %v376, 4294901760
        %3991 = vmatpush1.xpose.msra.mxu0 %v3990
        %3992 = vmatprep.subr.mxu0 0.0
        %3993 = vmatpush1.xpose.msra.mxu0 0.0
        %3994 = vmatprep.subr.mxu0 0.0
        %3995 = vmatpush1.xpose.msra.mxu0 0.0
        %3996 = vmatprep.subr.mxu0 0.0
        %3997 = vmatpush1.xpose.msra.mxu0 0.0
        %3998 = vmatprep.subr.mxu0 0.0
        %3999 = vmatpush1.xpose.msra.mxu0 0.0
        %4000 = vmatprep.subr.mxu0 0.0
        %4001 = vmatpush1.xpose.msra.mxu0 0.0
        %4002 = vmatprep.subr.mxu0 0.0
        %4003 = vmatpush1.xpose.msra.mxu0 0.0
        %4004 = vmatprep.subr.mxu0 0.0
        %4005 = vmatpush1.xpose.msra.mxu0 0.0
        %4006 = vmatprep.subr.mxu0 0.0
        %4007 = vmatpush1.xpose.msra.mxu0 0.0
        %4008 = vmatprep.subr.mxu0 0.0
        %4009 = vmatpush1.xpose.msra.mxu0 0.0
        %4010 = vmatprep.subr.mxu0 0.0
        %4011 = vmatpush1.xpose.msra.mxu0 0.0
        %4012 = vmatprep.subr.mxu0 0.0
        %4013 = vmatpush1.xpose.msra.mxu0 0.0
        %4014 = vmatprep.subr.mxu0 0.0
        %4015 = vmatpush1.xpose.msra.mxu0 0.0
        %4016 = vmatprep.subr.mxu0 0.0
        %4017 = vmatpush1.xpose.msra.mxu0 0.0
        %4018 = vmatprep.subr.mxu0 0.0
        %4019 = vmatpush1.xpose.msra.mxu0 0.0
        %4020 = vmatprep.subr.mxu0 0.0
        %4021 = vmatpush1.xpose.msra.mxu0 0.0
        %4022 = vmatprep.subr.mxu0 0.0
        %4023 = vmatpush1.xpose.msra.mxu0 0.0
        %4024 = vmatprep.subr.mxu0 0.0
        %4025 = vmatpush1.xpose.msra.mxu0 0.0
        %4026 = vmatprep.subr.mxu0 0.0
        %4027 = vmatpush1.xpose.msra.mxu0 0.0
        %4028 = vmatprep.subr.mxu0 0.0
        %4029 = vmatpush1.xpose.msra.mxu0 0.0
        %4030 = vmatprep.subr.mxu0 0.0
        %4031 = vmatpush1.xpose.msra.mxu0 0.0
        %4032 = vmatprep.subr.mxu0 0.0
        %4033 = vmatpush1.xpose.msra.mxu0 0.0
        %4034 = vmatprep.subr.mxu0 0.0
        %4035 = vmatpush1.xpose.msra.mxu0 0.0
        %4036 = vmatprep.subr.mxu0 0.0
        %4037 = vmatpush1.xpose.msra.mxu0 0.0
        %4038 = vmatprep.subr.mxu0 0.0
        %4039 = vmatpush1.xpose.msra.mxu0 0.0
        %4040 = vmatprep.subr.mxu0 0.0
        %4041 = vmatpush1.xpose.msra.mxu0 0.0
        %4042 = vmatprep.subr.mxu0 0.0
        %4043 = vmatpush1.xpose.msra.mxu0 0.0
        %4044 = vmatprep.subr.mxu0 0.0
        %4045 = vmatpush1.xpose.msra.mxu0 0.0
        %4046 = vmatprep.subr.mxu0 0.0
        %4047 = vmatpush1.xpose.msra.mxu0 0.0
        %4048 = vmatprep.subr.mxu0 0.0
        %4049 = vmatpush1.xpose.msra.mxu0 0.0
        %4050 = vmatprep.subr.mxu0 0.0
        %4051 = vmatpush1.xpose.msra.mxu0 0.0
        %4052 = vmatprep.subr.mxu0 0.0
        %4053 = vmatpush1.xpose.msra.mxu0 0.0
        %4054 = vmatprep.mubr.f32.mxu0 0.0
        %v4055 = vand.u32 %v365, 4294901760
        %4056 = vmatmul.mubr.f32.gmra.mrb[0].mxu0 %v4055
        %v4057 = vpop.f32.mrb[0].mxu0
        %v4058 = vadd.f32 %v3986, %v4057
        %v4059 = vpop.f32.mrb[0].mxu0
        %4060 = vdwg.mxu0
        %v4061 = vmul.f32 %v4058, -1.6689752e-05
        %vm4062 = vcmask 18432
        %4063 = vst.msk [vmem:[%s317] sm:$0x7] %vm4062, %v4061
        %v4064 = vsub.f32 %v1298, %v2222
        %v4065 = vmul.f32 %v4064, 1.6689752e-05
        %s4066 = scalar_lea.vmem %s317, 4
        %4067 = vst.msk [vmem:[%s4066] sm:$0x7] %vm4062, %v4065
        %p4068 = scmp.lt.s32.totalorder %s14, 1
        %s4069 = scalar_select %p4068, %s14, 1
        %s4070 = smul.addr %s4069, 2
        %s4071 = smul.addr %s4070, 4
        %s4072 = scalar_lea.vmem %s3, %s4071
        // Predicated region
        $region119: #{tpu_custom_call.1} parent=105 // pred_check
          %p4073 = pneg %p110
        $region120: #{tpu_custom_call.1} parent=105 // pred_check_branch
          %4075 = sbr.rel (%p4073) target = $region122
        $region121: #{tpu_custom_call.1} parent=105 // pred_region
          _
        $region122: #{tpu_custom_call.1} parent=105 // pred_fallthru
          _
      $region106: #{tpu_custom_call.1} parent=5 // pred_fallthru
        _
      %p4076 = scmp.le.s32.totalorder 2, %s9
      // Predicated region
      $region123: #{tpu_custom_call.1} parent=5 // pred_check
        %p4077 = pneg %p4076
      $region124: #{tpu_custom_call.1} parent=5 // pred_check_branch
        %4079 = sbr.rel (%p4077) target = $region126
      $region125: #{tpu_custom_call.1} parent=5 // pred_region
        %s4080 = ssub.s32 %s9, 2
        // Predicated region
        $region127: #{tpu_custom_call.1} parent=125 // pred_check
          %p4081 = pneg %p116
        $region128: #{tpu_custom_call.1} parent=125 // pred_check_branch
          %4083 = sbr.rel (%p4081) target = $region130
        $region129: #{tpu_custom_call.1} parent=125 // pred_region
          %p4084 = scmp.lt.s32.totalorder %s15, 1
          %s4085 = scalar_select %p4084, %s15, 1
          %s4086 = smul.addr %s4085, 2
          %s4087 = smul.addr %s4086, 4
          %s4088 = scalar_lea.vmem %s3, %s4087
        $region130: #{tpu_custom_call.1} parent=125 // pred_fallthru
          _
      $region126: #{tpu_custom_call.1} parent=5 // pred_fallthru
        _
    $region6: #{tpu_custom_call.1} parent=1 // loop_footer
      %s13 = sadd.s32 1, %s9
    $region7: #{tpu_custom_call.1} parent=1 // loop_footer_branch
      %8 = sbr.rel target = $region3
    $region8: #{tpu_custom_call.1} parent=1 // loop_exit
      _

</llo_original>
